<compile_context>
chip_gen: v7x
topology: tpu7x:2x2x1
jax: 0.10.0
libtpu: 0.0.40
codegen_flags: <defaults>
</compile_context>

<pallas_src>
import functools
import numpy as np
import jax
import jax.numpy as jnp
from jax import lax
from jax.experimental import pallas as pl
from jax.experimental.pallas import tpu as pltpu

# ---------------- config (small, deterministic synthetic mT5) ----------------
VOCAB = 128
D_MODEL = 32
N_HEADS = 4
D_KV = 8
INNER = N_HEADS * D_KV
D_FF = 64
N_LAYERS = 2
REL_BUCKETS = 8
REL_MAX_DIST = 16
LN_EPS = 1e-6
NEG_INF = -1e9


# ============================ in-kernel helpers ============================

def _rms(x, w, eps):
    # T5LayerNorm: RMS norm in fp32, no mean subtraction, no bias.  w is [1, D].
    var = jnp.mean(x * x, axis=-1, keepdims=True)
    return x * lax.rsqrt(var + eps) * w


def _gelu_new(g):
    # gelu_new (tanh approximation) as used by mT5's gated-gelu FF (fp32).
    return 0.5 * g * (1.0 + jnp.tanh(0.7978845608028654 * (g + 0.044715 * g * g * g)))


def _bf(x):
    return x.astype(jnp.bfloat16)


def _mm(a, b):
    # MXU matmul: bf16 operands, f32 accumulation.
    return jnp.dot(_bf(a), _bf(b), preferred_element_type=jnp.float32)


def _attention(q, k, v, bias, wo_ref):
    """q:[Tq,INNER]  k,v:[Tk,INNER]  (f32); bias:[H,Tq,Tk] additive (f32, already
    combines rel-pos bias / causal / key-pad / block-diagonal batch masks);
    wo_ref: [1, H, D_KV, D_MODEL] bf16 ref.  T5 attention has NO 1/sqrt(d_kv) scaling.
    Output projection accumulated per head (no concat).  Returns [Tq, D_MODEL] f32."""
    tq = q.shape[0]
    out = jnp.zeros((tq, D_MODEL), jnp.float32)
    for h in range(N_HEADS):                       # static unroll inside one kernel
        sl = slice(h * D_KV, (h + 1) * D_KV)
        s = lax.dot_general(
            _bf(q[:, sl]), _bf(k[:, sl]),
            dimension_numbers=(((1,), (1,)), ((), ())),
            preferred_element_type=jnp.float32) + bias[h]
        m = jnp.max(s, axis=-1, keepdims=True)
        e = jnp.exp(s - m)
        p = e * pl.reciprocal(jnp.sum(e, axis=-1, keepdims=True), approx=False)
        ctx = _mm(p, v[:, sl])                     # [Tq, D_KV]
        out = out + _mm(ctx, wo_ref[0, h])         # accumulate O-projection per head
    return out


# ==================== fused whole-stack kernels (one pallas_call each) ====================

def _encoder_stack_kernel(x_ref, bias_ref, ln_sa_ref, wqkv_ref, sa_wo_ref,
                          ln_ff_ref, wi_ref, ff_wo_ref, fln_ref,
                          o_ref, h_ref, *, eps):
    layer = pl.program_id(0)

    @pl.when(layer == 0)
    def _():
        h_ref[...] = x_ref[...]                    # load embeddings into resident state

    x = h_ref[...]                                 # [BT, D] f32, resident across layers
    bias = bias_ref[...]                           # [H, BT, BT] additive

    # --- self-attention sub-layer: RMSNorm -> fused qkv -> attention -> o-proj -> residual
    n = _rms(x, ln_sa_ref[0], eps)
    qkv = _mm(n, wqkv_ref[0])                      # [BT, 3*INNER]
    x = x + _attention(qkv[:, :INNER], qkv[:, INNER:2 * INNER], qkv[:, 2 * INNER:],
                       bias, sa_wo_ref)

    # --- feed-forward sub-layer: RMSNorm -> fused wi0|wi1 -> gated-GELU -> wo -> residual
    n = _rms(x, ln_ff_ref[0], eps)
    hf = _mm(n, wi_ref[0])                         # [BT, 2*D_FF] (lane-dense 128)
    a = _gelu_new(hf[:, :D_FF]) * hf[:, D_FF:]
    x = x + _mm(a, ff_wo_ref[0])

    h_ref[...] = x

    @pl.when(layer == pl.num_programs(0) - 1)
    def _():
        o_ref[...] = _rms(x, fln_ref[...], eps)    # encoder-final RMSNorm fused here


def _decoder_stack_kernel(x_ref, enc_ref, sbias_ref, cbias_ref,
                          ln_sa_ref, wqkv_ref, sa_wo_ref,
                          ln_ca_ref, ca_wq_ref, ca_wkv_ref, ca_wo_ref,
                          ln_ff_ref, wi_ref, ff_wo_ref,
                          fln_ref, lm_ref, logits_ref, h_ref, *, eps):
    layer = pl.program_id(0)

    @pl.when(layer == 0)
    def _():
        h_ref[...] = x_ref[...]

    x = h_ref[...]                                 # [BTd, D] f32, resident across layers

    # --- self-attention sub-layer ---
    n = _rms(x, ln_sa_ref[0], eps)
    qkv = _mm(n, wqkv_ref[0])
    x = x + _attention(qkv[:, :INNER], qkv[:, INNER:2 * INNER], qkv[:, 2 * INNER:],
                       sbias_ref[...], sa_wo_ref)

    # --- cross-attention sub-layer (k/v from encoder output; only the query side is normed)
    n = _rms(x, ln_ca_ref[0], eps)
    q = _mm(n, ca_wq_ref[0])                       # [BTd, INNER]
    kv = _mm(enc_ref[...], ca_wkv_ref[0])          # [BTe, 2*INNER]
    x = x + _attention(q, kv[:, :INNER], kv[:, INNER:], cbias_ref[...], ca_wo_ref)

    # --- feed-forward sub-layer ---
    n = _rms(x, ln_ff_ref[0], eps)
    hf = _mm(n, wi_ref[0])
    a = _gelu_new(hf[:, :D_FF]) * hf[:, D_FF:]
    x = x + _mm(a, ff_wo_ref[0])

    h_ref[...] = x

    @pl.when(layer == pl.num_programs(0) - 1)
    def _():
        nf = _rms(x, fln_ref[...], eps)            # decoder-final RMSNorm
        logits_ref[...] = _mm(nf, lm_ref[...])     # fused lm_head (lane-dense [*, 128])


# ================================ pallas_call wrappers ================================

_ARBITRARY_L = pltpu.CompilerParams(dimension_semantics=("arbitrary",))


def encoder_stack(x2d, bias, w):
    BT, D = x2d.shape
    L = w["ln_sa"].shape[0]
    return pl.pallas_call(
        functools.partial(_encoder_stack_kernel, eps=LN_EPS),
        out_shape=jax.ShapeDtypeStruct((BT, D), jnp.float32),
        grid=(L,),
        in_specs=[
            pl.BlockSpec((BT, D), lambda l: (0, 0)),                       # embeddings
            pl.BlockSpec((N_HEADS, BT, BT), lambda l: (0, 0, 0)),          # additive bias
            pl.BlockSpec((1, 1, D), lambda l: (l, 0, 0)),                  # ln_sa
            pl.BlockSpec((1, D, 3 * INNER), lambda l: (l, 0, 0)),          # wqkv
            pl.BlockSpec((1, N_HEADS, D_KV, D), lambda l: (l, 0, 0, 0)),   # sa_wo (per head)
            pl.BlockSpec((1, 1, D), lambda l: (l, 0, 0)),                  # ln_ff
            pl.BlockSpec((1, D, 2 * D_FF), lambda l: (l, 0, 0)),           # wi0|wi1
            pl.BlockSpec((1, D_FF, D), lambda l: (l, 0, 0)),               # ff_wo
            pl.BlockSpec((1, D), lambda l: (0, 0)),                        # final ln
        ],
        out_specs=pl.BlockSpec((BT, D), lambda l: (0, 0)),
        scratch_shapes=[pltpu.VMEM((BT, D), jnp.float32)],                 # resident activation
        compiler_params=_ARBITRARY_L,
    )(x2d, bias, w["ln_sa"], w["wqkv"], w["sa_wo"], w["ln_ff"], w["wi"],
      w["ff_wo"], w["final_ln"])


def decoder_stack_and_lm(x2d, enc2d, sbias, cbias, w):
    BTd, D = x2d.shape
    BTe = enc2d.shape[0]
    L = w["ln_sa"].shape[0]
    V = w["lm_head"].shape[1]
    return pl.pallas_call(
        functools.partial(_decoder_stack_kernel, eps=LN_EPS),
        out_shape=jax.ShapeDtypeStruct((BTd, V), jnp.float32),
        grid=(L,),
        in_specs=[
            pl.BlockSpec((BTd, D), lambda l: (0, 0)),                      # dec embeddings
            pl.BlockSpec((BTe, D), lambda l: (0, 0)),                      # encoder output
            pl.BlockSpec((N_HEADS, BTd, BTd), lambda l: (0, 0, 0)),        # self-attn bias
            pl.BlockSpec((N_HEADS, BTd, BTe), lambda l: (0, 0, 0)),        # cross-attn bias
            pl.BlockSpec((1, 1, D), lambda l: (l, 0, 0)),                  # ln_sa
            pl.BlockSpec((1, D, 3 * INNER), lambda l: (l, 0, 0)),          # sa wqkv
            pl.BlockSpec((1, N_HEADS, D_KV, D), lambda l: (l, 0, 0, 0)),   # sa wo
            pl.BlockSpec((1, 1, D), lambda l: (l, 0, 0)),                  # ln_ca
            pl.BlockSpec((1, D, INNER), lambda l: (l, 0, 0)),              # ca wq
            pl.BlockSpec((1, D, 2 * INNER), lambda l: (l, 0, 0)),          # ca wkv (fused k|v)
            pl.BlockSpec((1, N_HEADS, D_KV, D), lambda l: (l, 0, 0, 0)),   # ca wo
            pl.BlockSpec((1, 1, D), lambda l: (l, 0, 0)),                  # ln_ff
            pl.BlockSpec((1, D, 2 * D_FF), lambda l: (l, 0, 0)),           # wi0|wi1
            pl.BlockSpec((1, D_FF, D), lambda l: (l, 0, 0)),               # ff_wo
            pl.BlockSpec((1, D), lambda l: (0, 0)),                        # dec final ln
            pl.BlockSpec((D, V), lambda l: (0, 0)),                        # lm_head
        ],
        out_specs=pl.BlockSpec((BTd, V), lambda l: (0, 0)),                # lane-dense logits
        scratch_shapes=[pltpu.VMEM((BTd, D), jnp.float32)],
        compiler_params=_ARBITRARY_L,
    )(x2d, enc2d, sbias, cbias,
      w["ln_sa"], w["wqkv"], w["sa_wo"],
      w["ln_ca"], w["ca_wq"], w["ca_wkv"], w["ca_wo"],
      w["ln_ff"], w["wi"], w["ff_wo"], w["final_ln"], w["lm_head"])


# ================================ T5 model glue (plain JAX) ================================

def relative_position_bucket(rel_pos, bidirectional, num_buckets, max_distance):
    rb = jnp.zeros_like(rel_pos)
    if bidirectional:
        num_buckets = num_buckets // 2
        rb = rb + (rel_pos > 0).astype(jnp.int32) * num_buckets
        rel_pos = jnp.abs(rel_pos)
    else:
        rel_pos = -jnp.minimum(rel_pos, 0)
    max_exact = num_buckets // 2
    is_small = rel_pos < max_exact
    rel_f = jnp.maximum(rel_pos, 1).astype(jnp.float32)
    large = max_exact + (
        jnp.log(rel_f / max_exact) / np.log(max_distance / max_exact)
        * (num_buckets - max_exact)).astype(jnp.int32)
    large = jnp.minimum(large, num_buckets - 1)
    return rb + jnp.where(is_small, rel_pos, large)


def compute_position_bias(relpos_table, q_len, k_len, bidirectional):
    ctx = jnp.arange(q_len)[:, None]
    mem = jnp.arange(k_len)[None, :]
    rel = mem - ctx
    buckets = relative_position_bucket(rel, bidirectional, REL_BUCKETS, REL_MAX_DIST)
    bias = relpos_table[buckets]                       # [q, k, H]
    return jnp.transpose(bias, (2, 0, 1))              # [H, q, k]


def cross_entropy_loss(logits, labels):
    # CrossEntropyLoss(ignore_index=-100), mean over non-ignored tokens.
    V = logits.shape[-1]
    lf = logits.reshape(-1, V)
    yf = labels.reshape(-1)
    valid = yf != -100
    safe = jnp.where(valid, yf, 0)
    logp = jax.nn.log_softmax(lf, axis=-1)
    nll = -jnp.take_along_axis(logp, safe[:, None], axis=-1)[:, 0]
    nll = jnp.where(valid, nll, 0.0)
    return jnp.sum(nll) / jnp.maximum(jnp.sum(valid), 1)


@jax.jit
def t5_forward(params, input_ids, attention_mask, decoder_input_ids,
               decoder_attention_mask, labels):
    B, S_enc = input_ids.shape
    S_dec = decoder_input_ids.shape[1]
    emb = params["shared_emb"]

    # Batch is folded into the sublane dim inside the kernels; combine rel-pos bias,
    # causal mask, key-pad mask, and a block-diagonal batch mask into one tiny additive
    # bias tensor per attention kind ([H, B*T, B*T] ~ a few KB at these shapes).
    blk_ee = jnp.kron(jnp.eye(B, dtype=jnp.float32), jnp.ones((S_enc, S_enc), jnp.float32))
    blk_dd = jnp.kron(jnp.eye(B, dtype=jnp.float32), jnp.ones((S_dec, S_dec), jnp.float32))
    blk_de = jnp.kron(jnp.eye(B, dtype=jnp.float32), jnp.ones((S_dec, S_enc), jnp.float32))
    enc_keys = attention_mask.astype(jnp.float32).reshape(-1)          # [B*S_enc]
    dec_keys = decoder_attention_mask.astype(jnp.float32).reshape(-1)  # [B*S_dec]

    enc_pos = compute_position_bias(params["enc_relpos"], S_enc, S_enc, bidirectional=True)
    enc_bias = (jnp.tile(enc_pos, (1, B, B))
                + ((1.0 - blk_ee * enc_keys[None, :]) * NEG_INF)[None])

    causal = jnp.tril(jnp.ones((S_dec, S_dec), jnp.float32))
    dec_pos = compute_position_bias(params["dec_relpos"], S_dec, S_dec, bidirectional=False)
    dec_pos = dec_pos + (1.0 - causal)[None] * NEG_INF
    dec_bias = (jnp.tile(dec_pos, (1, B, B))
                + ((1.0 - blk_dd * dec_keys[None, :]) * NEG_INF)[None])

    cross_bias = jnp.broadcast_to(
        ((1.0 - blk_de * enc_keys[None, :]) * NEG_INF)[None],
        (N_HEADS, B * S_dec, B * S_enc))

    # ----- encoder: ONE fused pallas_call over all layers (+ final RMSNorm) -----
    enc_x = emb[input_ids].reshape(B * S_enc, D_MODEL)
    enc_h = encoder_stack(enc_x, enc_bias, params["encoder"])          # [B*S_enc, D]

    # ----- decoder: ONE fused pallas_call over all layers (+ final RMSNorm + lm_head) -----
    dec_x = emb[decoder_input_ids].reshape(B * S_dec, D_MODEL)
    logits = decoder_stack_and_lm(dec_x, enc_h, dec_bias, cross_bias,
                                  params["decoder"]).reshape(B, S_dec, VOCAB)

    loss = cross_entropy_loss(logits, labels)
    return loss, logits


# ================================ parameter init ================================

def init_params(key):
    keys = iter(jax.random.split(key, 256))

    def w(shape, scale=0.05, dtype=jnp.float32):
        return (jax.random.normal(next(keys), shape, jnp.float32) * scale).astype(dtype)

    def stack(shape, scale=0.05, dtype=jnp.bfloat16):
        return jnp.stack([w(shape, scale, dtype) for _ in range(N_LAYERS)])

    encoder = {
        "ln_sa": jnp.ones((N_LAYERS, 1, D_MODEL), jnp.float32),
        "wqkv": stack((D_MODEL, 3 * INNER)),                         # fused q|k|v
        "sa_wo": stack((N_HEADS, D_KV, D_MODEL)),                    # o-proj split per head
        "ln_ff": jnp.ones((N_LAYERS, 1, D_MODEL), jnp.float32),
        "wi": stack((D_MODEL, 2 * D_FF)),                            # fused wi_0|wi_1
        "ff_wo": stack((D_FF, D_MODEL)),
        "final_ln": jnp.ones((1, D_MODEL), jnp.float32),
    }
    decoder = {
        "ln_sa": jnp.ones((N_LAYERS, 1, D_MODEL), jnp.float32),
        "wqkv": stack((D_MODEL, 3 * INNER)),
        "sa_wo": stack((N_HEADS, D_KV, D_MODEL)),
        "ln_ca": jnp.ones((N_LAYERS, 1, D_MODEL), jnp.float32),
        "ca_wq": stack((D_MODEL, INNER)),
        "ca_wkv": stack((D_MODEL, 2 * INNER)),                       # fused k|v
        "ca_wo": stack((N_HEADS, D_KV, D_MODEL)),
        "ln_ff": jnp.ones((N_LAYERS, 1, D_MODEL), jnp.float32),
        "wi": stack((D_MODEL, 2 * D_FF)),
        "ff_wo": stack((D_FF, D_MODEL)),
        "final_ln": jnp.ones((1, D_MODEL), jnp.float32),
        "lm_head": w((D_MODEL, VOCAB), dtype=jnp.bfloat16),          # mT5: untied lm_head
    }
    return {
        "shared_emb": w((VOCAB, D_MODEL), 1.0),
        "enc_relpos": w((REL_BUCKETS, N_HEADS), 0.1),
        "dec_relpos": w((REL_BUCKETS, N_HEADS), 0.1),
        "encoder": encoder,
        "decoder": decoder,
    }


if __name__ == "__main__":
    key = jax.random.PRNGKey(0)
    pkey, ikey, dkey = jax.random.split(key, 3)
    params = init_params(pkey)

    B, S_ENC, S_DEC = 2, 8, 8
    input_ids = jax.random.randint(ikey, (B, S_ENC), 0, VOCAB, dtype=jnp.int32)
    decoder_input_ids = jax.random.randint(dkey, (B, S_DEC), 0, VOCAB, dtype=jnp.int32)
    attention_mask = jnp.ones((B, S_ENC), jnp.int32).at[1, 6:].set(0)   # pad last 2 of batch 1
    decoder_attention_mask = jnp.ones((B, S_DEC), jnp.int32)
    labels = decoder_input_ids                                          # teacher-forcing labels

    loss, logits = t5_forward(params, input_ids, attention_mask,
                              decoder_input_ids, decoder_attention_mask, labels)
    jax.block_until_ready(logits)

    assert logits.shape == (B, S_DEC, VOCAB)
    assert bool(jnp.isfinite(logits).all()) and bool(jnp.isfinite(loss))
    print("KERNEL_OK")
</pallas_src>

<mosaic_0001>
module attributes {stable_mosaic.version = 11 : i64} {
  func.func @_encoder_stack_kernel(%arg0: i32, %arg1: memref<16x32xf32, #tpu.memory_space<vmem>>, %arg2: memref<4x16x16xf32, #tpu.memory_space<vmem>>, %arg3: memref<1x1x32xf32, #tpu.memory_space<vmem>>, %arg4: memref<1x32x96xbf16, #tpu.memory_space<vmem>>, %arg5: memref<1x4x8x32xbf16, #tpu.memory_space<vmem>>, %arg6: memref<1x1x32xf32, #tpu.memory_space<vmem>>, %arg7: memref<1x32x128xbf16, #tpu.memory_space<vmem>>, %arg8: memref<1x64x32xbf16, #tpu.memory_space<vmem>>, %arg9: memref<1x32xf32, #tpu.memory_space<vmem>>, %arg10: memref<16x32xf32, #tpu.memory_space<vmem>>, %arg11: memref<16x32xf32, #tpu.memory_space<vmem>>) attributes {dimension_semantics = [#tpu.dimension_semantics<arbitrary>], iteration_bounds = array<i64: 2>, scalar_prefetch = 0 : i64, scratch_operands = 1 : i64, tpu.core_type = #tpu.core_type<tc>, window_params = [{pipeline_mode = #tpu.pipeline_mode<synchronous>, transform_indices = @transform_0, window_bounds = array<i64: 16, 32>}, {pipeline_mode = #tpu.pipeline_mode<synchronous>, transform_indices = @transform_1, window_bounds = array<i64: 4, 16, 16>}, {transform_indices = @transform_2, window_bounds = array<i64: 1, 1, 32>}, {transform_indices = @transform_3, window_bounds = array<i64: 1, 32, 96>}, {transform_indices = @transform_4, window_bounds = array<i64: 1, 4, 8, 32>}, {transform_indices = @transform_5, window_bounds = array<i64: 1, 1, 32>}, {transform_indices = @transform_6, window_bounds = array<i64: 1, 32, 128>}, {transform_indices = @transform_7, window_bounds = array<i64: 1, 64, 32>}, {pipeline_mode = #tpu.pipeline_mode<synchronous>, transform_indices = @transform_8, window_bounds = array<i64: 1, 32>}, {pipeline_mode = #tpu.pipeline_mode<synchronous>, transform_indices = @transform_9, window_bounds = array<i64: 16, 32>}]} {
    %c0_i32 = arith.constant 0 : i32
    %0 = arith.cmpi eq, %arg0, %c0_i32 : i32
    %1 = arith.extui %0 : i1 to i32
    %c0_i32_0 = arith.constant 0 : i32
    %2 = arith.cmpi ne, %1, %c0_i32_0 : i32
    scf.if %2 {
      %c0_69 = arith.constant 0 : index
      %c0_70 = arith.constant 0 : index
      %179 = vector.load %arg1[%c0_69, %c0_70] : memref<16x32xf32, #tpu.memory_space<vmem>>, vector<16x32xf32>
      %c0_71 = arith.constant 0 : index
      %c0_72 = arith.constant 0 : index
      %180 = vector.load %arg11[%c0_71, %c0_72] : memref<16x32xf32, #tpu.memory_space<vmem>>, vector<16x32xf32>
      tpu.vector_store %arg11[%c0_71, %c0_72], %179 {strides = array<i32>} : memref<16x32xf32, #tpu.memory_space<vmem>>, vector<16x32xf32>,
    } else {
    }
    %c0 = arith.constant 0 : index
    %c0_1 = arith.constant 0 : index
    %3 = vector.load %arg11[%c0, %c0_1] : memref<16x32xf32, #tpu.memory_space<vmem>>, vector<16x32xf32>
    %c0_2 = arith.constant 0 : index
    %c0_3 = arith.constant 0 : index
    %c0_4 = arith.constant 0 : index
    %4 = vector.load %arg2[%c0_2, %c0_3, %c0_4] : memref<4x16x16xf32, #tpu.memory_space<vmem>>, vector<4x16x16xf32>
    %c0_5 = arith.constant 0 : index
    %c0_6 = arith.constant 0 : index
    %c0_7 = arith.constant 0 : index
    %5 = vector.load %arg3[%c0_5, %c0_6, %c0_7] : memref<1x1x32xf32, #tpu.memory_space<vmem>>, vector<1x1x32xf32>
    %6 = vector.shape_cast %5 : vector<1x1x32xf32> to vector<1x32xf32>
    %7 = arith.mulf %3, %3 : vector<16x32xf32>
    %cst = arith.constant dense<0.000000e+00> : vector<16xf32>
    %8 = vector.multi_reduction <add>, %7, %cst [1] : vector<16x32xf32> to vector<16xf32>
    %9 = vector.shape_cast %8 : vector<16xf32> to vector<16x1xf32>
    %cst_8 = arith.constant 3.200000e+01 : f32
    %10 = vector.broadcast %cst_8 : f32 to vector<16x1xf32>
    %11 = arith.divf %9, %10 : vector<16x1xf32>
    %cst_9 = arith.constant 9.99999997E-7 : f32
    %12 = vector.broadcast %cst_9 : f32 to vector<16x1xf32>
    %13 = arith.addf %11, %12 : vector<16x1xf32>
    %14 = math.rsqrt %13 : vector<16x1xf32>
    %15 = vector.broadcast %14 : vector<16x1xf32> to vector<16x32xf32>
    %16 = arith.mulf %3, %15 : vector<16x32xf32>
    %17 = vector.broadcast %6 : vector<1x32xf32> to vector<16x32xf32>
    %18 = arith.mulf %16, %17 : vector<16x32xf32>
    %c0_10 = arith.constant 0 : index
    %c0_11 = arith.constant 0 : index
    %c0_12 = arith.constant 0 : index
    %19 = vector.load %arg4[%c0_10, %c0_11, %c0_12] : memref<1x32x96xbf16, #tpu.memory_space<vmem>>, vector<1x32x96xbf16>
    %20 = vector.shape_cast %19 : vector<1x32x96xbf16> to vector<32x96xbf16>
    %21 = arith.truncf %18 : vector<16x32xf32> to vector<16x32xbf16>
    %cst_13 = arith.constant dense<0.000000e+00> : vector<16x96xf32>
    %22 = tpu.matmul %21, %20, %cst_13 {dimension_numbers = #tpu.dot_dimension_numbers<[1], [0], [0], [1], [0, 0, 1, 1], [], []>} : vector<16x32xbf16>, vector<32x96xbf16>, vector<16x96xf32> -> vector<16x96xf32>
    %23 = vector.extract_strided_slice %22 {offsets = [0, 0], sizes = [16, 32], strides = [1, 1]} : vector<16x96xf32> to vector<16x32xf32>
    %24 = vector.extract_strided_slice %22 {offsets = [0, 32], sizes = [16, 32], strides = [1, 1]} : vector<16x96xf32> to vector<16x32xf32>
    %25 = vector.extract_strided_slice %22 {offsets = [0, 64], sizes = [16, 32], strides = [1, 1]} : vector<16x96xf32> to vector<16x32xf32>
    %cst_14 = arith.constant 0.000000e+00 : f32
    %26 = vector.broadcast %cst_14 : f32 to vector<16x32xf32>
    %27 = vector.extract_strided_slice %23 {offsets = [0, 0], sizes = [16, 8], strides = [1, 1]} : vector<16x32xf32> to vector<16x8xf32>
    %28 = arith.truncf %27 : vector<16x8xf32> to vector<16x8xbf16>
    %29 = vector.extract_strided_slice %24 {offsets = [0, 0], sizes = [16, 8], strides = [1, 1]} : vector<16x32xf32> to vector<16x8xf32>
    %30 = arith.truncf %29 : vector<16x8xf32> to vector<16x8xbf16>
    %cst_15 = arith.constant dense<0.000000e+00> : vector<16x16xf32>
    %31 = tpu.matmul %28, %30, %cst_15 {dimension_numbers = #tpu.dot_dimension_numbers<[1], [1], [0], [0], [0, 0, 1, 0], [], []>} : vector<16x8xbf16>, vector<16x8xbf16>, vector<16x16xf32> -> vector<16x16xf32>
    %32 = vector.extract_strided_slice %4 {offsets = [0, 0, 0], sizes = [1, 16, 16], strides = [1, 1, 1]} : vector<4x16x16xf32> to vector<1x16x16xf32>
    %33 = vector.shape_cast %32 : vector<1x16x16xf32> to vector<16x16xf32>
    %34 = arith.addf %31, %33 : vector<16x16xf32>
    %cst_16 = arith.constant dense<0xFF800000> : vector<16xf32>
    %35 = vector.multi_reduction <maximumf>, %34, %cst_16 [1] : vector<16x16xf32> to vector<16xf32>
    %36 = vector.shape_cast %35 : vector<16xf32> to vector<16x1xf32>
    %37 = vector.broadcast %36 : vector<16x1xf32> to vector<16x16xf32>
    %38 = arith.subf %34, %37 : vector<16x16xf32>
    %39 = math.exp %38 : vector<16x16xf32>
    %cst_17 = arith.constant dense<0.000000e+00> : vector<16xf32>
    %40 = vector.multi_reduction <add>, %39, %cst_17 [1] : vector<16x16xf32> to vector<16xf32>
    %41 = vector.shape_cast %40 : vector<16xf32> to vector<16x1xf32>
    %42 = tpu.reciprocal %41 : vector<16x1xf32> -> vector<16x1xf32>
    %43 = vector.broadcast %42 : vector<16x1xf32> to vector<16x16xf32>
    %44 = arith.mulf %39, %43 : vector<16x16xf32>
    %45 = vector.extract_strided_slice %25 {offsets = [0, 0], sizes = [16, 8], strides = [1, 1]} : vector<16x32xf32> to vector<16x8xf32>
    %46 = arith.truncf %44 : vector<16x16xf32> to vector<16x16xbf16>
    %47 = arith.truncf %45 : vector<16x8xf32> to vector<16x8xbf16>
    %cst_18 = arith.constant dense<0.000000e+00> : vector<16x8xf32>
    %48 = tpu.matmul %46, %47, %cst_18 {dimension_numbers = #tpu.dot_dimension_numbers<[1], [0], [0], [1], [0, 0, 1, 1], [], []>} : vector<16x16xbf16>, vector<16x8xbf16>, vector<16x8xf32> -> vector<16x8xf32>
    %c0_19 = arith.constant 0 : index
    %c0_20 = arith.constant 0 : index
    %c0_21 = arith.constant 0 : index
    %c0_22 = arith.constant 0 : index
    %49 = vector.load %arg5[%c0_19, %c0_20, %c0_21, %c0_22] : memref<1x4x8x32xbf16, #tpu.memory_space<vmem>>, vector<1x1x8x32xbf16>
    %50 = vector.shape_cast %49 : vector<1x1x8x32xbf16> to vector<8x32xbf16>
    %51 = arith.truncf %48 : vector<16x8xf32> to vector<16x8xbf16>
    %cst_23 = arith.constant dense<0.000000e+00> : vector<16x32xf32>
    %52 = tpu.matmul %51, %50, %cst_23 {dimension_numbers = #tpu.dot_dimension_numbers<[1], [0], [0], [1], [0, 0, 1, 1], [], []>} : vector<16x8xbf16>, vector<8x32xbf16>, vector<16x32xf32> -> vector<16x32xf32>
    %53 = arith.addf %26, %52 : vector<16x32xf32>
    %54 = vector.extract_strided_slice %23 {offsets = [0, 8], sizes = [16, 8], strides = [1, 1]} : vector<16x32xf32> to vector<16x8xf32>
    %55 = arith.truncf %54 : vector<16x8xf32> to vector<16x8xbf16>
    %56 = vector.extract_strided_slice %24 {offsets = [0, 8], sizes = [16, 8], strides = [1, 1]} : vector<16x32xf32> to vector<16x8xf32>
    %57 = arith.truncf %56 : vector<16x8xf32> to vector<16x8xbf16>
    %cst_24 = arith.constant dense<0.000000e+00> : vector<16x16xf32>
    %58 = tpu.matmul %55, %57, %cst_24 {dimension_numbers = #tpu.dot_dimension_numbers<[1], [1], [0], [0], [0, 0, 1, 0], [], []>} : vector<16x8xbf16>, vector<16x8xbf16>, vector<16x16xf32> -> vector<16x16xf32>
    %59 = vector.extract_strided_slice %4 {offsets = [1, 0, 0], sizes = [1, 16, 16], strides = [1, 1, 1]} : vector<4x16x16xf32> to vector<1x16x16xf32>
    %60 = vector.shape_cast %59 : vector<1x16x16xf32> to vector<16x16xf32>
    %61 = arith.addf %58, %60 : vector<16x16xf32>
    %cst_25 = arith.constant dense<0xFF800000> : vector<16xf32>
    %62 = vector.multi_reduction <maximumf>, %61, %cst_25 [1] : vector<16x16xf32> to vector<16xf32>
    %63 = vector.shape_cast %62 : vector<16xf32> to vector<16x1xf32>
    %64 = vector.broadcast %63 : vector<16x1xf32> to vector<16x16xf32>
    %65 = arith.subf %61, %64 : vector<16x16xf32>
    %66 = math.exp %65 : vector<16x16xf32>
    %cst_26 = arith.constant dense<0.000000e+00> : vector<16xf32>
    %67 = vector.multi_reduction <add>, %66, %cst_26 [1] : vector<16x16xf32> to vector<16xf32>
    %68 = vector.shape_cast %67 : vector<16xf32> to vector<16x1xf32>
    %69 = tpu.reciprocal %68 : vector<16x1xf32> -> vector<16x1xf32>
    %70 = vector.broadcast %69 : vector<16x1xf32> to vector<16x16xf32>
    %71 = arith.mulf %66, %70 : vector<16x16xf32>
    %72 = vector.extract_strided_slice %25 {offsets = [0, 8], sizes = [16, 8], strides = [1, 1]} : vector<16x32xf32> to vector<16x8xf32>
    %73 = arith.truncf %71 : vector<16x16xf32> to vector<16x16xbf16>
    %74 = arith.truncf %72 : vector<16x8xf32> to vector<16x8xbf16>
    %cst_27 = arith.constant dense<0.000000e+00> : vector<16x8xf32>
    %75 = tpu.matmul %73, %74, %cst_27 {dimension_numbers = #tpu.dot_dimension_numbers<[1], [0], [0], [1], [0, 0, 1, 1], [], []>} : vector<16x16xbf16>, vector<16x8xbf16>, vector<16x8xf32> -> vector<16x8xf32>
    %c0_28 = arith.constant 0 : index
    %c1 = arith.constant 1 : index
    %c0_29 = arith.constant 0 : index
    %c0_30 = arith.constant 0 : index
    %76 = vector.load %arg5[%c0_28, %c1, %c0_29, %c0_30] : memref<1x4x8x32xbf16, #tpu.memory_space<vmem>>, vector<1x1x8x32xbf16>
    %77 = vector.shape_cast %76 : vector<1x1x8x32xbf16> to vector<8x32xbf16>
    %78 = arith.truncf %75 : vector<16x8xf32> to vector<16x8xbf16>
    %cst_31 = arith.constant dense<0.000000e+00> : vector<16x32xf32>
    %79 = tpu.matmul %78, %77, %cst_31 {dimension_numbers = #tpu.dot_dimension_numbers<[1], [0], [0], [1], [0, 0, 1, 1], [], []>} : vector<16x8xbf16>, vector<8x32xbf16>, vector<16x32xf32> -> vector<16x32xf32>
    %80 = arith.addf %53, %79 : vector<16x32xf32>
    %81 = vector.extract_strided_slice %23 {offsets = [0, 16], sizes = [16, 8], strides = [1, 1]} : vector<16x32xf32> to vector<16x8xf32>
    %82 = arith.truncf %81 : vector<16x8xf32> to vector<16x8xbf16>
    %83 = vector.extract_strided_slice %24 {offsets = [0, 16], sizes = [16, 8], strides = [1, 1]} : vector<16x32xf32> to vector<16x8xf32>
    %84 = arith.truncf %83 : vector<16x8xf32> to vector<16x8xbf16>
    %cst_32 = arith.constant dense<0.000000e+00> : vector<16x16xf32>
    %85 = tpu.matmul %82, %84, %cst_32 {dimension_numbers = #tpu.dot_dimension_numbers<[1], [1], [0], [0], [0, 0, 1, 0], [], []>} : vector<16x8xbf16>, vector<16x8xbf16>, vector<16x16xf32> -> vector<16x16xf32>
    %86 = vector.extract_strided_slice %4 {offsets = [2, 0, 0], sizes = [1, 16, 16], strides = [1, 1, 1]} : vector<4x16x16xf32> to vector<1x16x16xf32>
    %87 = vector.shape_cast %86 : vector<1x16x16xf32> to vector<16x16xf32>
    %88 = arith.addf %85, %87 : vector<16x16xf32>
    %cst_33 = arith.constant dense<0xFF800000> : vector<16xf32>
    %89 = vector.multi_reduction <maximumf>, %88, %cst_33 [1] : vector<16x16xf32> to vector<16xf32>
    %90 = vector.shape_cast %89 : vector<16xf32> to vector<16x1xf32>
    %91 = vector.broadcast %90 : vector<16x1xf32> to vector<16x16xf32>
    %92 = arith.subf %88, %91 : vector<16x16xf32>
    %93 = math.exp %92 : vector<16x16xf32>
    %cst_34 = arith.constant dense<0.000000e+00> : vector<16xf32>
    %94 = vector.multi_reduction <add>, %93, %cst_34 [1] : vector<16x16xf32> to vector<16xf32>
    %95 = vector.shape_cast %94 : vector<16xf32> to vector<16x1xf32>
    %96 = tpu.reciprocal %95 : vector<16x1xf32> -> vector<16x1xf32>
    %97 = vector.broadcast %96 : vector<16x1xf32> to vector<16x16xf32>
    %98 = arith.mulf %93, %97 : vector<16x16xf32>
    %99 = vector.extract_strided_slice %25 {offsets = [0, 16], sizes = [16, 8], strides = [1, 1]} : vector<16x32xf32> to vector<16x8xf32>
    %100 = arith.truncf %98 : vector<16x16xf32> to vector<16x16xbf16>
    %101 = arith.truncf %99 : vector<16x8xf32> to vector<16x8xbf16>
    %cst_35 = arith.constant dense<0.000000e+00> : vector<16x8xf32>
    %102 = tpu.matmul %100, %101, %cst_35 {dimension_numbers = #tpu.dot_dimension_numbers<[1], [0], [0], [1], [0, 0, 1, 1], [], []>} : vector<16x16xbf16>, vector<16x8xbf16>, vector<16x8xf32> -> vector<16x8xf32>
    %c0_36 = arith.constant 0 : index
    %c2 = arith.constant 2 : index
    %c0_37 = arith.constant 0 : index
    %c0_38 = arith.constant 0 : index
    %103 = vector.load %arg5[%c0_36, %c2, %c0_37, %c0_38] : memref<1x4x8x32xbf16, #tpu.memory_space<vmem>>, vector<1x1x8x32xbf16>
    %104 = vector.shape_cast %103 : vector<1x1x8x32xbf16> to vector<8x32xbf16>
    %105 = arith.truncf %102 : vector<16x8xf32> to vector<16x8xbf16>
    %cst_39 = arith.constant dense<0.000000e+00> : vector<16x32xf32>
    %106 = tpu.matmul %105, %104, %cst_39 {dimension_numbers = #tpu.dot_dimension_numbers<[1], [0], [0], [1], [0, 0, 1, 1], [], []>} : vector<16x8xbf16>, vector<8x32xbf16>, vector<16x32xf32> -> vector<16x32xf32>
    %107 = arith.addf %80, %106 : vector<16x32xf32>
    %108 = vector.extract_strided_slice %23 {offsets = [0, 24], sizes = [16, 8], strides = [1, 1]} : vector<16x32xf32> to vector<16x8xf32>
    %109 = arith.truncf %108 : vector<16x8xf32> to vector<16x8xbf16>
    %110 = vector.extract_strided_slice %24 {offsets = [0, 24], sizes = [16, 8], strides = [1, 1]} : vector<16x32xf32> to vector<16x8xf32>
    %111 = arith.truncf %110 : vector<16x8xf32> to vector<16x8xbf16>
    %cst_40 = arith.constant dense<0.000000e+00> : vector<16x16xf32>
    %112 = tpu.matmul %109, %111, %cst_40 {dimension_numbers = #tpu.dot_dimension_numbers<[1], [1], [0], [0], [0, 0, 1, 0], [], []>} : vector<16x8xbf16>, vector<16x8xbf16>, vector<16x16xf32> -> vector<16x16xf32>
    %113 = vector.extract_strided_slice %4 {offsets = [3, 0, 0], sizes = [1, 16, 16], strides = [1, 1, 1]} : vector<4x16x16xf32> to vector<1x16x16xf32>
    %114 = vector.shape_cast %113 : vector<1x16x16xf32> to vector<16x16xf32>
    %115 = arith.addf %112, %114 : vector<16x16xf32>
    %cst_41 = arith.constant dense<0xFF800000> : vector<16xf32>
    %116 = vector.multi_reduction <maximumf>, %115, %cst_41 [1] : vector<16x16xf32> to vector<16xf32>
    %117 = vector.shape_cast %116 : vector<16xf32> to vector<16x1xf32>
    %118 = vector.broadcast %117 : vector<16x1xf32> to vector<16x16xf32>
    %119 = arith.subf %115, %118 : vector<16x16xf32>
    %120 = math.exp %119 : vector<16x16xf32>
    %cst_42 = arith.constant dense<0.000000e+00> : vector<16xf32>
    %121 = vector.multi_reduction <add>, %120, %cst_42 [1] : vector<16x16xf32> to vector<16xf32>
    %122 = vector.shape_cast %121 : vector<16xf32> to vector<16x1xf32>
    %123 = tpu.reciprocal %122 : vector<16x1xf32> -> vector<16x1xf32>
    %124 = vector.broadcast %123 : vector<16x1xf32> to vector<16x16xf32>
    %125 = arith.mulf %120, %124 : vector<16x16xf32>
    %126 = vector.extract_strided_slice %25 {offsets = [0, 24], sizes = [16, 8], strides = [1, 1]} : vector<16x32xf32> to vector<16x8xf32>
    %127 = arith.truncf %125 : vector<16x16xf32> to vector<16x16xbf16>
    %128 = arith.truncf %126 : vector<16x8xf32> to vector<16x8xbf16>
    %cst_43 = arith.constant dense<0.000000e+00> : vector<16x8xf32>
    %129 = tpu.matmul %127, %128, %cst_43 {dimension_numbers = #tpu.dot_dimension_numbers<[1], [0], [0], [1], [0, 0, 1, 1], [], []>} : vector<16x16xbf16>, vector<16x8xbf16>, vector<16x8xf32> -> vector<16x8xf32>
    %c0_44 = arith.constant 0 : index
    %c3 = arith.constant 3 : index
    %c0_45 = arith.constant 0 : index
    %c0_46 = arith.constant 0 : index
    %130 = vector.load %arg5[%c0_44, %c3, %c0_45, %c0_46] : memref<1x4x8x32xbf16, #tpu.memory_space<vmem>>, vector<1x1x8x32xbf16>
    %131 = vector.shape_cast %130 : vector<1x1x8x32xbf16> to vector<8x32xbf16>
    %132 = arith.truncf %129 : vector<16x8xf32> to vector<16x8xbf16>
    %cst_47 = arith.constant dense<0.000000e+00> : vector<16x32xf32>
    %133 = tpu.matmul %132, %131, %cst_47 {dimension_numbers = #tpu.dot_dimension_numbers<[1], [0], [0], [1], [0, 0, 1, 1], [], []>} : vector<16x8xbf16>, vector<8x32xbf16>, vector<16x32xf32> -> vector<16x32xf32>
    %134 = arith.addf %107, %133 : vector<16x32xf32>
    %135 = arith.addf %3, %134 : vector<16x32xf32>
    %c0_48 = arith.constant 0 : index
    %c0_49 = arith.constant 0 : index
    %c0_50 = arith.constant 0 : index
    %136 = vector.load %arg6[%c0_48, %c0_49, %c0_50] : memref<1x1x32xf32, #tpu.memory_space<vmem>>, vector<1x1x32xf32>
    %137 = vector.shape_cast %136 : vector<1x1x32xf32> to vector<1x32xf32>
    %138 = arith.mulf %135, %135 : vector<16x32xf32>
    %cst_51 = arith.constant dense<0.000000e+00> : vector<16xf32>
    %139 = vector.multi_reduction <add>, %138, %cst_51 [1] : vector<16x32xf32> to vector<16xf32>
    %140 = vector.shape_cast %139 : vector<16xf32> to vector<16x1xf32>
    %cst_52 = arith.constant 3.200000e+01 : f32
    %141 = vector.broadcast %cst_52 : f32 to vector<16x1xf32>
    %142 = arith.divf %140, %141 : vector<16x1xf32>
    %cst_53 = arith.constant 9.99999997E-7 : f32
    %143 = vector.broadcast %cst_53 : f32 to vector<16x1xf32>
    %144 = arith.addf %142, %143 : vector<16x1xf32>
    %145 = math.rsqrt %144 : vector<16x1xf32>
    %146 = vector.broadcast %145 : vector<16x1xf32> to vector<16x32xf32>
    %147 = arith.mulf %135, %146 : vector<16x32xf32>
    %148 = vector.broadcast %137 : vector<1x32xf32> to vector<16x32xf32>
    %149 = arith.mulf %147, %148 : vector<16x32xf32>
    %c0_54 = arith.constant 0 : index
    %c0_55 = arith.constant 0 : index
    %c0_56 = arith.constant 0 : index
    %150 = vector.load %arg7[%c0_54, %c0_55, %c0_56] : memref<1x32x128xbf16, #tpu.memory_space<vmem>>, vector<1x32x128xbf16>
    %151 = vector.shape_cast %150 : vector<1x32x128xbf16> to vector<32x128xbf16>
    %152 = arith.truncf %149 : vector<16x32xf32> to vector<16x32xbf16>
    %cst_57 = arith.constant dense<0.000000e+00> : vector<16x128xf32>
    %153 = tpu.matmul %152, %151, %cst_57 {dimension_numbers = #tpu.dot_dimension_numbers<[1], [0], [0], [1], [0, 0, 1, 1], [], []>} : vector<16x32xbf16>, vector<32x128xbf16>, vector<16x128xf32> -> vector<16x128xf32>
    %154 = vector.extract_strided_slice %153 {offsets = [0, 0], sizes = [16, 64], strides = [1, 1]} : vector<16x128xf32> to vector<16x64xf32>
    %cst_58 = arith.constant 5.000000e-01 : f32
    %155 = vector.broadcast %cst_58 : f32 to vector<16x64xf32>
    %156 = arith.mulf %155, %154 : vector<16x64xf32>
    %cst_59 = arith.constant 4.471500e-02 : f32
    %157 = vector.broadcast %cst_59 : f32 to vector<16x64xf32>
    %158 = arith.mulf %157, %154 : vector<16x64xf32>
    %159 = arith.mulf %158, %154 : vector<16x64xf32>
    %160 = arith.mulf %159, %154 : vector<16x64xf32>
    %161 = arith.addf %154, %160 : vector<16x64xf32>
    %cst_60 = arith.constant 0.797884583 : f32
    %162 = vector.broadcast %cst_60 : f32 to vector<16x64xf32>
    %163 = arith.mulf %162, %161 : vector<16x64xf32>
    %164 = math.tanh %163 : vector<16x64xf32>
    %cst_61 = arith.constant 1.000000e+00 : f32
    %165 = vector.broadcast %cst_61 : f32 to vector<16x64xf32>
    %166 = arith.addf %165, %164 : vector<16x64xf32>
    %167 = arith.mulf %156, %166 : vector<16x64xf32>
    %168 = vector.extract_strided_slice %153 {offsets = [0, 64], sizes = [16, 64], strides = [1, 1]} : vector<16x128xf32> to vector<16x64xf32>
    %169 = arith.mulf %167, %168 : vector<16x64xf32>
    %c0_62 = arith.constant 0 : index
    %c0_63 = arith.constant 0 : index
    %c0_64 = arith.constant 0 : index
    %170 = vector.load %arg8[%c0_62, %c0_63, %c0_64] : memref<1x64x32xbf16, #tpu.memory_space<vmem>>, vector<1x64x32xbf16>
    %171 = vector.shape_cast %170 : vector<1x64x32xbf16> to vector<64x32xbf16>
    %172 = arith.truncf %169 : vector<16x64xf32> to vector<16x64xbf16>
    %cst_65 = arith.constant dense<0.000000e+00> : vector<16x32xf32>
    %173 = tpu.matmul %172, %171, %cst_65 {dimension_numbers = #tpu.dot_dimension_numbers<[1], [0], [0], [1], [0, 0, 1, 1], [], []>} : vector<16x64xbf16>, vector<64x32xbf16>, vector<16x32xf32> -> vector<16x32xf32>
    %174 = arith.addf %135, %173 : vector<16x32xf32>
    %c0_66 = arith.constant 0 : index
    %c0_67 = arith.constant 0 : index
    %175 = vector.load %arg11[%c0_66, %c0_67] : memref<16x32xf32, #tpu.memory_space<vmem>>, vector<16x32xf32>
    tpu.vector_store %arg11[%c0_66, %c0_67], %174 {strides = array<i32>} : memref<16x32xf32, #tpu.memory_space<vmem>>, vector<16x32xf32>,
    %c1_i32 = arith.constant 1 : i32
    %176 = arith.cmpi eq, %arg0, %c1_i32 : i32
    %177 = arith.extui %176 : i1 to i32
    %c0_i32_68 = arith.constant 0 : i32
    %178 = arith.cmpi ne, %177, %c0_i32_68 : i32
    scf.if %178 {
      %c0_69 = arith.constant 0 : index
      %c0_70 = arith.constant 0 : index
      %179 = vector.load %arg9[%c0_69, %c0_70] : memref<1x32xf32, #tpu.memory_space<vmem>>, vector<1x32xf32>
      %180 = arith.mulf %174, %174 : vector<16x32xf32>
      %cst_71 = arith.constant dense<0.000000e+00> : vector<16xf32>
      %181 = vector.multi_reduction <add>, %180, %cst_71 [1] : vector<16x32xf32> to vector<16xf32>
      %182 = vector.shape_cast %181 : vector<16xf32> to vector<16x1xf32>
      %cst_72 = arith.constant 3.200000e+01 : f32
      %183 = vector.broadcast %cst_72 : f32 to vector<16x1xf32>
      %184 = arith.divf %182, %183 : vector<16x1xf32>
      %cst_73 = arith.constant 9.99999997E-7 : f32
      %185 = vector.broadcast %cst_73 : f32 to vector<16x1xf32>
      %186 = arith.addf %184, %185 : vector<16x1xf32>
      %187 = math.rsqrt %186 : vector<16x1xf32>
      %188 = vector.broadcast %187 : vector<16x1xf32> to vector<16x32xf32>
      %189 = arith.mulf %174, %188 : vector<16x32xf32>
      %190 = vector.broadcast %179 : vector<1x32xf32> to vector<16x32xf32>
      %191 = arith.mulf %189, %190 : vector<16x32xf32>
      %c0_74 = arith.constant 0 : index
      %c0_75 = arith.constant 0 : index
      %192 = vector.load %arg10[%c0_74, %c0_75] : memref<16x32xf32, #tpu.memory_space<vmem>>, vector<16x32xf32>
      tpu.vector_store %arg10[%c0_74, %c0_75], %191 {strides = array<i32>} : memref<16x32xf32, #tpu.memory_space<vmem>>, vector<16x32xf32>,
    } else {
    }
    return
  }
  func.func @transform_0(%arg0: i32) -> (i32, i32) {
    %c0_i32 = arith.constant 0 : i32
    %c0_i32_0 = arith.constant 0 : i32
    %c0_i32_1 = arith.constant 0 : i32
    return %c0_i32, %c0_i32_0 : i32, i32
  }
  func.func @transform_1(%arg0: i32) -> (i32, i32, i32) {
    %c0_i32 = arith.constant 0 : i32
    %c0_i32_0 = arith.constant 0 : i32
    %c0_i32_1 = arith.constant 0 : i32
    %c0_i32_2 = arith.constant 0 : i32
    return %c0_i32, %c0_i32_0, %c0_i32_1 : i32, i32, i32
  }
  func.func @transform_2(%arg0: i32) -> (i32, i32, i32) {
    %c0_i32 = arith.constant 0 : i32
    %c0_i32_0 = arith.constant 0 : i32
    %c0_i32_1 = arith.constant 0 : i32
    return %arg0, %c0_i32, %c0_i32_0 : i32, i32, i32
  }
  func.func @transform_3(%arg0: i32) -> (i32, i32, i32) {
    %c0_i32 = arith.constant 0 : i32
    %c0_i32_0 = arith.constant 0 : i32
    %c0_i32_1 = arith.constant 0 : i32
    return %arg0, %c0_i32, %c0_i32_0 : i32, i32, i32
  }
  func.func @transform_4(%arg0: i32) -> (i32, i32, i32, i32) {
    %c0_i32 = arith.constant 0 : i32
    %c0_i32_0 = arith.constant 0 : i32
    %c0_i32_1 = arith.constant 0 : i32
    %c0_i32_2 = arith.constant 0 : i32
    return %arg0, %c0_i32, %c0_i32_0, %c0_i32_1 : i32, i32, i32, i32
  }
  func.func @transform_5(%arg0: i32) -> (i32, i32, i32) {
    %c0_i32 = arith.constant 0 : i32
    %c0_i32_0 = arith.constant 0 : i32
    %c0_i32_1 = arith.constant 0 : i32
    return %arg0, %c0_i32, %c0_i32_0 : i32, i32, i32
  }
  func.func @transform_6(%arg0: i32) -> (i32, i32, i32) {
    %c0_i32 = arith.constant 0 : i32
    %c0_i32_0 = arith.constant 0 : i32
    %c0_i32_1 = arith.constant 0 : i32
    return %arg0, %c0_i32, %c0_i32_0 : i32, i32, i32
  }
  func.func @transform_7(%arg0: i32) -> (i32, i32, i32) {
    %c0_i32 = arith.constant 0 : i32
    %c0_i32_0 = arith.constant 0 : i32
    %c0_i32_1 = arith.constant 0 : i32
    return %arg0, %c0_i32, %c0_i32_0 : i32, i32, i32
  }
  func.func @transform_8(%arg0: i32) -> (i32, i32) {
    %c0_i32 = arith.constant 0 : i32
    %c0_i32_0 = arith.constant 0 : i32
    %c0_i32_1 = arith.constant 0 : i32
    return %c0_i32, %c0_i32_0 : i32, i32
  }
  func.func @transform_9(%arg0: i32) -> (i32, i32) {
    %c0_i32 = arith.constant 0 : i32
    %c0_i32_0 = arith.constant 0 : i32
    %c0_i32_1 = arith.constant 0 : i32
    return %c0_i32, %c0_i32_0 : i32, i32
  }
}

module attributes {stable_mosaic.version = 11 : i64} {
  func.func @_decoder_stack_kernel(%arg0: i32, %arg1: memref<16x32xf32, #tpu.memory_space<vmem>>, %arg2: memref<16x32xf32, #tpu.memory_space<vmem>>, %arg3: memref<4x16x16xf32, #tpu.memory_space<vmem>>, %arg4: memref<4x16x16xf32, #tpu.memory_space<vmem>>, %arg5: memref<1x1x32xf32, #tpu.memory_space<vmem>>, %arg6: memref<1x32x96xbf16, #tpu.memory_space<vmem>>, %arg7: memref<1x4x8x32xbf16, #tpu.memory_space<vmem>>, %arg8: memref<1x1x32xf32, #tpu.memory_space<vmem>>, %arg9: memref<1x32x32xbf16, #tpu.memory_space<vmem>>, %arg10: memref<1x32x64xbf16, #tpu.memory_space<vmem>>, %arg11: memref<1x4x8x32xbf16, #tpu.memory_space<vmem>>, %arg12: memref<1x1x32xf32, #tpu.memory_space<vmem>>, %arg13: memref<1x32x128xbf16, #tpu.memory_space<vmem>>, %arg14: memref<1x64x32xbf16, #tpu.memory_space<vmem>>, %arg15: memref<1x32xf32, #tpu.memory_space<vmem>>, %arg16: memref<32x128xbf16, #tpu.memory_space<vmem>>, %arg17: memref<16x128xf32, #tpu.memory_space<vmem>>, %arg18: memref<16x32xf32, #tpu.memory_space<vmem>>) attributes {dimension_semantics = [#tpu.dimension_semantics<arbitrary>], iteration_bounds = array<i64: 2>, scalar_prefetch = 0 : i64, scratch_operands = 1 : i64, tpu.core_type = #tpu.core_type<tc>, window_params = [{pipeline_mode = #tpu.pipeline_mode<synchronous>, transform_indices = @transform_0, window_bounds = array<i64: 16, 32>}, {pipeline_mode = #tpu.pipeline_mode<synchronous>, transform_indices = @transform_1, window_bounds = array<i64: 16, 32>}, {pipeline_mode = #tpu.pipeline_mode<synchronous>, transform_indices = @transform_2, window_bounds = array<i64: 4, 16, 16>}, {pipeline_mode = #tpu.pipeline_mode<synchronous>, transform_indices = @transform_3, window_bounds = array<i64: 4, 16, 16>}, {transform_indices = @transform_4, window_bounds = array<i64: 1, 1, 32>}, {transform_indices = @transform_5, window_bounds = array<i64: 1, 32, 96>}, {transform_indices = @transform_6, window_bounds = array<i64: 1, 4, 8, 32>}, {transform_indices = @transform_7, window_bounds = array<i64: 1, 1, 32>}, {transform_indices = @transform_8, window_bounds = array<i64: 1, 32, 32>}, {transform_indices = @transform_9, window_bounds = array<i64: 1, 32, 64>}, {transform_indices = @transform_10, window_bounds = array<i64: 1, 4, 8, 32>}, {transform_indices = @transform_11, window_bounds = array<i64: 1, 1, 32>}, {transform_indices = @transform_12, window_bounds = array<i64: 1, 32, 128>}, {transform_indices = @transform_13, window_bounds = array<i64: 1, 64, 32>}, {pipeline_mode = #tpu.pipeline_mode<synchronous>, transform_indices = @transform_14, window_bounds = array<i64: 1, 32>}, {pipeline_mode = #tpu.pipeline_mode<synchronous>, transform_indices = @transform_15, window_bounds = array<i64: 32, 128>}, {pipeline_mode = #tpu.pipeline_mode<synchronous>, transform_indices = @transform_16, window_bounds = array<i64: 16, 128>}]} {
    %c0_i32 = arith.constant 0 : i32
    %0 = arith.cmpi eq, %arg0, %c0_i32 : i32
    %1 = arith.extui %0 : i1 to i32
    %c0_i32_0 = arith.constant 0 : i32
    %2 = arith.cmpi ne, %1, %c0_i32_0 : i32
    scf.if %2 {
      %c0_125 = arith.constant 0 : index
      %c0_126 = arith.constant 0 : index
      %315 = vector.load %arg1[%c0_125, %c0_126] : memref<16x32xf32, #tpu.memory_space<vmem>>, vector<16x32xf32>
      %c0_127 = arith.constant 0 : index
      %c0_128 = arith.constant 0 : index
      %316 = vector.load %arg18[%c0_127, %c0_128] : memref<16x32xf32, #tpu.memory_space<vmem>>, vector<16x32xf32>
      tpu.vector_store %arg18[%c0_127, %c0_128], %315 {strides = array<i32>} : memref<16x32xf32, #tpu.memory_space<vmem>>, vector<16x32xf32>,
    } else {
    }
    %c0 = arith.constant 0 : index
    %c0_1 = arith.constant 0 : index
    %3 = vector.load %arg18[%c0, %c0_1] : memref<16x32xf32, #tpu.memory_space<vmem>>, vector<16x32xf32>
    %c0_2 = arith.constant 0 : index
    %c0_3 = arith.constant 0 : index
    %c0_4 = arith.constant 0 : index
    %4 = vector.load %arg5[%c0_2, %c0_3, %c0_4] : memref<1x1x32xf32, #tpu.memory_space<vmem>>, vector<1x1x32xf32>
    %5 = vector.shape_cast %4 : vector<1x1x32xf32> to vector<1x32xf32>
    %6 = arith.mulf %3, %3 : vector<16x32xf32>
    %cst = arith.constant dense<0.000000e+00> : vector<16xf32>
    %7 = vector.multi_reduction <add>, %6, %cst [1] : vector<16x32xf32> to vector<16xf32>
    %8 = vector.shape_cast %7 : vector<16xf32> to vector<16x1xf32>
    %cst_5 = arith.constant 3.200000e+01 : f32
    %9 = vector.broadcast %cst_5 : f32 to vector<16x1xf32>
    %10 = arith.divf %8, %9 : vector<16x1xf32>
    %cst_6 = arith.constant 9.99999997E-7 : f32
    %11 = vector.broadcast %cst_6 : f32 to vector<16x1xf32>
    %12 = arith.addf %10, %11 : vector<16x1xf32>
    %13 = math.rsqrt %12 : vector<16x1xf32>
    %14 = vector.broadcast %13 : vector<16x1xf32> to vector<16x32xf32>
    %15 = arith.mulf %3, %14 : vector<16x32xf32>
    %16 = vector.broadcast %5 : vector<1x32xf32> to vector<16x32xf32>
    %17 = arith.mulf %15, %16 : vector<16x32xf32>
    %c0_7 = arith.constant 0 : index
    %c0_8 = arith.constant 0 : index
    %c0_9 = arith.constant 0 : index
    %18 = vector.load %arg6[%c0_7, %c0_8, %c0_9] : memref<1x32x96xbf16, #tpu.memory_space<vmem>>, vector<1x32x96xbf16>
    %19 = vector.shape_cast %18 : vector<1x32x96xbf16> to vector<32x96xbf16>
    %20 = arith.truncf %17 : vector<16x32xf32> to vector<16x32xbf16>
    %cst_10 = arith.constant dense<0.000000e+00> : vector<16x96xf32>
    %21 = tpu.matmul %20, %19, %cst_10 {dimension_numbers = #tpu.dot_dimension_numbers<[1], [0], [0], [1], [0, 0, 1, 1], [], []>} : vector<16x32xbf16>, vector<32x96xbf16>, vector<16x96xf32> -> vector<16x96xf32>
    %22 = vector.extract_strided_slice %21 {offsets = [0, 0], sizes = [16, 32], strides = [1, 1]} : vector<16x96xf32> to vector<16x32xf32>
    %23 = vector.extract_strided_slice %21 {offsets = [0, 32], sizes = [16, 32], strides = [1, 1]} : vector<16x96xf32> to vector<16x32xf32>
    %24 = vector.extract_strided_slice %21 {offsets = [0, 64], sizes = [16, 32], strides = [1, 1]} : vector<16x96xf32> to vector<16x32xf32>
    %c0_11 = arith.constant 0 : index
    %c0_12 = arith.constant 0 : index
    %c0_13 = arith.constant 0 : index
    %25 = vector.load %arg3[%c0_11, %c0_12, %c0_13] : memref<4x16x16xf32, #tpu.memory_space<vmem>>, vector<4x16x16xf32>
    %cst_14 = arith.constant 0.000000e+00 : f32
    %26 = vector.broadcast %cst_14 : f32 to vector<16x32xf32>
    %27 = vector.extract_strided_slice %22 {offsets = [0, 0], sizes = [16, 8], strides = [1, 1]} : vector<16x32xf32> to vector<16x8xf32>
    %28 = arith.truncf %27 : vector<16x8xf32> to vector<16x8xbf16>
    %29 = vector.extract_strided_slice %23 {offsets = [0, 0], sizes = [16, 8], strides = [1, 1]} : vector<16x32xf32> to vector<16x8xf32>
    %30 = arith.truncf %29 : vector<16x8xf32> to vector<16x8xbf16>
    %cst_15 = arith.constant dense<0.000000e+00> : vector<16x16xf32>
    %31 = tpu.matmul %28, %30, %cst_15 {dimension_numbers = #tpu.dot_dimension_numbers<[1], [1], [0], [0], [0, 0, 1, 0], [], []>} : vector<16x8xbf16>, vector<16x8xbf16>, vector<16x16xf32> -> vector<16x16xf32>
    %32 = vector.extract_strided_slice %25 {offsets = [0, 0, 0], sizes = [1, 16, 16], strides = [1, 1, 1]} : vector<4x16x16xf32> to vector<1x16x16xf32>
    %33 = vector.shape_cast %32 : vector<1x16x16xf32> to vector<16x16xf32>
    %34 = arith.addf %31, %33 : vector<16x16xf32>
    %cst_16 = arith.constant dense<0xFF800000> : vector<16xf32>
    %35 = vector.multi_reduction <maximumf>, %34, %cst_16 [1] : vector<16x16xf32> to vector<16xf32>
    %36 = vector.shape_cast %35 : vector<16xf32> to vector<16x1xf32>
    %37 = vector.broadcast %36 : vector<16x1xf32> to vector<16x16xf32>
    %38 = arith.subf %34, %37 : vector<16x16xf32>
    %39 = math.exp %38 : vector<16x16xf32>
    %cst_17 = arith.constant dense<0.000000e+00> : vector<16xf32>
    %40 = vector.multi_reduction <add>, %39, %cst_17 [1] : vector<16x16xf32> to vector<16xf32>
    %41 = vector.shape_cast %40 : vector<16xf32> to vector<16x1xf32>
    %42 = tpu.reciprocal %41 : vector<16x1xf32> -> vector<16x1xf32>
    %43 = vector.broadcast %42 : vector<16x1xf32> to vector<16x16xf32>
    %44 = arith.mulf %39, %43 : vector<16x16xf32>
    %45 = vector.extract_strided_slice %24 {offsets = [0, 0], sizes = [16, 8], strides = [1, 1]} : vector<16x32xf32> to vector<16x8xf32>
    %46 = arith.truncf %44 : vector<16x16xf32> to vector<16x16xbf16>
    %47 = arith.truncf %45 : vector<16x8xf32> to vector<16x8xbf16>
    %cst_18 = arith.constant dense<0.000000e+00> : vector<16x8xf32>
    %48 = tpu.matmul %46, %47, %cst_18 {dimension_numbers = #tpu.dot_dimension_numbers<[1], [0], [0], [1], [0, 0, 1, 1], [], []>} : vector<16x16xbf16>, vector<16x8xbf16>, vector<16x8xf32> -> vector<16x8xf32>
    %c0_19 = arith.constant 0 : index
    %c0_20 = arith.constant 0 : index
    %c0_21 = arith.constant 0 : index
    %c0_22 = arith.constant 0 : index
    %49 = vector.load %arg7[%c0_19, %c0_20, %c0_21, %c0_22] : memref<1x4x8x32xbf16, #tpu.memory_space<vmem>>, vector<1x1x8x32xbf16>
    %50 = vector.shape_cast %49 : vector<1x1x8x32xbf16> to vector<8x32xbf16>
    %51 = arith.truncf %48 : vector<16x8xf32> to vector<16x8xbf16>
    %cst_23 = arith.constant dense<0.000000e+00> : vector<16x32xf32>
    %52 = tpu.matmul %51, %50, %cst_23 {dimension_numbers = #tpu.dot_dimension_numbers<[1], [0], [0], [1], [0, 0, 1, 1], [], []>} : vector<16x8xbf16>, vector<8x32xbf16>, vector<16x32xf32> -> vector<16x32xf32>
    %53 = arith.addf %26, %52 : vector<16x32xf32>
    %54 = vector.extract_strided_slice %22 {offsets = [0, 8], sizes = [16, 8], strides = [1, 1]} : vector<16x32xf32> to vector<16x8xf32>
    %55 = arith.truncf %54 : vector<16x8xf32> to vector<16x8xbf16>
    %56 = vector.extract_strided_slice %23 {offsets = [0, 8], sizes = [16, 8], strides = [1, 1]} : vector<16x32xf32> to vector<16x8xf32>
    %57 = arith.truncf %56 : vector<16x8xf32> to vector<16x8xbf16>
    %cst_24 = arith.constant dense<0.000000e+00> : vector<16x16xf32>
    %58 = tpu.matmul %55, %57, %cst_24 {dimension_numbers = #tpu.dot_dimension_numbers<[1], [1], [0], [0], [0, 0, 1, 0], [], []>} : vector<16x8xbf16>, vector<16x8xbf16>, vector<16x16xf32> -> vector<16x16xf32>
    %59 = vector.extract_strided_slice %25 {offsets = [1, 0, 0], sizes = [1, 16, 16], strides = [1, 1, 1]} : vector<4x16x16xf32> to vector<1x16x16xf32>
    %60 = vector.shape_cast %59 : vector<1x16x16xf32> to vector<16x16xf32>
    %61 = arith.addf %58, %60 : vector<16x16xf32>
    %cst_25 = arith.constant dense<0xFF800000> : vector<16xf32>
    %62 = vector.multi_reduction <maximumf>, %61, %cst_25 [1] : vector<16x16xf32> to vector<16xf32>
    %63 = vector.shape_cast %62 : vector<16xf32> to vector<16x1xf32>
    %64 = vector.broadcast %63 : vector<16x1xf32> to vector<16x16xf32>
    %65 = arith.subf %61, %64 : vector<16x16xf32>
    %66 = math.exp %65 : vector<16x16xf32>
    %cst_26 = arith.constant dense<0.000000e+00> : vector<16xf32>
    %67 = vector.multi_reduction <add>, %66, %cst_26 [1] : vector<16x16xf32> to vector<16xf32>
    %68 = vector.shape_cast %67 : vector<16xf32> to vector<16x1xf32>
    %69 = tpu.reciprocal %68 : vector<16x1xf32> -> vector<16x1xf32>
    %70 = vector.broadcast %69 : vector<16x1xf32> to vector<16x16xf32>
    %71 = arith.mulf %66, %70 : vector<16x16xf32>
    %72 = vector.extract_strided_slice %24 {offsets = [0, 8], sizes = [16, 8], strides = [1, 1]} : vector<16x32xf32> to vector<16x8xf32>
    %73 = arith.truncf %71 : vector<16x16xf32> to vector<16x16xbf16>
    %74 = arith.truncf %72 : vector<16x8xf32> to vector<16x8xbf16>
    %cst_27 = arith.constant dense<0.000000e+00> : vector<16x8xf32>
    %75 = tpu.matmul %73, %74, %cst_27 {dimension_numbers = #tpu.dot_dimension_numbers<[1], [0], [0], [1], [0, 0, 1, 1], [], []>} : vector<16x16xbf16>, vector<16x8xbf16>, vector<16x8xf32> -> vector<16x8xf32>
    %c0_28 = arith.constant 0 : index
    %c1 = arith.constant 1 : index
    %c0_29 = arith.constant 0 : index
    %c0_30 = arith.constant 0 : index
    %76 = vector.load %arg7[%c0_28, %c1, %c0_29, %c0_30] : memref<1x4x8x32xbf16, #tpu.memory_space<vmem>>, vector<1x1x8x32xbf16>
    %77 = vector.shape_cast %76 : vector<1x1x8x32xbf16> to vector<8x32xbf16>
    %78 = arith.truncf %75 : vector<16x8xf32> to vector<16x8xbf16>
    %cst_31 = arith.constant dense<0.000000e+00> : vector<16x32xf32>
    %79 = tpu.matmul %78, %77, %cst_31 {dimension_numbers = #tpu.dot_dimension_numbers<[1], [0], [0], [1], [0, 0, 1, 1], [], []>} : vector<16x8xbf16>, vector<8x32xbf16>, vector<16x32xf32> -> vector<16x32xf32>
    %80 = arith.addf %53, %79 : vector<16x32xf32>
    %81 = vector.extract_strided_slice %22 {offsets = [0, 16], sizes = [16, 8], strides = [1, 1]} : vector<16x32xf32> to vector<16x8xf32>
    %82 = arith.truncf %81 : vector<16x8xf32> to vector<16x8xbf16>
    %83 = vector.extract_strided_slice %23 {offsets = [0, 16], sizes = [16, 8], strides = [1, 1]} : vector<16x32xf32> to vector<16x8xf32>
    %84 = arith.truncf %83 : vector<16x8xf32> to vector<16x8xbf16>
    %cst_32 = arith.constant dense<0.000000e+00> : vector<16x16xf32>
    %85 = tpu.matmul %82, %84, %cst_32 {dimension_numbers = #tpu.dot_dimension_numbers<[1], [1], [0], [0], [0, 0, 1, 0], [], []>} : vector<16x8xbf16>, vector<16x8xbf16>, vector<16x16xf32> -> vector<16x16xf32>
    %86 = vector.extract_strided_slice %25 {offsets = [2, 0, 0], sizes = [1, 16, 16], strides = [1, 1, 1]} : vector<4x16x16xf32> to vector<1x16x16xf32>
    %87 = vector.shape_cast %86 : vector<1x16x16xf32> to vector<16x16xf32>
    %88 = arith.addf %85, %87 : vector<16x16xf32>
    %cst_33 = arith.constant dense<0xFF800000> : vector<16xf32>
    %89 = vector.multi_reduction <maximumf>, %88, %cst_33 [1] : vector<16x16xf32> to vector<16xf32>
    %90 = vector.shape_cast %89 : vector<16xf32> to vector<16x1xf32>
    %91 = vector.broadcast %90 : vector<16x1xf32> to vector<16x16xf32>
    %92 = arith.subf %88, %91 : vector<16x16xf32>
    %93 = math.exp %92 : vector<16x16xf32>
    %cst_34 = arith.constant dense<0.000000e+00> : vector<16xf32>
    %94 = vector.multi_reduction <add>, %93, %cst_34 [1] : vector<16x16xf32> to vector<16xf32>
    %95 = vector.shape_cast %94 : vector<16xf32> to vector<16x1xf32>
    %96 = tpu.reciprocal %95 : vector<16x1xf32> -> vector<16x1xf32>
    %97 = vector.broadcast %96 : vector<16x1xf32> to vector<16x16xf32>
    %98 = arith.mulf %93, %97 : vector<16x16xf32>
    %99 = vector.extract_strided_slice %24 {offsets = [0, 16], sizes = [16, 8], strides = [1, 1]} : vector<16x32xf32> to vector<16x8xf32>
    %100 = arith.truncf %98 : vector<16x16xf32> to vector<16x16xbf16>
    %101 = arith.truncf %99 : vector<16x8xf32> to vector<16x8xbf16>
    %cst_35 = arith.constant dense<0.000000e+00> : vector<16x8xf32>
    %102 = tpu.matmul %100, %101, %cst_35 {dimension_numbers = #tpu.dot_dimension_numbers<[1], [0], [0], [1], [0, 0, 1, 1], [], []>} : vector<16x16xbf16>, vector<16x8xbf16>, vector<16x8xf32> -> vector<16x8xf32>
    %c0_36 = arith.constant 0 : index
    %c2 = arith.constant 2 : index
    %c0_37 = arith.constant 0 : index
    %c0_38 = arith.constant 0 : index
    %103 = vector.load %arg7[%c0_36, %c2, %c0_37, %c0_38] : memref<1x4x8x32xbf16, #tpu.memory_space<vmem>>, vector<1x1x8x32xbf16>
    %104 = vector.shape_cast %103 : vector<1x1x8x32xbf16> to vector<8x32xbf16>
    %105 = arith.truncf %102 : vector<16x8xf32> to vector<16x8xbf16>
    %cst_39 = arith.constant dense<0.000000e+00> : vector<16x32xf32>
    %106 = tpu.matmul %105, %104, %cst_39 {dimension_numbers = #tpu.dot_dimension_numbers<[1], [0], [0], [1], [0, 0, 1, 1], [], []>} : vector<16x8xbf16>, vector<8x32xbf16>, vector<16x32xf32> -> vector<16x32xf32>
    %107 = arith.addf %80, %106 : vector<16x32xf32>
    %108 = vector.extract_strided_slice %22 {offsets = [0, 24], sizes = [16, 8], strides = [1, 1]} : vector<16x32xf32> to vector<16x8xf32>
    %109 = arith.truncf %108 : vector<16x8xf32> to vector<16x8xbf16>
    %110 = vector.extract_strided_slice %23 {offsets = [0, 24], sizes = [16, 8], strides = [1, 1]} : vector<16x32xf32> to vector<16x8xf32>
    %111 = arith.truncf %110 : vector<16x8xf32> to vector<16x8xbf16>
    %cst_40 = arith.constant dense<0.000000e+00> : vector<16x16xf32>
    %112 = tpu.matmul %109, %111, %cst_40 {dimension_numbers = #tpu.dot_dimension_numbers<[1], [1], [0], [0], [0, 0, 1, 0], [], []>} : vector<16x8xbf16>, vector<16x8xbf16>, vector<16x16xf32> -> vector<16x16xf32>
    %113 = vector.extract_strided_slice %25 {offsets = [3, 0, 0], sizes = [1, 16, 16], strides = [1, 1, 1]} : vector<4x16x16xf32> to vector<1x16x16xf32>
    %114 = vector.shape_cast %113 : vector<1x16x16xf32> to vector<16x16xf32>
    %115 = arith.addf %112, %114 : vector<16x16xf32>
    %cst_41 = arith.constant dense<0xFF800000> : vector<16xf32>
    %116 = vector.multi_reduction <maximumf>, %115, %cst_41 [1] : vector<16x16xf32> to vector<16xf32>
    %117 = vector.shape_cast %116 : vector<16xf32> to vector<16x1xf32>
    %118 = vector.broadcast %117 : vector<16x1xf32> to vector<16x16xf32>
    %119 = arith.subf %115, %118 : vector<16x16xf32>
    %120 = math.exp %119 : vector<16x16xf32>
    %cst_42 = arith.constant dense<0.000000e+00> : vector<16xf32>
    %121 = vector.multi_reduction <add>, %120, %cst_42 [1] : vector<16x16xf32> to vector<16xf32>
    %122 = vector.shape_cast %121 : vector<16xf32> to vector<16x1xf32>
    %123 = tpu.reciprocal %122 : vector<16x1xf32> -> vector<16x1xf32>
    %124 = vector.broadcast %123 : vector<16x1xf32> to vector<16x16xf32>
    %125 = arith.mulf %120, %124 : vector<16x16xf32>
    %126 = vector.extract_strided_slice %24 {offsets = [0, 24], sizes = [16, 8], strides = [1, 1]} : vector<16x32xf32> to vector<16x8xf32>
    %127 = arith.truncf %125 : vector<16x16xf32> to vector<16x16xbf16>
    %128 = arith.truncf %126 : vector<16x8xf32> to vector<16x8xbf16>
    %cst_43 = arith.constant dense<0.000000e+00> : vector<16x8xf32>
    %129 = tpu.matmul %127, %128, %cst_43 {dimension_numbers = #tpu.dot_dimension_numbers<[1], [0], [0], [1], [0, 0, 1, 1], [], []>} : vector<16x16xbf16>, vector<16x8xbf16>, vector<16x8xf32> -> vector<16x8xf32>
    %c0_44 = arith.constant 0 : index
    %c3 = arith.constant 3 : index
    %c0_45 = arith.constant 0 : index
    %c0_46 = arith.constant 0 : index
    %130 = vector.load %arg7[%c0_44, %c3, %c0_45, %c0_46] : memref<1x4x8x32xbf16, #tpu.memory_space<vmem>>, vector<1x1x8x32xbf16>
    %131 = vector.shape_cast %130 : vector<1x1x8x32xbf16> to vector<8x32xbf16>
    %132 = arith.truncf %129 : vector<16x8xf32> to vector<16x8xbf16>
    %cst_47 = arith.constant dense<0.000000e+00> : vector<16x32xf32>
    %133 = tpu.matmul %132, %131, %cst_47 {dimension_numbers = #tpu.dot_dimension_numbers<[1], [0], [0], [1], [0, 0, 1, 1], [], []>} : vector<16x8xbf16>, vector<8x32xbf16>, vector<16x32xf32> -> vector<16x32xf32>
    %134 = arith.addf %107, %133 : vector<16x32xf32>
    %135 = arith.addf %3, %134 : vector<16x32xf32>
    %c0_48 = arith.constant 0 : index
    %c0_49 = arith.constant 0 : index
    %c0_50 = arith.constant 0 : index
    %136 = vector.load %arg8[%c0_48, %c0_49, %c0_50] : memref<1x1x32xf32, #tpu.memory_space<vmem>>, vector<1x1x32xf32>
    %137 = vector.shape_cast %136 : vector<1x1x32xf32> to vector<1x32xf32>
    %138 = arith.mulf %135, %135 : vector<16x32xf32>
    %cst_51 = arith.constant dense<0.000000e+00> : vector<16xf32>
    %139 = vector.multi_reduction <add>, %138, %cst_51 [1] : vector<16x32xf32> to vector<16xf32>
    %140 = vector.shape_cast %139 : vector<16xf32> to vector<16x1xf32>
    %cst_52 = arith.constant 3.200000e+01 : f32
    %141 = vector.broadcast %cst_52 : f32 to vector<16x1xf32>
    %142 = arith.divf %140, %141 : vector<16x1xf32>
    %cst_53 = arith.constant 9.99999997E-7 : f32
    %143 = vector.broadcast %cst_53 : f32 to vector<16x1xf32>
    %144 = arith.addf %142, %143 : vector<16x1xf32>
    %145 = math.rsqrt %144 : vector<16x1xf32>
    %146 = vector.broadcast %145 : vector<16x1xf32> to vector<16x32xf32>
    %147 = arith.mulf %135, %146 : vector<16x32xf32>
    %148 = vector.broadcast %137 : vector<1x32xf32> to vector<16x32xf32>
    %149 = arith.mulf %147, %148 : vector<16x32xf32>
    %c0_54 = arith.constant 0 : index
    %c0_55 = arith.constant 0 : index
    %c0_56 = arith.constant 0 : index
    %150 = vector.load %arg9[%c0_54, %c0_55, %c0_56] : memref<1x32x32xbf16, #tpu.memory_space<vmem>>, vector<1x32x32xbf16>
    %151 = vector.shape_cast %150 : vector<1x32x32xbf16> to vector<32x32xbf16>
    %152 = arith.truncf %149 : vector<16x32xf32> to vector<16x32xbf16>
    %cst_57 = arith.constant dense<0.000000e+00> : vector<16x32xf32>
    %153 = tpu.matmul %152, %151, %cst_57 {dimension_numbers = #tpu.dot_dimension_numbers<[1], [0], [0], [1], [0, 0, 1, 1], [], []>} : vector<16x32xbf16>, vector<32x32xbf16>, vector<16x32xf32> -> vector<16x32xf32>
    %c0_58 = arith.constant 0 : index
    %c0_59 = arith.constant 0 : index
    %154 = vector.load %arg2[%c0_58, %c0_59] : memref<16x32xf32, #tpu.memory_space<vmem>>, vector<16x32xf32>
    %c0_60 = arith.constant 0 : index
    %c0_61 = arith.constant 0 : index
    %c0_62 = arith.constant 0 : index
    %155 = vector.load %arg10[%c0_60, %c0_61, %c0_62] : memref<1x32x64xbf16, #tpu.memory_space<vmem>>, vector<1x32x64xbf16>
    %156 = vector.shape_cast %155 : vector<1x32x64xbf16> to vector<32x64xbf16>
    %157 = arith.truncf %154 : vector<16x32xf32> to vector<16x32xbf16>
    %cst_63 = arith.constant dense<0.000000e+00> : vector<16x64xf32>
    %158 = tpu.matmul %157, %156, %cst_63 {dimension_numbers = #tpu.dot_dimension_numbers<[1], [0], [0], [1], [0, 0, 1, 1], [], []>} : vector<16x32xbf16>, vector<32x64xbf16>, vector<16x64xf32> -> vector<16x64xf32>
    %159 = vector.extract_strided_slice %158 {offsets = [0, 0], sizes = [16, 32], strides = [1, 1]} : vector<16x64xf32> to vector<16x32xf32>
    %160 = vector.extract_strided_slice %158 {offsets = [0, 32], sizes = [16, 32], strides = [1, 1]} : vector<16x64xf32> to vector<16x32xf32>
    %c0_64 = arith.constant 0 : index
    %c0_65 = arith.constant 0 : index
    %c0_66 = arith.constant 0 : index
    %161 = vector.load %arg4[%c0_64, %c0_65, %c0_66] : memref<4x16x16xf32, #tpu.memory_space<vmem>>, vector<4x16x16xf32>
    %cst_67 = arith.constant 0.000000e+00 : f32
    %162 = vector.broadcast %cst_67 : f32 to vector<16x32xf32>
    %163 = vector.extract_strided_slice %153 {offsets = [0, 0], sizes = [16, 8], strides = [1, 1]} : vector<16x32xf32> to vector<16x8xf32>
    %164 = arith.truncf %163 : vector<16x8xf32> to vector<16x8xbf16>
    %165 = vector.extract_strided_slice %159 {offsets = [0, 0], sizes = [16, 8], strides = [1, 1]} : vector<16x32xf32> to vector<16x8xf32>
    %166 = arith.truncf %165 : vector<16x8xf32> to vector<16x8xbf16>
    %cst_68 = arith.constant dense<0.000000e+00> : vector<16x16xf32>
    %167 = tpu.matmul %164, %166, %cst_68 {dimension_numbers = #tpu.dot_dimension_numbers<[1], [1], [0], [0], [0, 0, 1, 0], [], []>} : vector<16x8xbf16>, vector<16x8xbf16>, vector<16x16xf32> -> vector<16x16xf32>
    %168 = vector.extract_strided_slice %161 {offsets = [0, 0, 0], sizes = [1, 16, 16], strides = [1, 1, 1]} : vector<4x16x16xf32> to vector<1x16x16xf32>
    %169 = vector.shape_cast %168 : vector<1x16x16xf32> to vector<16x16xf32>
    %170 = arith.addf %167, %169 : vector<16x16xf32>
    %cst_69 = arith.constant dense<0xFF800000> : vector<16xf32>
    %171 = vector.multi_reduction <maximumf>, %170, %cst_69 [1] : vector<16x16xf32> to vector<16xf32>
    %172 = vector.shape_cast %171 : vector<16xf32> to vector<16x1xf32>
    %173 = vector.broadcast %172 : vector<16x1xf32> to vector<16x16xf32>
    %174 = arith.subf %170, %173 : vector<16x16xf32>
    %175 = math.exp %174 : vector<16x16xf32>
    %cst_70 = arith.constant dense<0.000000e+00> : vector<16xf32>
    %176 = vector.multi_reduction <add>, %175, %cst_70 [1] : vector<16x16xf32> to vector<16xf32>
    %177 = vector.shape_cast %176 : vector<16xf32> to vector<16x1xf32>
    %178 = tpu.reciprocal %177 : vector<16x1xf32> -> vector<16x1xf32>
    %179 = vector.broadcast %178 : vector<16x1xf32> to vector<16x16xf32>
    %180 = arith.mulf %175, %179 : vector<16x16xf32>
    %181 = vector.extract_strided_slice %160 {offsets = [0, 0], sizes = [16, 8], strides = [1, 1]} : vector<16x32xf32> to vector<16x8xf32>
    %182 = arith.truncf %180 : vector<16x16xf32> to vector<16x16xbf16>
    %183 = arith.truncf %181 : vector<16x8xf32> to vector<16x8xbf16>
    %cst_71 = arith.constant dense<0.000000e+00> : vector<16x8xf32>
    %184 = tpu.matmul %182, %183, %cst_71 {dimension_numbers = #tpu.dot_dimension_numbers<[1], [0], [0], [1], [0, 0, 1, 1], [], []>} : vector<16x16xbf16>, vector<16x8xbf16>, vector<16x8xf32> -> vector<16x8xf32>
    %c0_72 = arith.constant 0 : index
    %c0_73 = arith.constant 0 : index
    %c0_74 = arith.constant 0 : index
    %c0_75 = arith.constant 0 : index
    %185 = vector.load %arg11[%c0_72, %c0_73, %c0_74, %c0_75] : memref<1x4x8x32xbf16, #tpu.memory_space<vmem>>, vector<1x1x8x32xbf16>
    %186 = vector.shape_cast %185 : vector<1x1x8x32xbf16> to vector<8x32xbf16>
    %187 = arith.truncf %184 : vector<16x8xf32> to vector<16x8xbf16>
    %cst_76 = arith.constant dense<0.000000e+00> : vector<16x32xf32>
    %188 = tpu.matmul %187, %186, %cst_76 {dimension_numbers = #tpu.dot_dimension_numbers<[1], [0], [0], [1], [0, 0, 1, 1], [], []>} : vector<16x8xbf16>, vector<8x32xbf16>, vector<16x32xf32> -> vector<16x32xf32>
    %189 = arith.addf %162, %188 : vector<16x32xf32>
    %190 = vector.extract_strided_slice %153 {offsets = [0, 8], sizes = [16, 8], strides = [1, 1]} : vector<16x32xf32> to vector<16x8xf32>
    %191 = arith.truncf %190 : vector<16x8xf32> to vector<16x8xbf16>
    %192 = vector.extract_strided_slice %159 {offsets = [0, 8], sizes = [16, 8], strides = [1, 1]} : vector<16x32xf32> to vector<16x8xf32>
    %193 = arith.truncf %192 : vector<16x8xf32> to vector<16x8xbf16>
    %cst_77 = arith.constant dense<0.000000e+00> : vector<16x16xf32>
    %194 = tpu.matmul %191, %193, %cst_77 {dimension_numbers = #tpu.dot_dimension_numbers<[1], [1], [0], [0], [0, 0, 1, 0], [], []>} : vector<16x8xbf16>, vector<16x8xbf16>, vector<16x16xf32> -> vector<16x16xf32>
    %195 = vector.extract_strided_slice %161 {offsets = [1, 0, 0], sizes = [1, 16, 16], strides = [1, 1, 1]} : vector<4x16x16xf32> to vector<1x16x16xf32>
    %196 = vector.shape_cast %195 : vector<1x16x16xf32> to vector<16x16xf32>
    %197 = arith.addf %194, %196 : vector<16x16xf32>
    %cst_78 = arith.constant dense<0xFF800000> : vector<16xf32>
    %198 = vector.multi_reduction <maximumf>, %197, %cst_78 [1] : vector<16x16xf32> to vector<16xf32>
    %199 = vector.shape_cast %198 : vector<16xf32> to vector<16x1xf32>
    %200 = vector.broadcast %199 : vector<16x1xf32> to vector<16x16xf32>
    %201 = arith.subf %197, %200 : vector<16x16xf32>
    %202 = math.exp %201 : vector<16x16xf32>
    %cst_79 = arith.constant dense<0.000000e+00> : vector<16xf32>
    %203 = vector.multi_reduction <add>, %202, %cst_79 [1] : vector<16x16xf32> to vector<16xf32>
    %204 = vector.shape_cast %203 : vector<16xf32> to vector<16x1xf32>
    %205 = tpu.reciprocal %204 : vector<16x1xf32> -> vector<16x1xf32>
    %206 = vector.broadcast %205 : vector<16x1xf32> to vector<16x16xf32>
    %207 = arith.mulf %202, %206 : vector<16x16xf32>
    %208 = vector.extract_strided_slice %160 {offsets = [0, 8], sizes = [16, 8], strides = [1, 1]} : vector<16x32xf32> to vector<16x8xf32>
    %209 = arith.truncf %207 : vector<16x16xf32> to vector<16x16xbf16>
    %210 = arith.truncf %208 : vector<16x8xf32> to vector<16x8xbf16>
    %cst_80 = arith.constant dense<0.000000e+00> : vector<16x8xf32>
    %211 = tpu.matmul %209, %210, %cst_80 {dimension_numbers = #tpu.dot_dimension_numbers<[1], [0], [0], [1], [0, 0, 1, 1], [], []>} : vector<16x16xbf16>, vector<16x8xbf16>, vector<16x8xf32> -> vector<16x8xf32>
    %c0_81 = arith.constant 0 : index
    %c1_82 = arith.constant 1 : index
    %c0_83 = arith.constant 0 : index
    %c0_84 = arith.constant 0 : index
    %212 = vector.load %arg11[%c0_81, %c1_82, %c0_83, %c0_84] : memref<1x4x8x32xbf16, #tpu.memory_space<vmem>>, vector<1x1x8x32xbf16>
    %213 = vector.shape_cast %212 : vector<1x1x8x32xbf16> to vector<8x32xbf16>
    %214 = arith.truncf %211 : vector<16x8xf32> to vector<16x8xbf16>
    %cst_85 = arith.constant dense<0.000000e+00> : vector<16x32xf32>
    %215 = tpu.matmul %214, %213, %cst_85 {dimension_numbers = #tpu.dot_dimension_numbers<[1], [0], [0], [1], [0, 0, 1, 1], [], []>} : vector<16x8xbf16>, vector<8x32xbf16>, vector<16x32xf32> -> vector<16x32xf32>
    %216 = arith.addf %189, %215 : vector<16x32xf32>
    %217 = vector.extract_strided_slice %153 {offsets = [0, 16], sizes = [16, 8], strides = [1, 1]} : vector<16x32xf32> to vector<16x8xf32>
    %218 = arith.truncf %217 : vector<16x8xf32> to vector<16x8xbf16>
    %219 = vector.extract_strided_slice %159 {offsets = [0, 16], sizes = [16, 8], strides = [1, 1]} : vector<16x32xf32> to vector<16x8xf32>
    %220 = arith.truncf %219 : vector<16x8xf32> to vector<16x8xbf16>
    %cst_86 = arith.constant dense<0.000000e+00> : vector<16x16xf32>
    %221 = tpu.matmul %218, %220, %cst_86 {dimension_numbers = #tpu.dot_dimension_numbers<[1], [1], [0], [0], [0, 0, 1, 0], [], []>} : vector<16x8xbf16>, vector<16x8xbf16>, vector<16x16xf32> -> vector<16x16xf32>
    %222 = vector.extract_strided_slice %161 {offsets = [2, 0, 0], sizes = [1, 16, 16], strides = [1, 1, 1]} : vector<4x16x16xf32> to vector<1x16x16xf32>
    %223 = vector.shape_cast %222 : vector<1x16x16xf32> to vector<16x16xf32>
    %224 = arith.addf %221, %223 : vector<16x16xf32>
    %cst_87 = arith.constant dense<0xFF800000> : vector<16xf32>
    %225 = vector.multi_reduction <maximumf>, %224, %cst_87 [1] : vector<16x16xf32> to vector<16xf32>
    %226 = vector.shape_cast %225 : vector<16xf32> to vector<16x1xf32>
    %227 = vector.broadcast %226 : vector<16x1xf32> to vector<16x16xf32>
    %228 = arith.subf %224, %227 : vector<16x16xf32>
    %229 = math.exp %228 : vector<16x16xf32>
    %cst_88 = arith.constant dense<0.000000e+00> : vector<16xf32>
    %230 = vector.multi_reduction <add>, %229, %cst_88 [1] : vector<16x16xf32> to vector<16xf32>
    %231 = vector.shape_cast %230 : vector<16xf32> to vector<16x1xf32>
    %232 = tpu.reciprocal %231 : vector<16x1xf32> -> vector<16x1xf32>
    %233 = vector.broadcast %232 : vector<16x1xf32> to vector<16x16xf32>
    %234 = arith.mulf %229, %233 : vector<16x16xf32>
    %235 = vector.extract_strided_slice %160 {offsets = [0, 16], sizes = [16, 8], strides = [1, 1]} : vector<16x32xf32> to vector<16x8xf32>
    %236 = arith.truncf %234 : vector<16x16xf32> to vector<16x16xbf16>
    %237 = arith.truncf %235 : vector<16x8xf32> to vector<16x8xbf16>
    %cst_89 = arith.constant dense<0.000000e+00> : vector<16x8xf32>
    %238 = tpu.matmul %236, %237, %cst_89 {dimension_numbers = #tpu.dot_dimension_numbers<[1], [0], [0], [1], [0, 0, 1, 1], [], []>} : vector<16x16xbf16>, vector<16x8xbf16>, vector<16x8xf32> -> vector<16x8xf32>
    %c0_90 = arith.constant 0 : index
    %c2_91 = arith.constant 2 : index
    %c0_92 = arith.constant 0 : index
    %c0_93 = arith.constant 0 : index
    %239 = vector.load %arg11[%c0_90, %c2_91, %c0_92, %c0_93] : memref<1x4x8x32xbf16, #tpu.memory_space<vmem>>, vector<1x1x8x32xbf16>
    %240 = vector.shape_cast %239 : vector<1x1x8x32xbf16> to vector<8x32xbf16>
    %241 = arith.truncf %238 : vector<16x8xf32> to vector<16x8xbf16>
    %cst_94 = arith.constant dense<0.000000e+00> : vector<16x32xf32>
    %242 = tpu.matmul %241, %240, %cst_94 {dimension_numbers = #tpu.dot_dimension_numbers<[1], [0], [0], [1], [0, 0, 1, 1], [], []>} : vector<16x8xbf16>, vector<8x32xbf16>, vector<16x32xf32> -> vector<16x32xf32>
    %243 = arith.addf %216, %242 : vector<16x32xf32>
    %244 = vector.extract_strided_slice %153 {offsets = [0, 24], sizes = [16, 8], strides = [1, 1]} : vector<16x32xf32> to vector<16x8xf32>
    %245 = arith.truncf %244 : vector<16x8xf32> to vector<16x8xbf16>
    %246 = vector.extract_strided_slice %159 {offsets = [0, 24], sizes = [16, 8], strides = [1, 1]} : vector<16x32xf32> to vector<16x8xf32>
    %247 = arith.truncf %246 : vector<16x8xf32> to vector<16x8xbf16>
    %cst_95 = arith.constant dense<0.000000e+00> : vector<16x16xf32>
    %248 = tpu.matmul %245, %247, %cst_95 {dimension_numbers = #tpu.dot_dimension_numbers<[1], [1], [0], [0], [0, 0, 1, 0], [], []>} : vector<16x8xbf16>, vector<16x8xbf16>, vector<16x16xf32> -> vector<16x16xf32>
    %249 = vector.extract_strided_slice %161 {offsets = [3, 0, 0], sizes = [1, 16, 16], strides = [1, 1, 1]} : vector<4x16x16xf32> to vector<1x16x16xf32>
    %250 = vector.shape_cast %249 : vector<1x16x16xf32> to vector<16x16xf32>
    %251 = arith.addf %248, %250 : vector<16x16xf32>
    %cst_96 = arith.constant dense<0xFF800000> : vector<16xf32>
    %252 = vector.multi_reduction <maximumf>, %251, %cst_96 [1] : vector<16x16xf32> to vector<16xf32>
    %253 = vector.shape_cast %252 : vector<16xf32> to vector<16x1xf32>
    %254 = vector.broadcast %253 : vector<16x1xf32> to vector<16x16xf32>
    %255 = arith.subf %251, %254 : vector<16x16xf32>
    %256 = math.exp %255 : vector<16x16xf32>
    %cst_97 = arith.constant dense<0.000000e+00> : vector<16xf32>
    %257 = vector.multi_reduction <add>, %256, %cst_97 [1] : vector<16x16xf32> to vector<16xf32>
    %258 = vector.shape_cast %257 : vector<16xf32> to vector<16x1xf32>
    %259 = tpu.reciprocal %258 : vector<16x1xf32> -> vector<16x1xf32>
    %260 = vector.broadcast %259 : vector<16x1xf32> to vector<16x16xf32>
    %261 = arith.mulf %256, %260 : vector<16x16xf32>
    %262 = vector.extract_strided_slice %160 {offsets = [0, 24], sizes = [16, 8], strides = [1, 1]} : vector<16x32xf32> to vector<16x8xf32>
    %263 = arith.truncf %261 : vector<16x16xf32> to vector<16x16xbf16>
    %264 = arith.truncf %262 : vector<16x8xf32> to vector<16x8xbf16>
    %cst_98 = arith.constant dense<0.000000e+00> : vector<16x8xf32>
    %265 = tpu.matmul %263, %264, %cst_98 {dimension_numbers = #tpu.dot_dimension_numbers<[1], [0], [0], [1], [0, 0, 1, 1], [], []>} : vector<16x16xbf16>, vector<16x8xbf16>, vector<16x8xf32> -> vector<16x8xf32>
    %c0_99 = arith.constant 0 : index
    %c3_100 = arith.constant 3 : index
    %c0_101 = arith.constant 0 : index
    %c0_102 = arith.constant 0 : index
    %266 = vector.load %arg11[%c0_99, %c3_100, %c0_101, %c0_102] : memref<1x4x8x32xbf16, #tpu.memory_space<vmem>>, vector<1x1x8x32xbf16>
    %267 = vector.shape_cast %266 : vector<1x1x8x32xbf16> to vector<8x32xbf16>
    %268 = arith.truncf %265 : vector<16x8xf32> to vector<16x8xbf16>
    %cst_103 = arith.constant dense<0.000000e+00> : vector<16x32xf32>
    %269 = tpu.matmul %268, %267, %cst_103 {dimension_numbers = #tpu.dot_dimension_numbers<[1], [0], [0], [1], [0, 0, 1, 1], [], []>} : vector<16x8xbf16>, vector<8x32xbf16>, vector<16x32xf32> -> vector<16x32xf32>
    %270 = arith.addf %243, %269 : vector<16x32xf32>
    %271 = arith.addf %135, %270 : vector<16x32xf32>
    %c0_104 = arith.constant 0 : index
    %c0_105 = arith.constant 0 : index
    %c0_106 = arith.constant 0 : index
    %272 = vector.load %arg12[%c0_104, %c0_105, %c0_106] : memref<1x1x32xf32, #tpu.memory_space<vmem>>, vector<1x1x32xf32>
    %273 = vector.shape_cast %272 : vector<1x1x32xf32> to vector<1x32xf32>
    %274 = arith.mulf %271, %271 : vector<16x32xf32>
    %cst_107 = arith.constant dense<0.000000e+00> : vector<16xf32>
    %275 = vector.multi_reduction <add>, %274, %cst_107 [1] : vector<16x32xf32> to vector<16xf32>
    %276 = vector.shape_cast %275 : vector<16xf32> to vector<16x1xf32>
    %cst_108 = arith.constant 3.200000e+01 : f32
    %277 = vector.broadcast %cst_108 : f32 to vector<16x1xf32>
    %278 = arith.divf %276, %277 : vector<16x1xf32>
    %cst_109 = arith.constant 9.99999997E-7 : f32
    %279 = vector.broadcast %cst_109 : f32 to vector<16x1xf32>
    %280 = arith.addf %278, %279 : vector<16x1xf32>
    %281 = math.rsqrt %280 : vector<16x1xf32>
    %282 = vector.broadcast %281 : vector<16x1xf32> to vector<16x32xf32>
    %283 = arith.mulf %271, %282 : vector<16x32xf32>
    %284 = vector.broadcast %273 : vector<1x32xf32> to vector<16x32xf32>
    %285 = arith.mulf %283, %284 : vector<16x32xf32>
    %c0_110 = arith.constant 0 : index
    %c0_111 = arith.constant 0 : index
    %c0_112 = arith.constant 0 : index
    %286 = vector.load %arg13[%c0_110, %c0_111, %c0_112] : memref<1x32x128xbf16, #tpu.memory_space<vmem>>, vector<1x32x128xbf16>
    %287 = vector.shape_cast %286 : vector<1x32x128xbf16> to vector<32x128xbf16>
    %288 = arith.truncf %285 : vector<16x32xf32> to vector<16x32xbf16>
    %cst_113 = arith.constant dense<0.000000e+00> : vector<16x128xf32>
    %289 = tpu.matmul %288, %287, %cst_113 {dimension_numbers = #tpu.dot_dimension_numbers<[1], [0], [0], [1], [0, 0, 1, 1], [], []>} : vector<16x32xbf16>, vector<32x128xbf16>, vector<16x128xf32> -> vector<16x128xf32>
    %290 = vector.extract_strided_slice %289 {offsets = [0, 0], sizes = [16, 64], strides = [1, 1]} : vector<16x128xf32> to vector<16x64xf32>
    %cst_114 = arith.constant 5.000000e-01 : f32
    %291 = vector.broadcast %cst_114 : f32 to vector<16x64xf32>
    %292 = arith.mulf %291, %290 : vector<16x64xf32>
    %cst_115 = arith.constant 4.471500e-02 : f32
    %293 = vector.broadcast %cst_115 : f32 to vector<16x64xf32>
    %294 = arith.mulf %293, %290 : vector<16x64xf32>
    %295 = arith.mulf %294, %290 : vector<16x64xf32>
    %296 = arith.mulf %295, %290 : vector<16x64xf32>
    %297 = arith.addf %290, %296 : vector<16x64xf32>
    %cst_116 = arith.constant 0.797884583 : f32
    %298 = vector.broadcast %cst_116 : f32 to vector<16x64xf32>
    %299 = arith.mulf %298, %297 : vector<16x64xf32>
    %300 = math.tanh %299 : vector<16x64xf32>
    %cst_117 = arith.constant 1.000000e+00 : f32
    %301 = vector.broadcast %cst_117 : f32 to vector<16x64xf32>
    %302 = arith.addf %301, %300 : vector<16x64xf32>
    %303 = arith.mulf %292, %302 : vector<16x64xf32>
    %304 = vector.extract_strided_slice %289 {offsets = [0, 64], sizes = [16, 64], strides = [1, 1]} : vector<16x128xf32> to vector<16x64xf32>
    %305 = arith.mulf %303, %304 : vector<16x64xf32>
    %c0_118 = arith.constant 0 : index
    %c0_119 = arith.constant 0 : index
    %c0_120 = arith.constant 0 : index
    %306 = vector.load %arg14[%c0_118, %c0_119, %c0_120] : memref<1x64x32xbf16, #tpu.memory_space<vmem>>, vector<1x64x32xbf16>
    %307 = vector.shape_cast %306 : vector<1x64x32xbf16> to vector<64x32xbf16>
    %308 = arith.truncf %305 : vector<16x64xf32> to vector<16x64xbf16>
    %cst_121 = arith.constant dense<0.000000e+00> : vector<16x32xf32>
    %309 = tpu.matmul %308, %307, %cst_121 {dimension_numbers = #tpu.dot_dimension_numbers<[1], [0], [0], [1], [0, 0, 1, 1], [], []>} : vector<16x64xbf16>, vector<64x32xbf16>, vector<16x32xf32> -> vector<16x32xf32>
    %310 = arith.addf %271, %309 : vector<16x32xf32>
    %c0_122 = arith.constant 0 : index
    %c0_123 = arith.constant 0 : index
    %311 = vector.load %arg18[%c0_122, %c0_123] : memref<16x32xf32, #tpu.memory_space<vmem>>, vector<16x32xf32>
    tpu.vector_store %arg18[%c0_122, %c0_123], %310 {strides = array<i32>} : memref<16x32xf32, #tpu.memory_space<vmem>>, vector<16x32xf32>,
    %c1_i32 = arith.constant 1 : i32
    %312 = arith.cmpi eq, %arg0, %c1_i32 : i32
    %313 = arith.extui %312 : i1 to i32
    %c0_i32_124 = arith.constant 0 : i32
    %314 = arith.cmpi ne, %313, %c0_i32_124 : i32
    scf.if %314 {
      %c0_125 = arith.constant 0 : index
      %c0_126 = arith.constant 0 : index
      %315 = vector.load %arg15[%c0_125, %c0_126] : memref<1x32xf32, #tpu.memory_space<vmem>>, vector<1x32xf32>
      %316 = arith.mulf %310, %310 : vector<16x32xf32>
      %cst_127 = arith.constant dense<0.000000e+00> : vector<16xf32>
      %317 = vector.multi_reduction <add>, %316, %cst_127 [1] : vector<16x32xf32> to vector<16xf32>
      %318 = vector.shape_cast %317 : vector<16xf32> to vector<16x1xf32>
      %cst_128 = arith.constant 3.200000e+01 : f32
      %319 = vector.broadcast %cst_128 : f32 to vector<16x1xf32>
      %320 = arith.divf %318, %319 : vector<16x1xf32>
      %cst_129 = arith.constant 9.99999997E-7 : f32
      %321 = vector.broadcast %cst_129 : f32 to vector<16x1xf32>
      %322 = arith.addf %320, %321 : vector<16x1xf32>
      %323 = math.rsqrt %322 : vector<16x1xf32>
      %324 = vector.broadcast %323 : vector<16x1xf32> to vector<16x32xf32>
      %325 = arith.mulf %310, %324 : vector<16x32xf32>
      %326 = vector.broadcast %315 : vector<1x32xf32> to vector<16x32xf32>
      %327 = arith.mulf %325, %326 : vector<16x32xf32>
      %c0_130 = arith.constant 0 : index
      %c0_131 = arith.constant 0 : index
      %328 = vector.load %arg16[%c0_130, %c0_131] : memref<32x128xbf16, #tpu.memory_space<vmem>>, vector<32x128xbf16>
      %329 = arith.truncf %327 : vector<16x32xf32> to vector<16x32xbf16>
      %cst_132 = arith.constant dense<0.000000e+00> : vector<16x128xf32>
      %330 = tpu.matmul %329, %328, %cst_132 {dimension_numbers = #tpu.dot_dimension_numbers<[1], [0], [0], [1], [0, 0, 1, 1], [], []>} : vector<16x32xbf16>, vector<32x128xbf16>, vector<16x128xf32> -> vector<16x128xf32>
      %c0_133 = arith.constant 0 : index
      %c0_134 = arith.constant 0 : index
      %331 = vector.load %arg17[%c0_133, %c0_134] : memref<16x128xf32, #tpu.memory_space<vmem>>, vector<16x128xf32>
      tpu.vector_store %arg17[%c0_133, %c0_134], %330 {strides = array<i32>} : memref<16x128xf32, #tpu.memory_space<vmem>>, vector<16x128xf32>,
    } else {
    }
    return
  }
  func.func @transform_0(%arg0: i32) -> (i32, i32) {
    %c0_i32 = arith.constant 0 : i32
    %c0_i32_0 = arith.constant 0 : i32
    %c0_i32_1 = arith.constant 0 : i32
    return %c0_i32, %c0_i32_0 : i32, i32
  }
  func.func @transform_1(%arg0: i32) -> (i32, i32) {
    %c0_i32 = arith.constant 0 : i32
    %c0_i32_0 = arith.constant 0 : i32
    %c0_i32_1 = arith.constant 0 : i32
    return %c0_i32, %c0_i32_0 : i32, i32
  }
  func.func @transform_2(%arg0: i32) -> (i32, i32, i32) {
    %c0_i32 = arith.constant 0 : i32
    %c0_i32_0 = arith.constant 0 : i32
    %c0_i32_1 = arith.constant 0 : i32
    %c0_i32_2 = arith.constant 0 : i32
    return %c0_i32, %c0_i32_0, %c0_i32_1 : i32, i32, i32
  }
  func.func @transform_3(%arg0: i32) -> (i32, i32, i32) {
    %c0_i32 = arith.constant 0 : i32
    %c0_i32_0 = arith.constant 0 : i32
    %c0_i32_1 = arith.constant 0 : i32
    %c0_i32_2 = arith.constant 0 : i32
    return %c0_i32, %c0_i32_0, %c0_i32_1 : i32, i32, i32
  }
  func.func @transform_4(%arg0: i32) -> (i32, i32, i32) {
    %c0_i32 = arith.constant 0 : i32
    %c0_i32_0 = arith.constant 0 : i32
    %c0_i32_1 = arith.constant 0 : i32
    return %arg0, %c0_i32, %c0_i32_0 : i32, i32, i32
  }
  func.func @transform_5(%arg0: i32) -> (i32, i32, i32) {
    %c0_i32 = arith.constant 0 : i32
    %c0_i32_0 = arith.constant 0 : i32
    %c0_i32_1 = arith.constant 0 : i32
    return %arg0, %c0_i32, %c0_i32_0 : i32, i32, i32
  }
  func.func @transform_6(%arg0: i32) -> (i32, i32, i32, i32) {
    %c0_i32 = arith.constant 0 : i32
    %c0_i32_0 = arith.constant 0 : i32
    %c0_i32_1 = arith.constant 0 : i32
    %c0_i32_2 = arith.constant 0 : i32
    return %arg0, %c0_i32, %c0_i32_0, %c0_i32_1 : i32, i32, i32, i32
  }
  func.func @transform_7(%arg0: i32) -> (i32, i32, i32) {
    %c0_i32 = arith.constant 0 : i32
    %c0_i32_0 = arith.constant 0 : i32
    %c0_i32_1 = arith.constant 0 : i32
    return %arg0, %c0_i32, %c0_i32_0 : i32, i32, i32
  }
  func.func @transform_8(%arg0: i32) -> (i32, i32, i32) {
    %c0_i32 = arith.constant 0 : i32
    %c0_i32_0 = arith.constant 0 : i32
    %c0_i32_1 = arith.constant 0 : i32
    return %arg0, %c0_i32, %c0_i32_0 : i32, i32, i32
  }
  func.func @transform_9(%arg0: i32) -> (i32, i32, i32) {
    %c0_i32 = arith.constant 0 : i32
    %c0_i32_0 = arith.constant 0 : i32
    %c0_i32_1 = arith.constant 0 : i32
    return %arg0, %c0_i32, %c0_i32_0 : i32, i32, i32
  }
  func.func @transform_10(%arg0: i32) -> (i32, i32, i32, i32) {
    %c0_i32 = arith.constant 0 : i32
    %c0_i32_0 = arith.constant 0 : i32
    %c0_i32_1 = arith.constant 0 : i32
    %c0_i32_2 = arith.constant 0 : i32
    return %arg0, %c0_i32, %c0_i32_0, %c0_i32_1 : i32, i32, i32, i32
  }
  func.func @transform_11(%arg0: i32) -> (i32, i32, i32) {
    %c0_i32 = arith.constant 0 : i32
    %c0_i32_0 = arith.constant 0 : i32
    %c0_i32_1 = arith.constant 0 : i32
    return %arg0, %c0_i32, %c0_i32_0 : i32, i32, i32
  }
  func.func @transform_12(%arg0: i32) -> (i32, i32, i32) {
    %c0_i32 = arith.constant 0 : i32
    %c0_i32_0 = arith.constant 0 : i32
    %c0_i32_1 = arith.constant 0 : i32
    return %arg0, %c0_i32, %c0_i32_0 : i32, i32, i32
  }
  func.func @transform_13(%arg0: i32) -> (i32, i32, i32) {
    %c0_i32 = arith.constant 0 : i32
    %c0_i32_0 = arith.constant 0 : i32
    %c0_i32_1 = arith.constant 0 : i32
    return %arg0, %c0_i32, %c0_i32_0 : i32, i32, i32
  }
  func.func @transform_14(%arg0: i32) -> (i32, i32) {
    %c0_i32 = arith.constant 0 : i32
    %c0_i32_0 = arith.constant 0 : i32
    %c0_i32_1 = arith.constant 0 : i32
    return %c0_i32, %c0_i32_0 : i32, i32
  }
  func.func @transform_15(%arg0: i32) -> (i32, i32) {
    %c0_i32 = arith.constant 0 : i32
    %c0_i32_0 = arith.constant 0 : i32
    %c0_i32_1 = arith.constant 0 : i32
    return %c0_i32, %c0_i32_0 : i32, i32
  }
  func.func @transform_16(%arg0: i32) -> (i32, i32) {
    %c0_i32 = arith.constant 0 : i32
    %c0_i32_0 = arith.constant 0 : i32
    %c0_i32_1 = arith.constant 0 : i32
    return %c0_i32, %c0_i32_0 : i32, i32
  }
}

</mosaic_0001>

<llo_original>
// kernel: tile.19
$region0: #{tile.19}
  %s0 = inlined_call_operand.vmem [shape: f32[4,2,8,2,8], index: 0, kind: input, shape index: {}]
  %s1 = inlined_call_operand.vmem [shape: f32[4,16,16], index: 1, kind: output, shape index: {}]
  $region1: #{tile.19} parent=0
    #allocation0 [shape = 'u8[262144]{0}', space=vmem, size = 0x40000, scoped, tag = 'scoped mem for input reshape']
    %s3 = sshllo.u32 0, 2
    %s4 = smul.addr 2, 63
    %s5 = scalar_lea.vmem %s0, %s4
    %v6 = vld [vmem:[%s5] sm:%s3]
    %s7 = scalar_lea.vmem [#allocation0], 504
    %8 = vst [vmem:[%s7] sm:%s3] %v6
    %s9 = smul.addr 2, 62
    %s10 = scalar_lea.vmem %s0, %s9
    %v11 = vld [vmem:[%s10] sm:%s3]
    %s12 = scalar_lea.vmem [#allocation0], 496
    %13 = vst [vmem:[%s12] sm:%s3] %v11
    %s14 = smul.addr 2, 61
    %s15 = scalar_lea.vmem %s0, %s14
    %v16 = vld [vmem:[%s15] sm:%s3]
    %s17 = scalar_lea.vmem [#allocation0], 488
    %18 = vst [vmem:[%s17] sm:%s3] %v16
    %s19 = smul.addr 2, 60
    %s20 = scalar_lea.vmem %s0, %s19
    %v21 = vld [vmem:[%s20] sm:%s3]
    %s22 = scalar_lea.vmem [#allocation0], 480
    %23 = vst [vmem:[%s22] sm:%s3] %v21
    %s24 = smul.addr 2, 59
    %s25 = scalar_lea.vmem %s0, %s24
    %v26 = vld [vmem:[%s25] sm:%s3]
    %s27 = scalar_lea.vmem [#allocation0], 472
    %28 = vst [vmem:[%s27] sm:%s3] %v26
    %s29 = smul.addr 2, 58
    %s30 = scalar_lea.vmem %s0, %s29
    %v31 = vld [vmem:[%s30] sm:%s3]
    %s32 = scalar_lea.vmem [#allocation0], 464
    %33 = vst [vmem:[%s32] sm:%s3] %v31
    %s34 = smul.addr 2, 57
    %s35 = scalar_lea.vmem %s0, %s34
    %v36 = vld [vmem:[%s35] sm:%s3]
    %s37 = scalar_lea.vmem [#allocation0], 456
    %38 = vst [vmem:[%s37] sm:%s3] %v36
    %s39 = smul.addr 2, 56
    %s40 = scalar_lea.vmem %s0, %s39
    %v41 = vld [vmem:[%s40] sm:%s3]
    %s42 = scalar_lea.vmem [#allocation0], 448
    %43 = vst [vmem:[%s42] sm:%s3] %v41
    %s44 = smul.addr 2, 55
    %s45 = scalar_lea.vmem %s0, %s44
    %v46 = vld [vmem:[%s45] sm:%s3]
    %s47 = scalar_lea.vmem [#allocation0], 440
    %48 = vst [vmem:[%s47] sm:%s3] %v46
    %s49 = smul.addr 2, 54
    %s50 = scalar_lea.vmem %s0, %s49
    %v51 = vld [vmem:[%s50] sm:%s3]
    %s52 = scalar_lea.vmem [#allocation0], 432
    %53 = vst [vmem:[%s52] sm:%s3] %v51
    %s54 = smul.addr 2, 53
    %s55 = scalar_lea.vmem %s0, %s54
    %v56 = vld [vmem:[%s55] sm:%s3]
    %s57 = scalar_lea.vmem [#allocation0], 424
    %58 = vst [vmem:[%s57] sm:%s3] %v56
    %s59 = smul.addr 2, 52
    %s60 = scalar_lea.vmem %s0, %s59
    %v61 = vld [vmem:[%s60] sm:%s3]
    %s62 = scalar_lea.vmem [#allocation0], 416
    %63 = vst [vmem:[%s62] sm:%s3] %v61
    %s64 = smul.addr 2, 51
    %s65 = scalar_lea.vmem %s0, %s64
    %v66 = vld [vmem:[%s65] sm:%s3]
    %s67 = scalar_lea.vmem [#allocation0], 408
    %68 = vst [vmem:[%s67] sm:%s3] %v66
    %s69 = smul.addr 2, 50
    %s70 = scalar_lea.vmem %s0, %s69
    %v71 = vld [vmem:[%s70] sm:%s3]
    %s72 = scalar_lea.vmem [#allocation0], 400
    %73 = vst [vmem:[%s72] sm:%s3] %v71
    %s74 = smul.addr 2, 49
    %s75 = scalar_lea.vmem %s0, %s74
    %v76 = vld [vmem:[%s75] sm:%s3]
    %s77 = scalar_lea.vmem [#allocation0], 392
    %78 = vst [vmem:[%s77] sm:%s3] %v76
    %s79 = smul.addr 2, 48
    %s80 = scalar_lea.vmem %s0, %s79
    %v81 = vld [vmem:[%s80] sm:%s3]
    %s82 = scalar_lea.vmem [#allocation0], 384
    %83 = vst [vmem:[%s82] sm:%s3] %v81
    %s84 = smul.addr 2, 47
    %s85 = scalar_lea.vmem %s0, %s84
    %v86 = vld [vmem:[%s85] sm:%s3]
    %s87 = scalar_lea.vmem [#allocation0], 376
    %88 = vst [vmem:[%s87] sm:%s3] %v86
    %s89 = smul.addr 2, 46
    %s90 = scalar_lea.vmem %s0, %s89
    %v91 = vld [vmem:[%s90] sm:%s3]
    %s92 = scalar_lea.vmem [#allocation0], 368
    %93 = vst [vmem:[%s92] sm:%s3] %v91
    %s94 = smul.addr 2, 45
    %s95 = scalar_lea.vmem %s0, %s94
    %v96 = vld [vmem:[%s95] sm:%s3]
    %s97 = scalar_lea.vmem [#allocation0], 360
    %98 = vst [vmem:[%s97] sm:%s3] %v96
    %s99 = smul.addr 2, 44
    %s100 = scalar_lea.vmem %s0, %s99
    %v101 = vld [vmem:[%s100] sm:%s3]
    %s102 = scalar_lea.vmem [#allocation0], 352
    %103 = vst [vmem:[%s102] sm:%s3] %v101
    %s104 = smul.addr 2, 43
    %s105 = scalar_lea.vmem %s0, %s104
    %v106 = vld [vmem:[%s105] sm:%s3]
    %s107 = scalar_lea.vmem [#allocation0], 344
    %108 = vst [vmem:[%s107] sm:%s3] %v106
    %s109 = smul.addr 2, 42
    %s110 = scalar_lea.vmem %s0, %s109
    %v111 = vld [vmem:[%s110] sm:%s3]
    %s112 = scalar_lea.vmem [#allocation0], 336
    %113 = vst [vmem:[%s112] sm:%s3] %v111
    %s114 = smul.addr 2, 41
    %s115 = scalar_lea.vmem %s0, %s114
    %v116 = vld [vmem:[%s115] sm:%s3]
    %s117 = scalar_lea.vmem [#allocation0], 328
    %118 = vst [vmem:[%s117] sm:%s3] %v116
    %s119 = smul.addr 2, 40
    %s120 = scalar_lea.vmem %s0, %s119
    %v121 = vld [vmem:[%s120] sm:%s3]
    %s122 = scalar_lea.vmem [#allocation0], 320
    %123 = vst [vmem:[%s122] sm:%s3] %v121
    %s124 = smul.addr 2, 39
    %s125 = scalar_lea.vmem %s0, %s124
    %v126 = vld [vmem:[%s125] sm:%s3]
    %s127 = scalar_lea.vmem [#allocation0], 312
    %128 = vst [vmem:[%s127] sm:%s3] %v126
    %s129 = smul.addr 2, 38
    %s130 = scalar_lea.vmem %s0, %s129
    %v131 = vld [vmem:[%s130] sm:%s3]
    %s132 = scalar_lea.vmem [#allocation0], 304
    %133 = vst [vmem:[%s132] sm:%s3] %v131
    %s134 = smul.addr 2, 37
    %s135 = scalar_lea.vmem %s0, %s134
    %v136 = vld [vmem:[%s135] sm:%s3]
    %s137 = scalar_lea.vmem [#allocation0], 296
    %138 = vst [vmem:[%s137] sm:%s3] %v136
    %s139 = smul.addr 2, 36
    %s140 = scalar_lea.vmem %s0, %s139
    %v141 = vld [vmem:[%s140] sm:%s3]
    %s142 = scalar_lea.vmem [#allocation0], 288
    %143 = vst [vmem:[%s142] sm:%s3] %v141
    %s144 = smul.addr 2, 35
    %s145 = scalar_lea.vmem %s0, %s144
    %v146 = vld [vmem:[%s145] sm:%s3]
    %s147 = scalar_lea.vmem [#allocation0], 280
    %148 = vst [vmem:[%s147] sm:%s3] %v146
    %s149 = smul.addr 2, 34
    %s150 = scalar_lea.vmem %s0, %s149
    %v151 = vld [vmem:[%s150] sm:%s3]
    %s152 = scalar_lea.vmem [#allocation0], 272
    %153 = vst [vmem:[%s152] sm:%s3] %v151
    %s154 = smul.addr 2, 33
    %s155 = scalar_lea.vmem %s0, %s154
    %v156 = vld [vmem:[%s155] sm:%s3]
    %s157 = scalar_lea.vmem [#allocation0], 264
    %158 = vst [vmem:[%s157] sm:%s3] %v156
    %s159 = smul.addr 2, 32
    %s160 = scalar_lea.vmem %s0, %s159
    %v161 = vld [vmem:[%s160] sm:%s3]
    %s162 = scalar_lea.vmem [#allocation0], 256
    %163 = vst [vmem:[%s162] sm:%s3] %v161
    %s164 = smul.addr 2, 31
    %s165 = scalar_lea.vmem %s0, %s164
    %v166 = vld [vmem:[%s165] sm:%s3]
    %s167 = scalar_lea.vmem [#allocation0], 248
    %168 = vst [vmem:[%s167] sm:%s3] %v166
    %s169 = smul.addr 2, 30
    %s170 = scalar_lea.vmem %s0, %s169
    %v171 = vld [vmem:[%s170] sm:%s3]
    %s172 = scalar_lea.vmem [#allocation0], 240
    %173 = vst [vmem:[%s172] sm:%s3] %v171
    %s174 = smul.addr 2, 29
    %s175 = scalar_lea.vmem %s0, %s174
    %v176 = vld [vmem:[%s175] sm:%s3]
    %s177 = scalar_lea.vmem [#allocation0], 232
    %178 = vst [vmem:[%s177] sm:%s3] %v176
    %s179 = smul.addr 2, 28
    %s180 = scalar_lea.vmem %s0, %s179
    %v181 = vld [vmem:[%s180] sm:%s3]
    %s182 = scalar_lea.vmem [#allocation0], 224
    %183 = vst [vmem:[%s182] sm:%s3] %v181
    %s184 = smul.addr 2, 27
    %s185 = scalar_lea.vmem %s0, %s184
    %v186 = vld [vmem:[%s185] sm:%s3]
    %s187 = scalar_lea.vmem [#allocation0], 216
    %188 = vst [vmem:[%s187] sm:%s3] %v186
    %s189 = smul.addr 2, 26
    %s190 = scalar_lea.vmem %s0, %s189
    %v191 = vld [vmem:[%s190] sm:%s3]
    %s192 = scalar_lea.vmem [#allocation0], 208
    %193 = vst [vmem:[%s192] sm:%s3] %v191
    %s194 = smul.addr 2, 25
    %s195 = scalar_lea.vmem %s0, %s194
    %v196 = vld [vmem:[%s195] sm:%s3]
    %s197 = scalar_lea.vmem [#allocation0], 200
    %198 = vst [vmem:[%s197] sm:%s3] %v196
    %s199 = smul.addr 2, 24
    %s200 = scalar_lea.vmem %s0, %s199
    %v201 = vld [vmem:[%s200] sm:%s3]
    %s202 = scalar_lea.vmem [#allocation0], 192
    %203 = vst [vmem:[%s202] sm:%s3] %v201
    %s204 = smul.addr 2, 23
    %s205 = scalar_lea.vmem %s0, %s204
    %v206 = vld [vmem:[%s205] sm:%s3]
    %s207 = scalar_lea.vmem [#allocation0], 184
    %208 = vst [vmem:[%s207] sm:%s3] %v206
    %s209 = smul.addr 2, 22
    %s210 = scalar_lea.vmem %s0, %s209
    %v211 = vld [vmem:[%s210] sm:%s3]
    %s212 = scalar_lea.vmem [#allocation0], 176
    %213 = vst [vmem:[%s212] sm:%s3] %v211
    %s214 = smul.addr 2, 21
    %s215 = scalar_lea.vmem %s0, %s214
    %v216 = vld [vmem:[%s215] sm:%s3]
    %s217 = scalar_lea.vmem [#allocation0], 168
    %218 = vst [vmem:[%s217] sm:%s3] %v216
    %s219 = smul.addr 2, 20
    %s220 = scalar_lea.vmem %s0, %s219
    %v221 = vld [vmem:[%s220] sm:%s3]
    %s222 = scalar_lea.vmem [#allocation0], 160
    %223 = vst [vmem:[%s222] sm:%s3] %v221
    %s224 = smul.addr 2, 19
    %s225 = scalar_lea.vmem %s0, %s224
    %v226 = vld [vmem:[%s225] sm:%s3]
    %s227 = scalar_lea.vmem [#allocation0], 152
    %228 = vst [vmem:[%s227] sm:%s3] %v226
    %s229 = smul.addr 2, 18
    %s230 = scalar_lea.vmem %s0, %s229
    %v231 = vld [vmem:[%s230] sm:%s3]
    %s232 = scalar_lea.vmem [#allocation0], 144
    %233 = vst [vmem:[%s232] sm:%s3] %v231
    %s234 = smul.addr 2, 17
    %s235 = scalar_lea.vmem %s0, %s234
    %v236 = vld [vmem:[%s235] sm:%s3]
    %s237 = scalar_lea.vmem [#allocation0], 136
    %238 = vst [vmem:[%s237] sm:%s3] %v236
    %s239 = smul.addr 2, 16
    %s240 = scalar_lea.vmem %s0, %s239
    %v241 = vld [vmem:[%s240] sm:%s3]
    %s242 = scalar_lea.vmem [#allocation0], 128
    %243 = vst [vmem:[%s242] sm:%s3] %v241
    %s244 = smul.addr 2, 15
    %s245 = scalar_lea.vmem %s0, %s244
    %v246 = vld [vmem:[%s245] sm:%s3]
    %s247 = scalar_lea.vmem [#allocation0], 120
    %248 = vst [vmem:[%s247] sm:%s3] %v246
    %s249 = smul.addr 2, 14
    %s250 = scalar_lea.vmem %s0, %s249
    %v251 = vld [vmem:[%s250] sm:%s3]
    %s252 = scalar_lea.vmem [#allocation0], 112
    %253 = vst [vmem:[%s252] sm:%s3] %v251
    %s254 = smul.addr 2, 13
    %s255 = scalar_lea.vmem %s0, %s254
    %v256 = vld [vmem:[%s255] sm:%s3]
    %s257 = scalar_lea.vmem [#allocation0], 104
    %258 = vst [vmem:[%s257] sm:%s3] %v256
    %s259 = smul.addr 2, 12
    %s260 = scalar_lea.vmem %s0, %s259
    %v261 = vld [vmem:[%s260] sm:%s3]
    %s262 = scalar_lea.vmem [#allocation0], 96
    %263 = vst [vmem:[%s262] sm:%s3] %v261
    %s264 = smul.addr 2, 11
    %s265 = scalar_lea.vmem %s0, %s264
    %v266 = vld [vmem:[%s265] sm:%s3]
    %s267 = scalar_lea.vmem [#allocation0], 88
    %268 = vst [vmem:[%s267] sm:%s3] %v266
    %s269 = smul.addr 2, 10
    %s270 = scalar_lea.vmem %s0, %s269
    %v271 = vld [vmem:[%s270] sm:%s3]
    %s272 = scalar_lea.vmem [#allocation0], 80
    %273 = vst [vmem:[%s272] sm:%s3] %v271
    %s274 = smul.addr 2, 9
    %s275 = scalar_lea.vmem %s0, %s274
    %v276 = vld [vmem:[%s275] sm:%s3]
    %s277 = scalar_lea.vmem [#allocation0], 72
    %278 = vst [vmem:[%s277] sm:%s3] %v276
    %s279 = smul.addr 2, 8
    %s280 = scalar_lea.vmem %s0, %s279
    %v281 = vld [vmem:[%s280] sm:%s3]
    %s282 = scalar_lea.vmem [#allocation0], 64
    %283 = vst [vmem:[%s282] sm:%s3] %v281
    %s284 = smul.addr 2, 7
    %s285 = scalar_lea.vmem %s0, %s284
    %v286 = vld [vmem:[%s285] sm:%s3]
    %s287 = scalar_lea.vmem [#allocation0], 56
    %288 = vst [vmem:[%s287] sm:%s3] %v286
    %s289 = smul.addr 2, 6
    %s290 = scalar_lea.vmem %s0, %s289
    %v291 = vld [vmem:[%s290] sm:%s3]
    %s292 = scalar_lea.vmem [#allocation0], 48
    %293 = vst [vmem:[%s292] sm:%s3] %v291
    %s294 = smul.addr 2, 5
    %s295 = scalar_lea.vmem %s0, %s294
    %v296 = vld [vmem:[%s295] sm:%s3]
    %s297 = scalar_lea.vmem [#allocation0], 40
    %298 = vst [vmem:[%s297] sm:%s3] %v296
    %s299 = smul.addr 2, 4
    %s300 = scalar_lea.vmem %s0, %s299
    %v301 = vld [vmem:[%s300] sm:%s3]
    %s302 = scalar_lea.vmem [#allocation0], 32
    %303 = vst [vmem:[%s302] sm:%s3] %v301
    %s304 = smul.addr 2, 3
    %s305 = scalar_lea.vmem %s0, %s304
    %v306 = vld [vmem:[%s305] sm:%s3]
    %s307 = scalar_lea.vmem [#allocation0], 24
    %308 = vst [vmem:[%s307] sm:%s3] %v306
    %s309 = smul.addr 2, 2
    %s310 = scalar_lea.vmem %s0, %s309
    %v311 = vld [vmem:[%s310] sm:%s3]
    %s312 = scalar_lea.vmem [#allocation0], 16
    %313 = vst [vmem:[%s312] sm:%s3] %v311
    %s314 = scalar_lea.vmem %s0, 2
    %v315 = vld [vmem:[%s314] sm:%s3]
    %s316 = scalar_lea.vmem [#allocation0], 8
    %317 = vst [vmem:[%s316] sm:%s3] %v315
    %v318 = vld [vmem:[%s0] sm:%s3]
    %319 = vst [vmem:[#allocation0] sm:%s3] %v318
    %v320 = vld [vmem:[#allocation0] ss:$8 sm:$0xf]
    %v321 = vld [vmem:[#allocation0] ss:$8 sm:$0xf0]
    %vm322 = vcmask 1047556
    %v323 = vsel %vm322, %v321, %v320
    %vm324 = vcmask 64512
    %325 = vst.msk [vmem:[%s1] sm:$0xff] %vm324, %v323
    %s326 = scalar_lea.vmem [#allocation0], 64
    %v327 = vld [vmem:[%s326] ss:$8 sm:$0xf]
    %s328 = scalar_lea.vmem [#allocation0], 64
    %v329 = vld [vmem:[%s328] ss:$8 sm:$0xf0]
    %vm330 = vcmask 1047556
    %v331 = vsel %vm330, %v329, %v327
    %vm332 = vcmask 64512
    %s333 = scalar_lea.vmem %s1, 8
    %334 = vst.msk [vmem:[%s333] sm:$0xff] %vm332, %v331
    %s335 = scalar_lea.vmem [#allocation0], 128
    %v336 = vld [vmem:[%s335] ss:$8 sm:$0xf]
    %s337 = scalar_lea.vmem [#allocation0], 128
    %v338 = vld [vmem:[%s337] ss:$8 sm:$0xf0]
    %vm339 = vcmask 1047556
    %v340 = vsel %vm339, %v338, %v336
    %vm341 = vcmask 64512
    %s342 = scalar_lea.vmem %s1, 16
    %343 = vst.msk [vmem:[%s342] sm:$0xff] %vm341, %v340
    %s344 = scalar_lea.vmem [#allocation0], 192
    %v345 = vld [vmem:[%s344] ss:$8 sm:$0xf]
    %s346 = scalar_lea.vmem [#allocation0], 192
    %v347 = vld [vmem:[%s346] ss:$8 sm:$0xf0]
    %vm348 = vcmask 1047556
    %v349 = vsel %vm348, %v347, %v345
    %vm350 = vcmask 64512
    %s351 = scalar_lea.vmem %s1, 24
    %352 = vst.msk [vmem:[%s351] sm:$0xff] %vm350, %v349
    %s353 = scalar_lea.vmem [#allocation0], 256
    %v354 = vld [vmem:[%s353] ss:$8 sm:$0xf]
    %s355 = scalar_lea.vmem [#allocation0], 256
    %v356 = vld [vmem:[%s355] ss:$8 sm:$0xf0]
    %vm357 = vcmask 1047556
    %v358 = vsel %vm357, %v356, %v354
    %vm359 = vcmask 64512
    %s360 = scalar_lea.vmem %s1, 32
    %361 = vst.msk [vmem:[%s360] sm:$0xff] %vm359, %v358
    %s362 = scalar_lea.vmem [#allocation0], 320
    %v363 = vld [vmem:[%s362] ss:$8 sm:$0xf]
    %s364 = scalar_lea.vmem [#allocation0], 320
    %v365 = vld [vmem:[%s364] ss:$8 sm:$0xf0]
    %vm366 = vcmask 1047556
    %v367 = vsel %vm366, %v365, %v363
    %vm368 = vcmask 64512
    %s369 = scalar_lea.vmem %s1, 40
    %370 = vst.msk [vmem:[%s369] sm:$0xff] %vm368, %v367
    %s371 = scalar_lea.vmem [#allocation0], 384
    %v372 = vld [vmem:[%s371] ss:$8 sm:$0xf]
    %s373 = scalar_lea.vmem [#allocation0], 384
    %v374 = vld [vmem:[%s373] ss:$8 sm:$0xf0]
    %vm375 = vcmask 1047556
    %v376 = vsel %vm375, %v374, %v372
    %vm377 = vcmask 64512
    %s378 = scalar_lea.vmem %s1, 48
    %379 = vst.msk [vmem:[%s378] sm:$0xff] %vm377, %v376
    %s380 = scalar_lea.vmem [#allocation0], 448
    %v381 = vld [vmem:[%s380] ss:$8 sm:$0xf]
    %s382 = scalar_lea.vmem [#allocation0], 448
    %v383 = vld [vmem:[%s382] ss:$8 sm:$0xf0]
    %vm384 = vcmask 1047556
    %v385 = vsel %vm384, %v383, %v381
    %vm386 = vcmask 64512
    %s387 = scalar_lea.vmem %s1, 56
    %388 = vst.msk [vmem:[%s387] sm:$0xff] %vm386, %v385
    %s389 = scalar_lea.vmem [#allocation0], 1
    %v390 = vld [vmem:[%s389] ss:$8 sm:$0xf]
    %s391 = scalar_lea.vmem [#allocation0], 1
    %v392 = vld [vmem:[%s391] ss:$8 sm:$0xf0]
    %vm393 = vcmask 1047556
    %v394 = vsel %vm393, %v392, %v390
    %395 = vrot.lane.b32.xlu0 %v394, 8
    %v396 = vpop.permute.xlu0 %395
    %vm397 = vcmask 130112
    %398 = vst.msk [vmem:[%s1] sm:$0xff] %vm397, %v396
    %s399 = scalar_lea.vmem [#allocation0], 257
    %v400 = vld [vmem:[%s399] ss:$8 sm:$0xf]
    %s401 = scalar_lea.vmem [#allocation0], 257
    %v402 = vld [vmem:[%s401] ss:$8 sm:$0xf0]
    %vm403 = vcmask 1047556
    %v404 = vsel %vm403, %v402, %v400
    %405 = vrot.lane.b32.xlu0 %v404, 8
    %v406 = vpop.permute.xlu0 %405
    %vm407 = vcmask 130112
    %s408 = scalar_lea.vmem %s1, 32
    %409 = vst.msk [vmem:[%s408] sm:$0xff] %vm407, %v406
    %s410 = scalar_lea.vmem [#allocation0], 65
    %v411 = vld [vmem:[%s410] ss:$8 sm:$0xf]
    %s412 = scalar_lea.vmem [#allocation0], 65
    %v413 = vld [vmem:[%s412] ss:$8 sm:$0xf0]
    %vm414 = vcmask 1047556
    %v415 = vsel %vm414, %v413, %v411
    %416 = vrot.lane.b32.xlu0 %v415, 8
    %v417 = vpop.permute.xlu0 %416
    %vm418 = vcmask 130112
    %s419 = scalar_lea.vmem %s1, 8
    %420 = vst.msk [vmem:[%s419] sm:$0xff] %vm418, %v417
    %s421 = scalar_lea.vmem [#allocation0], 321
    %v422 = vld [vmem:[%s421] ss:$8 sm:$0xf]
    %s423 = scalar_lea.vmem [#allocation0], 321
    %v424 = vld [vmem:[%s423] ss:$8 sm:$0xf0]
    %vm425 = vcmask 1047556
    %v426 = vsel %vm425, %v424, %v422
    %427 = vrot.lane.b32.xlu0 %v426, 8
    %v428 = vpop.permute.xlu0 %427
    %vm429 = vcmask 130112
    %s430 = scalar_lea.vmem %s1, 40
    %431 = vst.msk [vmem:[%s430] sm:$0xff] %vm429, %v428
    %s432 = scalar_lea.vmem [#allocation0], 129
    %v433 = vld [vmem:[%s432] ss:$8 sm:$0xf]
    %s434 = scalar_lea.vmem [#allocation0], 129
    %v435 = vld [vmem:[%s434] ss:$8 sm:$0xf0]
    %vm436 = vcmask 1047556
    %v437 = vsel %vm436, %v435, %v433
    %438 = vrot.lane.b32.xlu0 %v437, 8
    %v439 = vpop.permute.xlu0 %438
    %vm440 = vcmask 130112
    %s441 = scalar_lea.vmem %s1, 16
    %442 = vst.msk [vmem:[%s441] sm:$0xff] %vm440, %v439
    %s443 = scalar_lea.vmem [#allocation0], 385
    %v444 = vld [vmem:[%s443] ss:$8 sm:$0xf]
    %s445 = scalar_lea.vmem [#allocation0], 385
    %v446 = vld [vmem:[%s445] ss:$8 sm:$0xf0]
    %vm447 = vcmask 1047556
    %v448 = vsel %vm447, %v446, %v444
    %449 = vrot.lane.b32.xlu0 %v448, 8
    %v450 = vpop.permute.xlu0 %449
    %vm451 = vcmask 130112
    %s452 = scalar_lea.vmem %s1, 48
    %453 = vst.msk [vmem:[%s452] sm:$0xff] %vm451, %v450
    %s454 = scalar_lea.vmem [#allocation0], 193
    %v455 = vld [vmem:[%s454] ss:$8 sm:$0xf]
    %s456 = scalar_lea.vmem [#allocation0], 193
    %v457 = vld [vmem:[%s456] ss:$8 sm:$0xf0]
    %vm458 = vcmask 1047556
    %v459 = vsel %vm458, %v457, %v455
    %460 = vrot.lane.b32.xlu0 %v459, 8
    %v461 = vpop.permute.xlu0 %460
    %vm462 = vcmask 130112
    %s463 = scalar_lea.vmem %s1, 24
    %464 = vst.msk [vmem:[%s463] sm:$0xff] %vm462, %v461
    %s465 = scalar_lea.vmem [#allocation0], 449
    %v466 = vld [vmem:[%s465] ss:$8 sm:$0xf]
    %s467 = scalar_lea.vmem [#allocation0], 449
    %v468 = vld [vmem:[%s467] ss:$8 sm:$0xf0]
    %vm469 = vcmask 1047556
    %v470 = vsel %vm469, %v468, %v466
    %471 = vrot.lane.b32.xlu0 %v470, 8
    %v472 = vpop.permute.xlu0 %471
    %vm473 = vcmask 130112
    %s474 = scalar_lea.vmem %s1, 56
    %475 = vst.msk [vmem:[%s474] sm:$0xff] %vm473, %v472

// kernel: t5_forward.2
$region0: #{t5_forward.2}
  #allocation0 [shape = 'u32[]', space=smem, size = 0x4, offset = 0x4, fixed_abs, tag = 'smem constant byte address 0x4 - core index']
  #allocation1 [shape = 'u32[144,128]{1,0:T(1,128)}', space=vmem, size = 0x12000, scoped, tag = 'internal scratch']
  #allocation2 [shape = 'f32[16,32]{1,0:T(8,128)}', space=vmem, size = 0x2000, scoped, tag = 'scratch operand']
  %s0 = inlined_call_operand.vmem [shape: f32[16,32], index: 0, kind: input, shape index: {}]
  %s1 = inlined_call_operand.vmem [shape: f32[4,16,16], index: 1, kind: input, shape index: {}]
  %s2 = inlined_call_operand.vmem [shape: f32[2,1,32], index: 2, kind: input, shape index: {}]
  %s3 = inlined_call_operand.vmem [shape: bf16[2,32,96], index: 3, kind: input, shape index: {}]
  %s4 = inlined_call_operand.vmem [shape: bf16[2,4,8,32], index: 4, kind: input, shape index: {}]
  %s5 = inlined_call_operand.vmem [shape: f32[2,1,32], index: 5, kind: input, shape index: {}]
  %s6 = inlined_call_operand.vmem [shape: bf16[2,32,128], index: 6, kind: input, shape index: {}]
  %s7 = inlined_call_operand.vmem [shape: bf16[2,64,32], index: 7, kind: input, shape index: {}]
  %s8 = inlined_call_operand.vmem [shape: f32[1,32], index: 8, kind: input, shape index: {}]
  %s9 = inlined_call_operand.vmem [shape: f32[16,32], index: 9, kind: output, shape index: {}]
  %s10 = sld [smem:[#allocation0]]
  $region77: #{t5_forward.2} parent=0
    _
  %s12 = ssub.s32 1, %s10
  %s13 = scalar_select 0, %s12, %s10
  loop: start=0, step=1, limit=4
  $region2: #{t5_forward.2} parent=0 // loop_pre_header
    _
  $region3: #{t5_forward.2} parent=0 // loop_header
    %s15 = sphi 0, %s19
    %p16 = scmp.ge.s32.totalorder %s15, 4
    %s23 = sphi 0, %s23
    %s25 = sphi 0, %s23
    %s26 = sphi 0, %s25
    %s40 = sphi 0, %s26
    %s44 = sphi 0, %s44
    %s46 = sphi 0, %s44
    %s47 = sphi 0, %s46
    %s61 = sphi 0, %s47
    %s67 = sphi 0, %s69
    %s70 = sphi 0, %s67
    %s71 = sphi 0, %s70
    %s87 = sphi 0, %s71
    %s93 = sphi 0, %s95
    %s96 = sphi 0, %s93
    %s97 = sphi 0, %s96
    %s113 = sphi 0, %s97
    %s119 = sphi 0, %s121
    %s122 = sphi 0, %s119
    %s123 = sphi 0, %s122
    %s139 = sphi 0, %s123
    %s145 = sphi 0, %s147
    %s148 = sphi 0, %s145
    %s149 = sphi 0, %s148
    %s165 = sphi 0, %s149
    %s171 = sphi 0, %s173
    %s174 = sphi 0, %s171
    %s175 = sphi 0, %s174
    %s191 = sphi 0, %s175
    %s197 = sphi 0, %s199
    %s200 = sphi 0, %s197
    %s201 = sphi 0, %s200
    %s217 = sphi 0, %s201
    %s221 = sphi 0, %s221
    %s223 = sphi 0, %s221
    %s224 = sphi 0, %s223
    %s238 = sphi 0, %s224
    %s242 = sphi 0, %s242
    %s244 = sphi 0, %s242
    %s245 = sphi 0, %s244
    %s259 = sphi 0, %s245
  $region4: #{t5_forward.2} parent=0 // loop_header_branch
    %18 = sbr.rel (%p16) target = $region8
  $region5: #{t5_forward.2} parent=0 // loop_body
    %s20 = ssub.s32 %s15, 1
    %s21 = ssub.s32 %s15, 2
    %s22 = sadd.s32 %s15, 1
    %s24 = sadd.s32 %s23, 1
    %p27 = scmp.eq.s32.totalorder %s15, 1
    %p28 = scmp.ne.s32.totalorder %s23, %s25
    %p29 = scmp.eq.s32.totalorder %s15, 0
    %p30 = por %p28, %p29
    %p31 = scmp.ne.s32.totalorder %s23, %s25
    %p32 = scmp.eq.s32.totalorder %s20, 1
    %p33 = por %p31, %p32
    %p34 = scmp.ne.s32.totalorder %s25, %s26
    %p35 = scmp.eq.s32.totalorder %s20, 0
    %p36 = por %p34, %p35
    %p37 = scmp.ne.s32.totalorder %s25, %s26
    %p38 = scmp.eq.s32.totalorder %s21, 1
    %p39 = por %p37, %p38
    %p41 = scmp.ne.s32.totalorder %s26, %s40
    %p42 = scmp.eq.s32.totalorder %s21, 0
    %p43 = por %p41, %p42
    %s45 = sadd.s32 %s44, 1
    %p48 = scmp.eq.s32.totalorder %s15, 1
    %p49 = scmp.ne.s32.totalorder %s44, %s46
    %p50 = scmp.eq.s32.totalorder %s15, 0
    %p51 = por %p49, %p50
    %p52 = scmp.ne.s32.totalorder %s44, %s46
    %p53 = scmp.eq.s32.totalorder %s20, 1
    %p54 = por %p52, %p53
    %p55 = scmp.ne.s32.totalorder %s46, %s47
    %p56 = scmp.eq.s32.totalorder %s20, 0
    %p57 = por %p55, %p56
    %p58 = scmp.ne.s32.totalorder %s46, %s47
    %p59 = scmp.eq.s32.totalorder %s21, 1
    %p60 = por %p58, %p59
    %p62 = scmp.ne.s32.totalorder %s47, %s61
    %p63 = scmp.eq.s32.totalorder %s21, 0
    %p64 = por %p62, %p63
    %s65 = ssub.s32 %s15, %s22
    %p66 = scmp.eq.s32.totalorder %s65, 0
    %s68 = sadd.s32 %s67, 1
    %s69 = scalar_select %p66, %s67, %s68
    %p72 = pneg %p66
    %p73 = scmp.eq.s32.totalorder %s15, 1
    %p74 = por %p72, %p73
    %p75 = scmp.ne.s32.totalorder %s67, %s70
    %p76 = scmp.eq.s32.totalorder %s15, 0
    %p77 = por %p75, %p76
    %p78 = scmp.ne.s32.totalorder %s67, %s70
    %p79 = scmp.eq.s32.totalorder %s20, 1
    %p80 = por %p78, %p79
    %p81 = scmp.ne.s32.totalorder %s70, %s71
    %p82 = scmp.eq.s32.totalorder %s20, 0
    %p83 = por %p81, %p82
    %p84 = scmp.ne.s32.totalorder %s70, %s71
    %p85 = scmp.eq.s32.totalorder %s21, 1
    %p86 = por %p84, %p85
    %p88 = scmp.ne.s32.totalorder %s71, %s87
    %p89 = scmp.eq.s32.totalorder %s21, 0
    %p90 = por %p88, %p89
    %s91 = ssub.s32 %s15, %s22
    %p92 = scmp.eq.s32.totalorder %s91, 0
    %s94 = sadd.s32 %s93, 1
    %s95 = scalar_select %p92, %s93, %s94
    %p98 = pneg %p92
    %p99 = scmp.eq.s32.totalorder %s15, 1
    %p100 = por %p98, %p99
    %p101 = scmp.ne.s32.totalorder %s93, %s96
    %p102 = scmp.eq.s32.totalorder %s15, 0
    %p103 = por %p101, %p102
    %p104 = scmp.ne.s32.totalorder %s93, %s96
    %p105 = scmp.eq.s32.totalorder %s20, 1
    %p106 = por %p104, %p105
    %p107 = scmp.ne.s32.totalorder %s96, %s97
    %p108 = scmp.eq.s32.totalorder %s20, 0
    %p109 = por %p107, %p108
    %p110 = scmp.ne.s32.totalorder %s96, %s97
    %p111 = scmp.eq.s32.totalorder %s21, 1
    %p112 = por %p110, %p111
    %p114 = scmp.ne.s32.totalorder %s97, %s113
    %p115 = scmp.eq.s32.totalorder %s21, 0
    %p116 = por %p114, %p115
    %s117 = ssub.s32 %s15, %s22
    %p118 = scmp.eq.s32.totalorder %s117, 0
    %s120 = sadd.s32 %s119, 1
    %s121 = scalar_select %p118, %s119, %s120
    %p124 = pneg %p118
    %p125 = scmp.eq.s32.totalorder %s15, 1
    %p126 = por %p124, %p125
    %p127 = scmp.ne.s32.totalorder %s119, %s122
    %p128 = scmp.eq.s32.totalorder %s15, 0
    %p129 = por %p127, %p128
    %p130 = scmp.ne.s32.totalorder %s119, %s122
    %p131 = scmp.eq.s32.totalorder %s20, 1
    %p132 = por %p130, %p131
    %p133 = scmp.ne.s32.totalorder %s122, %s123
    %p134 = scmp.eq.s32.totalorder %s20, 0
    %p135 = por %p133, %p134
    %p136 = scmp.ne.s32.totalorder %s122, %s123
    %p137 = scmp.eq.s32.totalorder %s21, 1
    %p138 = por %p136, %p137
    %p140 = scmp.ne.s32.totalorder %s123, %s139
    %p141 = scmp.eq.s32.totalorder %s21, 0
    %p142 = por %p140, %p141
    %s143 = ssub.s32 %s15, %s22
    %p144 = scmp.eq.s32.totalorder %s143, 0
    %s146 = sadd.s32 %s145, 1
    %s147 = scalar_select %p144, %s145, %s146
    %p150 = pneg %p144
    %p151 = scmp.eq.s32.totalorder %s15, 1
    %p152 = por %p150, %p151
    %p153 = scmp.ne.s32.totalorder %s145, %s148
    %p154 = scmp.eq.s32.totalorder %s15, 0
    %p155 = por %p153, %p154
    %p156 = scmp.ne.s32.totalorder %s145, %s148
    %p157 = scmp.eq.s32.totalorder %s20, 1
    %p158 = por %p156, %p157
    %p159 = scmp.ne.s32.totalorder %s148, %s149
    %p160 = scmp.eq.s32.totalorder %s20, 0
    %p161 = por %p159, %p160
    %p162 = scmp.ne.s32.totalorder %s148, %s149
    %p163 = scmp.eq.s32.totalorder %s21, 1
    %p164 = por %p162, %p163
    %p166 = scmp.ne.s32.totalorder %s149, %s165
    %p167 = scmp.eq.s32.totalorder %s21, 0
    %p168 = por %p166, %p167
    %s169 = ssub.s32 %s15, %s22
    %p170 = scmp.eq.s32.totalorder %s169, 0
    %s172 = sadd.s32 %s171, 1
    %s173 = scalar_select %p170, %s171, %s172
    %p176 = pneg %p170
    %p177 = scmp.eq.s32.totalorder %s15, 1
    %p178 = por %p176, %p177
    %p179 = scmp.ne.s32.totalorder %s171, %s174
    %p180 = scmp.eq.s32.totalorder %s15, 0
    %p181 = por %p179, %p180
    %p182 = scmp.ne.s32.totalorder %s171, %s174
    %p183 = scmp.eq.s32.totalorder %s20, 1
    %p184 = por %p182, %p183
    %p185 = scmp.ne.s32.totalorder %s174, %s175
    %p186 = scmp.eq.s32.totalorder %s20, 0
    %p187 = por %p185, %p186
    %p188 = scmp.ne.s32.totalorder %s174, %s175
    %p189 = scmp.eq.s32.totalorder %s21, 1
    %p190 = por %p188, %p189
    %p192 = scmp.ne.s32.totalorder %s175, %s191
    %p193 = scmp.eq.s32.totalorder %s21, 0
    %p194 = por %p192, %p193
    %s195 = ssub.s32 %s15, %s22
    %p196 = scmp.eq.s32.totalorder %s195, 0
    %s198 = sadd.s32 %s197, 1
    %s199 = scalar_select %p196, %s197, %s198
    %p202 = pneg %p196
    %p203 = scmp.eq.s32.totalorder %s15, 1
    %p204 = por %p202, %p203
    %p205 = scmp.ne.s32.totalorder %s197, %s200
    %p206 = scmp.eq.s32.totalorder %s15, 0
    %p207 = por %p205, %p206
    %p208 = scmp.ne.s32.totalorder %s197, %s200
    %p209 = scmp.eq.s32.totalorder %s20, 1
    %p210 = por %p208, %p209
    %p211 = scmp.ne.s32.totalorder %s200, %s201
    %p212 = scmp.eq.s32.totalorder %s20, 0
    %p213 = por %p211, %p212
    %p214 = scmp.ne.s32.totalorder %s200, %s201
    %p215 = scmp.eq.s32.totalorder %s21, 1
    %p216 = por %p214, %p215
    %p218 = scmp.ne.s32.totalorder %s201, %s217
    %p219 = scmp.eq.s32.totalorder %s21, 0
    %p220 = por %p218, %p219
    %s222 = sadd.s32 %s221, 1
    %p225 = scmp.eq.s32.totalorder %s15, 1
    %p226 = scmp.ne.s32.totalorder %s221, %s223
    %p227 = scmp.eq.s32.totalorder %s15, 0
    %p228 = por %p226, %p227
    %p229 = scmp.ne.s32.totalorder %s221, %s223
    %p230 = scmp.eq.s32.totalorder %s20, 1
    %p231 = por %p229, %p230
    %p232 = scmp.ne.s32.totalorder %s223, %s224
    %p233 = scmp.eq.s32.totalorder %s20, 0
    %p234 = por %p232, %p233
    %p235 = scmp.ne.s32.totalorder %s223, %s224
    %p236 = scmp.eq.s32.totalorder %s21, 1
    %p237 = por %p235, %p236
    %p239 = scmp.ne.s32.totalorder %s224, %s238
    %p240 = scmp.eq.s32.totalorder %s21, 0
    %p241 = por %p239, %p240
    %s243 = sadd.s32 %s242, 1
    %p246 = scmp.eq.s32.totalorder %s15, 1
    %p247 = scmp.ne.s32.totalorder %s242, %s244
    %p248 = scmp.eq.s32.totalorder %s15, 0
    %p249 = por %p247, %p248
    %p250 = scmp.ne.s32.totalorder %s242, %s244
    %p251 = scmp.eq.s32.totalorder %s20, 1
    %p252 = por %p250, %p251
    %p253 = scmp.ne.s32.totalorder %s244, %s245
    %p254 = scmp.eq.s32.totalorder %s20, 0
    %p255 = por %p253, %p254
    %p256 = scmp.ne.s32.totalorder %s244, %s245
    %p257 = scmp.eq.s32.totalorder %s21, 1
    %p258 = por %p256, %p257
    %p260 = scmp.ne.s32.totalorder %s245, %s259
    %p261 = scmp.eq.s32.totalorder %s21, 0
    %p262 = por %p260, %p261
    %p263 = scmp.le.s32.totalorder 1, %s15
    %p264 = scmp.lt.s32.totalorder %s15, 3
    %p265 = pnand %p263, %p264
    %p266 = pneg %p265
    // Predicated region
    $region9: #{t5_forward.2} parent=5 // pred_check
      _
    $region10: #{t5_forward.2} parent=5 // pred_check_branch
      %268 = sbr.rel (%p265) target = $region12
    $region11: #{t5_forward.2} parent=5 // pred_region
      %s269 = ssub.s32 %s15, 1
      // Predicated region
      $region13: #{t5_forward.2} parent=11 // pred_check
        %p270 = pneg %p36
      $region14: #{t5_forward.2} parent=11 // pred_check_branch
        %272 = sbr.rel (%p270) target = $region16
      $region15: #{t5_forward.2} parent=11 // pred_region
        _
      $region16: #{t5_forward.2} parent=11 // pred_fallthru
        _
      // Predicated region
      $region17: #{t5_forward.2} parent=11 // pred_check
        %p273 = pneg %p57
      $region18: #{t5_forward.2} parent=11 // pred_check_branch
        %275 = sbr.rel (%p273) target = $region20
      $region19: #{t5_forward.2} parent=11 // pred_region
        _
      $region20: #{t5_forward.2} parent=11 // pred_fallthru
        _
      // Predicated region
      $region21: #{t5_forward.2} parent=11 // pred_check
        %p276 = pneg %p234
      $region22: #{t5_forward.2} parent=11 // pred_check_branch
        %278 = sbr.rel (%p276) target = $region24
      $region23: #{t5_forward.2} parent=11 // pred_region
        _
      $region24: #{t5_forward.2} parent=11 // pred_fallthru
        _
    $region12: #{t5_forward.2} parent=5 // pred_fallthru
      _
    %p279 = scmp.lt.s32.totalorder %s15, 2
    // Predicated region
    $region25: #{t5_forward.2} parent=5 // pred_check
      %p280 = pneg %p279
    $region26: #{t5_forward.2} parent=5 // pred_check_branch
      %282 = sbr.rel (%p280) target = $region28
    $region27: #{t5_forward.2} parent=5 // pred_region
      // Predicated region
      $region29: #{t5_forward.2} parent=27 // pred_check
        %p283 = pneg %p77
      $region30: #{t5_forward.2} parent=27 // pred_check_branch
        %285 = sbr.rel (%p283) target = $region32
      $region31: #{t5_forward.2} parent=27 // pred_region
        %p286 = scmp.lt.s32.totalorder %s15, 1
        %s287 = scalar_select %p286, %s15, 1
        %s288 = scalar_lea.vmem %s2, %s287
      $region32: #{t5_forward.2} parent=27 // pred_fallthru
        _
      // Predicated region
      $region33: #{t5_forward.2} parent=27 // pred_check
        %p289 = pneg %p103
      $region34: #{t5_forward.2} parent=27 // pred_check_branch
        %291 = sbr.rel (%p289) target = $region36
      $region35: #{t5_forward.2} parent=27 // pred_region
        %p292 = scmp.lt.s32.totalorder %s15, 1
        %s293 = scalar_select %p292, %s15, 1
        %s294 = smul.addr %s293, 4
        %s295 = smul.addr %s294, 4
        %s296 = scalar_lea.vmem %s3, %s295
      $region36: #{t5_forward.2} parent=27 // pred_fallthru
        _
      // Predicated region
      $region37: #{t5_forward.2} parent=27 // pred_check
        %p297 = pneg %p129
      $region38: #{t5_forward.2} parent=27 // pred_check_branch
        %299 = sbr.rel (%p297) target = $region40
      $region39: #{t5_forward.2} parent=27 // pred_region
        %p300 = scmp.lt.s32.totalorder %s15, 1
        %s301 = scalar_select %p300, %s15, 1
        %s302 = smul.addr %s301, 4
        %s303 = smul.addr %s302, 4
        %s304 = scalar_lea.vmem %s4, %s303
      $region40: #{t5_forward.2} parent=27 // pred_fallthru
        _
      // Predicated region
      $region41: #{t5_forward.2} parent=27 // pred_check
        %p305 = pneg %p155
      $region42: #{t5_forward.2} parent=27 // pred_check_branch
        %307 = sbr.rel (%p305) target = $region44
      $region43: #{t5_forward.2} parent=27 // pred_region
        %p308 = scmp.lt.s32.totalorder %s15, 1
        %s309 = scalar_select %p308, %s15, 1
        %s310 = scalar_lea.vmem %s5, %s309
      $region44: #{t5_forward.2} parent=27 // pred_fallthru
        _
      // Predicated region
      $region45: #{t5_forward.2} parent=27 // pred_check
        %p311 = pneg %p181
      $region46: #{t5_forward.2} parent=27 // pred_check_branch
        %313 = sbr.rel (%p311) target = $region48
      $region47: #{t5_forward.2} parent=27 // pred_region
        %p314 = scmp.lt.s32.totalorder %s15, 1
        %s315 = scalar_select %p314, %s15, 1
        %s316 = smul.addr %s315, 4
        %s317 = smul.addr %s316, 4
        %s318 = scalar_lea.vmem %s6, %s317
      $region48: #{t5_forward.2} parent=27 // pred_fallthru
        _
      // Predicated region
      $region49: #{t5_forward.2} parent=27 // pred_check
        %p319 = pneg %p207
      $region50: #{t5_forward.2} parent=27 // pred_check_branch
        %321 = sbr.rel (%p319) target = $region52
      $region51: #{t5_forward.2} parent=27 // pred_region
        %p322 = scmp.lt.s32.totalorder %s15, 1
        %s323 = scalar_select %p322, %s15, 1
        %s324 = smul.addr %s323, 8
        %s325 = smul.addr %s324, 4
        %s326 = scalar_lea.vmem %s7, %s325
      $region52: #{t5_forward.2} parent=27 // pred_fallthru
        _
    $region28: #{t5_forward.2} parent=5 // pred_fallthru
      _
    %p327 = scmp.le.s32.totalorder 1, %s15
    %p328 = scmp.lt.s32.totalorder %s15, 3
    %p329 = pnand %p327, %p328
    %p330 = pneg %p329
    // Predicated region
    $region53: #{t5_forward.2} parent=5 // pred_check
      _
    $region54: #{t5_forward.2} parent=5 // pred_check_branch
      %332 = sbr.rel (%p329) target = $region56
    $region55: #{t5_forward.2} parent=5 // pred_region
      %s333 = ssub.s32 %s15, 1
      %p334 = pneg %p36
      %p335 = pneg %p33
      %p336 = pneg %p57
      %p337 = pneg %p54
      %p338 = scmp.lt.s32.totalorder %s20, 1
      %s339 = scalar_select %p338, %s20, 1
      %s340 = scalar_lea.vmem %s2, %s339
      %p341 = pneg %p83
      %p342 = pneg %p80
      %p343 = scmp.lt.s32.totalorder %s20, 1
      %s344 = scalar_select %p343, %s20, 1
      %s345 = smul.addr %s344, 4
      %s346 = smul.addr %s345, 4
      %s347 = scalar_lea.vmem %s3, %s346
      %p348 = pneg %p109
      %p349 = pneg %p106
      %p350 = scmp.lt.s32.totalorder %s20, 1
      %s351 = scalar_select %p350, %s20, 1
      %s352 = smul.addr %s351, 4
      %s353 = smul.addr %s352, 4
      %s354 = scalar_lea.vmem %s4, %s353
      %p355 = pneg %p135
      %p356 = pneg %p132
      %p357 = scmp.lt.s32.totalorder %s20, 1
      %s358 = scalar_select %p357, %s20, 1
      %s359 = scalar_lea.vmem %s5, %s358
      %p360 = pneg %p161
      %p361 = pneg %p158
      %p362 = scmp.lt.s32.totalorder %s20, 1
      %s363 = scalar_select %p362, %s20, 1
      %s364 = smul.addr %s363, 4
      %s365 = smul.addr %s364, 4
      %s366 = scalar_lea.vmem %s6, %s365
      %p367 = pneg %p187
      %p368 = pneg %p184
      %p369 = scmp.lt.s32.totalorder %s20, 1
      %s370 = scalar_select %p369, %s20, 1
      %s371 = smul.addr %s370, 8
      %s372 = smul.addr %s371, 4
      %s373 = scalar_lea.vmem %s7, %s372
      %p374 = pneg %p213
      %p375 = pneg %p210
      %p376 = pneg %p234
      %p377 = pneg %p231
      %p378 = pneg %p255
      %p379 = pneg %p252
      %p380 = scmp.lt.s32.totalorder %s20, 1
      %s381 = scalar_select %p380, %s20, 1
      %s382 = scalar_lea.vmem %s2, %s381
      %p383 = scmp.lt.s32.totalorder %s20, 1
      %s384 = scalar_select %p383, %s20, 1
      %s385 = smul.addr %s384, 4
      %s386 = smul.addr %s385, 4
      %s387 = scalar_lea.vmem %s3, %s386
      %p388 = scmp.lt.s32.totalorder %s20, 1
      %s389 = scalar_select %p388, %s20, 1
      %s390 = smul.addr %s389, 4
      %s391 = smul.addr %s390, 4
      %s392 = scalar_lea.vmem %s4, %s391
      %p393 = scmp.lt.s32.totalorder %s20, 1
      %s394 = scalar_select %p393, %s20, 1
      %s395 = scalar_lea.vmem %s5, %s394
      %p396 = scmp.lt.s32.totalorder %s20, 1
      %s397 = scalar_select %p396, %s20, 1
      %s398 = smul.addr %s397, 4
      %s399 = smul.addr %s398, 4
      %s400 = scalar_lea.vmem %s6, %s399
      %p401 = scmp.lt.s32.totalorder %s20, 1
      %s402 = scalar_select %p401, %s20, 1
      %s403 = smul.addr %s402, 8
      %s404 = smul.addr %s403, 4
      %s405 = scalar_lea.vmem %s7, %s404
      %p407 = scmp.eq.s32.totalorder %s20, 0
      // Predicated region
      $region57: #{t5_forward.2} parent=55 // pred_check
        %p408 = pneg %p407
      $region58: #{t5_forward.2} parent=55 // pred_check_branch
        %410 = sbr.rel (%p408) target = $region60
      $region59: #{t5_forward.2} parent=55 // pred_region
        %v411 = vld [vmem:[%s0] sm:$0xff]
        %v412 = vld [vmem:[%s0 + $0x8] sm:$0xff]
        %vm413 = vcmask 261120
        %414 = vst.msk [vmem:[#allocation2] sm:$0xff] %vm413, %v411
        %415 = vst.msk [vmem:[#allocation2 + $0x8] sm:$0xff] %vm413, %v412
      $region60: #{t5_forward.2} parent=55 // pred_fallthru
        _
      %v416 = vld [vmem:[#allocation2] sm:$0xff]
      %v417 = vld [vmem:[#allocation2 + $0x8] sm:$0xff]
      %v418 = vld [vmem:[%s1] sm:$0xff]
      %v419 = vld [vmem:[%s1 + $0x8] sm:$0xff]
      %v420 = vld [vmem:[%s1 + $0x10] sm:$0xff]
      %v421 = vld [vmem:[%s1 + $0x18] sm:$0xff]
      %v422 = vld [vmem:[%s1 + $0x20] sm:$0xff]
      %v423 = vld [vmem:[%s1 + $0x28] sm:$0xff]
      %v424 = vld [vmem:[%s1 + $0x30] sm:$0xff]
      %v425 = vld [vmem:[%s1 + $0x38] sm:$0xff]
      %v426 = vld [vmem:[%s382] sm:$0x1]
      %v427 = vmul.f32 %v416, %v416
      %v428 = vmul.f32 %v417, %v417
      %vm429 = vcmask 261120
      %v430 = vsel %vm429, %v427, 0.0
      %431 = vadd.xlane.f32.xlu0 %v430
      %v432 = vpop.xlane.xlu0 %431
      %v433 = vsel %vm429, %v428, 0.0
      %434 = vadd.xlane.f32.xlu0 %v433
      %v435 = vpop.xlane.xlu0 %434
      %v436 = vrcp.pop 32.0
      %v437 = vmul.f32 %v432, %v436
      %v438 = vmul.f32 %v435, %v436
      %v439 = vadd.f32 %v437, 1e-06
      %v440 = vadd.f32 %v438, 1e-06
      %v441 = vrsqrt.pop %v439
      %v442 = vrsqrt.pop %v440
      %v443 = vmul.f32 %v416, %v441
      %v444 = vmul.f32 %v417, %v442
      %v446 = vlaneseq
      %v447 = vshrl.u32 %v446, 7
      %v448 = vsub.s32 0, %v447
      %v449 = vrot.slane %v426, %v448
      %v451 = vmul.f32 %v443, %v449
      %v452 = vmul.f32 %v444, %v449
      %v453 = vld [vmem:[%s387] sm:$0xf]
      %v454 = vld [vmem:[%s387 + $0x4] sm:$0xf]
      %v455 = vld [vmem:[%s387 + $0x8] sm:$0xf]
      %v456 = vld [vmem:[%s387 + $0xc] sm:$0xf]
      %v457 = vpack.c.bf16 %v452, %v451
      %v462 = vunpack.c.l.b16 %v453
      %v463 = vunpack.c.l.b16 %v454
      %v464 = vunpack.c.l.b16 %v455
      %v465 = vunpack.c.l.b16 %v456
      %v466 = vpack.c.b16 %v463, %v462
      %v467 = vpack.c.b16 %v465, %v464
      %v471 = vsel %vm429, %v457, 0
      %473 = vmatprep.subr.bf16.mxu0 0
      %474 = vmatpush1.bf16.msra.mxu0 %v466
      %475 = vmatprep.subr.bf16.mxu0 0
      %476 = vmatpush1.bf16.msra.mxu0 %v467
      %477 = vmatprep.subr.bf16.mxu0 0
      %478 = vmatpush1.bf16.msra.mxu0 0
      %479 = vmatprep.subr.bf16.mxu0 0
      %480 = vmatpush1.bf16.msra.mxu0 0
      %481 = vmatprep.subr.bf16.mxu0 0
      %482 = vmatpush1.bf16.msra.mxu0 0
      %483 = vmatprep.subr.bf16.mxu0 0
      %484 = vmatpush1.bf16.msra.mxu0 0
      %485 = vmatprep.subr.bf16.mxu0 0
      %486 = vmatpush1.bf16.msra.mxu0 0
      %487 = vmatprep.subr.bf16.mxu0 0
      %488 = vmatpush1.bf16.msra.mxu0 0
      %489 = vmatprep.subr.bf16.mxu0 0
      %490 = vmatpush1.bf16.msra.mxu0 0
      %491 = vmatprep.subr.bf16.mxu0 0
      %492 = vmatpush1.bf16.msra.mxu0 0
      %493 = vmatprep.subr.bf16.mxu0 0
      %494 = vmatpush1.bf16.msra.mxu0 0
      %495 = vmatprep.subr.bf16.mxu0 0
      %496 = vmatpush1.bf16.msra.mxu0 0
      %497 = vmatprep.subr.bf16.mxu0 0
      %498 = vmatpush1.bf16.msra.mxu0 0
      %499 = vmatprep.subr.bf16.mxu0 0
      %500 = vmatpush1.bf16.msra.mxu0 0
      %501 = vmatprep.subr.bf16.mxu0 0
      %502 = vmatpush1.bf16.msra.mxu0 0
      %503 = vmatprep.subr.bf16.mxu0 0
      %504 = vmatpush1.bf16.msra.mxu0 0
      %505 = vmatprep.mubr.bf16.mxu0 0
      %506 = vmatmul.mubr.bf16.gmra.mrb[0].mxu0 %v471
      %v507 = vpop.f32.mrb[0].mxu0
      %v508 = vadd.f32 0.0, %v507
      %v509 = vpop.f32.mrb[0].mxu0
      %v510 = vpop.f32.mrb[0].mxu0
      %v511 = vadd.f32 0.0, %v510
      %v512 = vpop.f32.mrb[0].mxu0
      %513 = vdwg.mxu0
      %v514 = vpack.c.bf16 %v511, %v508
      %516 = vrot.lane.b32.xlu0 %v514, 96
      %v517 = vpop.permute.xlu0 %516
      %vm518 = vcmask 64512
      %v520 = vsel %vm518, %v514, 0
      %v523 = vsel %vm518, %v517, 0
      %525 = vmatprep.subr.bf16.mxu0 0
      %526 = vmatpush1.bf16.xpose.msra.mxu0 %v523
      %527 = vmatprep.subr.bf16.mxu0 0
      %528 = vmatpush1.bf16.xpose.msra.mxu0 0
      %529 = vmatprep.subr.bf16.mxu0 0
      %530 = vmatpush1.bf16.xpose.msra.mxu0 0
      %531 = vmatprep.subr.bf16.mxu0 0
      %532 = vmatpush1.bf16.xpose.msra.mxu0 0
      %533 = vmatprep.subr.bf16.mxu0 0
      %534 = vmatpush1.bf16.xpose.msra.mxu0 0
      %535 = vmatprep.subr.bf16.mxu0 0
      %536 = vmatpush1.bf16.xpose.msra.mxu0 0
      %537 = vmatprep.subr.bf16.mxu0 0
      %538 = vmatpush1.bf16.xpose.msra.mxu0 0
      %539 = vmatprep.subr.bf16.mxu0 0
      %540 = vmatpush1.bf16.xpose.msra.mxu0 0
      %541 = vmatprep.subr.bf16.mxu0 0
      %542 = vmatpush1.bf16.xpose.msra.mxu0 0
      %543 = vmatprep.subr.bf16.mxu0 0
      %544 = vmatpush1.bf16.xpose.msra.mxu0 0
      %545 = vmatprep.subr.bf16.mxu0 0
      %546 = vmatpush1.bf16.xpose.msra.mxu0 0
      %547 = vmatprep.subr.bf16.mxu0 0
      %548 = vmatpush1.bf16.xpose.msra.mxu0 0
      %549 = vmatprep.subr.bf16.mxu0 0
      %550 = vmatpush1.bf16.xpose.msra.mxu0 0
      %551 = vmatprep.subr.bf16.mxu0 0
      %552 = vmatpush1.bf16.xpose.msra.mxu0 0
      %553 = vmatprep.subr.bf16.mxu0 0
      %554 = vmatpush1.bf16.xpose.msra.mxu0 0
      %555 = vmatprep.subr.bf16.mxu0 0
      %556 = vmatpush1.bf16.xpose.msra.mxu0 0
      %557 = vmatprep.mubr.bf16.mxu0 0
      %558 = vmatmul.mubr.bf16.gmra.mrb[0].mxu0 %v520
      %v559 = vpop.f32.mrb[0].mxu0
      %v560 = vadd.f32 %v418, %v559
      %v561 = vpop.f32.mrb[0].mxu0
      %v562 = vpop.f32.mrb[0].mxu0
      %v563 = vadd.f32 %v419, %v562
      %v564 = vpop.f32.mrb[0].mxu0
      %565 = vdwg.mxu0
      %vm566 = vcmask 130048
      %v567 = vsel %vm566, %v560, -inf
      %568 = vmax.xlane.f32.xlu0 %v567
      %v569 = vpop.xlane.xlu0 %568
      %v570 = vsel %vm566, %v563, -inf
      %571 = vmax.xlane.f32.xlu0 %v570
      %v572 = vpop.xlane.xlu0 %571
      %v573 = vsub.f32 %v560, %v569
      %v574 = vsub.f32 %v563, %v572
      %v575 = vmul.f32 %v573, 1.442695
      %v576 = vpow.pop %v575
      %v577 = vmul.f32 %v574, 1.442695
      %v578 = vpow.pop %v577
      %v579 = vsel %vm566, %v576, 0.0
      %580 = vadd.xlane.f32.xlu0 %v579
      %v581 = vpop.xlane.xlu0 %580
      %v582 = vsel %vm566, %v578, 0.0
      %583 = vadd.xlane.f32.xlu0 %v582
      %v584 = vpop.xlane.xlu0 %583
      %v585 = vrcp.pop %v581
      %v586 = vrcp.pop %v584
      %v587 = vmul.f32 %v576, %v585
      %v588 = vmul.f32 %v578, %v586
      %v589 = vpack.c.bf16 %v588, %v587
      %590 = vrot.lane.b32.xlu0 %v514, 64
      %v591 = vpop.permute.xlu0 %590
      %v594 = vsel %vm566, %v589, 0
      %596 = vmatprep.subr.bf16.mxu0 0
      %597 = vmatpush1.bf16.msra.mxu0 %v591
      %598 = vmatprep.subr.bf16.mxu0 0
      %599 = vmatpush1.bf16.msra.mxu0 0
      %600 = vmatprep.subr.bf16.mxu0 0
      %601 = vmatpush1.bf16.msra.mxu0 0
      %602 = vmatprep.subr.bf16.mxu0 0
      %603 = vmatpush1.bf16.msra.mxu0 0
      %604 = vmatprep.subr.bf16.mxu0 0
      %605 = vmatpush1.bf16.msra.mxu0 0
      %606 = vmatprep.subr.bf16.mxu0 0
      %607 = vmatpush1.bf16.msra.mxu0 0
      %608 = vmatprep.subr.bf16.mxu0 0
      %609 = vmatpush1.bf16.msra.mxu0 0
      %610 = vmatprep.subr.bf16.mxu0 0
      %611 = vmatpush1.bf16.msra.mxu0 0
      %612 = vmatprep.subr.bf16.mxu0 0
      %613 = vmatpush1.bf16.msra.mxu0 0
      %614 = vmatprep.subr.bf16.mxu0 0
      %615 = vmatpush1.bf16.msra.mxu0 0
      %616 = vmatprep.subr.bf16.mxu0 0
      %617 = vmatpush1.bf16.msra.mxu0 0
      %618 = vmatprep.subr.bf16.mxu0 0
      %619 = vmatpush1.bf16.msra.mxu0 0
      %620 = vmatprep.subr.bf16.mxu0 0
      %621 = vmatpush1.bf16.msra.mxu0 0
      %622 = vmatprep.subr.bf16.mxu0 0
      %623 = vmatpush1.bf16.msra.mxu0 0
      %624 = vmatprep.subr.bf16.mxu0 0
      %625 = vmatpush1.bf16.msra.mxu0 0
      %626 = vmatprep.subr.bf16.mxu0 0
      %627 = vmatpush1.bf16.msra.mxu0 0
      %628 = vmatprep.mubr.bf16.mxu0 0
      %629 = vmatmul.mubr.bf16.gmra.mrb[0].mxu0 %v594
      %v630 = vpop.f32.mrb[0].mxu0
      %v631 = vadd.f32 0.0, %v630
      %v632 = vpop.f32.mrb[0].mxu0
      %v633 = vpop.f32.mrb[0].mxu0
      %v634 = vadd.f32 0.0, %v633
      %v635 = vpop.f32.mrb[0].mxu0
      %636 = vdwg.mxu0
      %v637 = vld [vmem:[%s392] sm:$0xf]
      %v638 = vpack.c.bf16 %v634, %v631
      %639 = vrot.lane.b32.xlu0 %v514, 120
      %v640 = vpop.permute.xlu0 %639
      %641 = vrot.lane.b32.xlu0 %v514, 88
      %v642 = vpop.permute.xlu0 %641
      %v644 = vsel %vm518, %v640, 0
      %v647 = vsel %vm518, %v642, 0
      %649 = vmatprep.subr.bf16.mxu0 0
      %650 = vmatpush1.bf16.xpose.msra.mxu0 %v647
      %651 = vmatprep.subr.bf16.mxu0 0
      %652 = vmatpush1.bf16.xpose.msra.mxu0 0
      %653 = vmatprep.subr.bf16.mxu0 0
      %654 = vmatpush1.bf16.xpose.msra.mxu0 0
      %655 = vmatprep.subr.bf16.mxu0 0
      %656 = vmatpush1.bf16.xpose.msra.mxu0 0
      %657 = vmatprep.subr.bf16.mxu0 0
      %658 = vmatpush1.bf16.xpose.msra.mxu0 0
      %659 = vmatprep.subr.bf16.mxu0 0
      %660 = vmatpush1.bf16.xpose.msra.mxu0 0
      %661 = vmatprep.subr.bf16.mxu0 0
      %662 = vmatpush1.bf16.xpose.msra.mxu0 0
      %663 = vmatprep.subr.bf16.mxu0 0
      %664 = vmatpush1.bf16.xpose.msra.mxu0 0
      %665 = vmatprep.subr.bf16.mxu0 0
      %666 = vmatpush1.bf16.xpose.msra.mxu0 0
      %667 = vmatprep.subr.bf16.mxu0 0
      %668 = vmatpush1.bf16.xpose.msra.mxu0 0
      %669 = vmatprep.subr.bf16.mxu0 0
      %670 = vmatpush1.bf16.xpose.msra.mxu0 0
      %671 = vmatprep.subr.bf16.mxu0 0
      %672 = vmatpush1.bf16.xpose.msra.mxu0 0
      %673 = vmatprep.subr.bf16.mxu0 0
      %674 = vmatpush1.bf16.xpose.msra.mxu0 0
      %675 = vmatprep.subr.bf16.mxu0 0
      %676 = vmatpush1.bf16.xpose.msra.mxu0 0
      %677 = vmatprep.subr.bf16.mxu0 0
      %678 = vmatpush1.bf16.xpose.msra.mxu0 0
      %679 = vmatprep.subr.bf16.mxu0 0
      %680 = vmatpush1.bf16.xpose.msra.mxu0 0
      %681 = vmatprep.mubr.bf16.mxu0 0
      %682 = vmatmul.mubr.bf16.gmra.mrb[0].mxu0 %v644
      %v683 = vpop.f32.mrb[0].mxu0
      %v684 = vadd.f32 %v420, %v683
      %v685 = vpop.f32.mrb[0].mxu0
      %v686 = vpop.f32.mrb[0].mxu0
      %v687 = vadd.f32 %v421, %v686
      %v688 = vpop.f32.mrb[0].mxu0
      %689 = vdwg.mxu0
      %v690 = vsel %vm566, %v684, -inf
      %691 = vmax.xlane.f32.xlu0 %v690
      %v692 = vpop.xlane.xlu0 %691
      %v693 = vsel %vm566, %v687, -inf
      %694 = vmax.xlane.f32.xlu0 %v693
      %v695 = vpop.xlane.xlu0 %694
      %v696 = vsub.f32 %v684, %v692
      %v697 = vsub.f32 %v687, %v695
      %v698 = vmul.f32 %v696, 1.442695
      %v699 = vpow.pop %v698
      %v700 = vmul.f32 %v697, 1.442695
      %v701 = vpow.pop %v700
      %v702 = vsel %vm566, %v699, 0.0
      %703 = vadd.xlane.f32.xlu0 %v702
      %v704 = vpop.xlane.xlu0 %703
      %v705 = vsel %vm566, %v701, 0.0
      %706 = vadd.xlane.f32.xlu0 %v705
      %v707 = vpop.xlane.xlu0 %706
      %v708 = vrcp.pop %v704
      %v709 = vrcp.pop %v707
      %v710 = vmul.f32 %v699, %v708
      %v711 = vmul.f32 %v701, %v709
      %v712 = vpack.c.bf16 %v711, %v710
      %713 = vrot.lane.b32.xlu0 %v514, 56
      %v714 = vpop.permute.xlu0 %713
      %v717 = vsel %vm566, %v712, 0
      %719 = vmatprep.subr.bf16.mxu0 0
      %720 = vmatpush1.bf16.msra.mxu0 %v714
      %721 = vmatprep.subr.bf16.mxu0 0
      %722 = vmatpush1.bf16.msra.mxu0 0
      %723 = vmatprep.subr.bf16.mxu0 0
      %724 = vmatpush1.bf16.msra.mxu0 0
      %725 = vmatprep.subr.bf16.mxu0 0
      %726 = vmatpush1.bf16.msra.mxu0 0
      %727 = vmatprep.subr.bf16.mxu0 0
      %728 = vmatpush1.bf16.msra.mxu0 0
      %729 = vmatprep.subr.bf16.mxu0 0
      %730 = vmatpush1.bf16.msra.mxu0 0
      %731 = vmatprep.subr.bf16.mxu0 0
      %732 = vmatpush1.bf16.msra.mxu0 0
      %733 = vmatprep.subr.bf16.mxu0 0
      %734 = vmatpush1.bf16.msra.mxu0 0
      %735 = vmatprep.subr.bf16.mxu0 0
      %736 = vmatpush1.bf16.msra.mxu0 0
      %737 = vmatprep.subr.bf16.mxu0 0
      %738 = vmatpush1.bf16.msra.mxu0 0
      %739 = vmatprep.subr.bf16.mxu0 0
      %740 = vmatpush1.bf16.msra.mxu0 0
      %741 = vmatprep.subr.bf16.mxu0 0
      %742 = vmatpush1.bf16.msra.mxu0 0
      %743 = vmatprep.subr.bf16.mxu0 0
      %744 = vmatpush1.bf16.msra.mxu0 0
      %745 = vmatprep.subr.bf16.mxu0 0
      %746 = vmatpush1.bf16.msra.mxu0 0
      %747 = vmatprep.subr.bf16.mxu0 0
      %748 = vmatpush1.bf16.msra.mxu0 0
      %749 = vmatprep.subr.bf16.mxu0 0
      %750 = vmatpush1.bf16.msra.mxu0 0
      %751 = vmatprep.mubr.bf16.mxu0 0
      %752 = vmatmul.mubr.bf16.gmra.mrb[0].mxu0 %v717
      %v753 = vpop.f32.mrb[0].mxu0
      %v754 = vadd.f32 0.0, %v753
      %v755 = vpop.f32.mrb[0].mxu0
      %v756 = vpop.f32.mrb[0].mxu0
      %v757 = vadd.f32 0.0, %v756
      %v758 = vpop.f32.mrb[0].mxu0
      %759 = vdwg.mxu0
      %s760 = scalar_lea.vmem %s392, 4
      %v761 = vld [vmem:[%s760] sm:$0xf]
      %v762 = vpack.c.bf16 %v757, %v754
      %v764 = vsel %vm518, %v762, 0
      %vm766 = vcmask 1043456
      %v768 = vsel %vm766, %v761, 0
      %770 = vmatprep.subr.bf16.mxu0 0
      %771 = vmatpush1.bf16.msra.mxu0 %v768
      %772 = vmatprep.subr.bf16.mxu0 0
      %773 = vmatpush1.bf16.msra.mxu0 0
      %774 = vmatprep.subr.bf16.mxu0 0
      %775 = vmatpush1.bf16.msra.mxu0 0
      %776 = vmatprep.subr.bf16.mxu0 0
      %777 = vmatpush1.bf16.msra.mxu0 0
      %778 = vmatprep.subr.bf16.mxu0 0
      %779 = vmatpush1.bf16.msra.mxu0 0
      %780 = vmatprep.subr.bf16.mxu0 0
      %781 = vmatpush1.bf16.msra.mxu0 0
      %782 = vmatprep.subr.bf16.mxu0 0
      %783 = vmatpush1.bf16.msra.mxu0 0
      %784 = vmatprep.subr.bf16.mxu0 0
      %785 = vmatpush1.bf16.msra.mxu0 0
      %786 = vmatprep.subr.bf16.mxu0 0
      %787 = vmatpush1.bf16.msra.mxu0 0
      %788 = vmatprep.subr.bf16.mxu0 0
      %789 = vmatpush1.bf16.msra.mxu0 0
      %790 = vmatprep.subr.bf16.mxu0 0
      %791 = vmatpush1.bf16.msra.mxu0 0
      %792 = vmatprep.subr.bf16.mxu0 0
      %793 = vmatpush1.bf16.msra.mxu0 0
      %794 = vmatprep.subr.bf16.mxu0 0
      %795 = vmatpush1.bf16.msra.mxu0 0
      %796 = vmatprep.subr.bf16.mxu0 0
      %797 = vmatpush1.bf16.msra.mxu0 0
      %798 = vmatprep.subr.bf16.mxu0 0
      %799 = vmatpush1.bf16.msra.mxu0 0
      %800 = vmatprep.subr.bf16.mxu0 0
      %801 = vmatpush1.bf16.msra.mxu0 0
      %802 = vmatprep.mubr.bf16.mxu0 0
      %803 = vmatmul.mubr.bf16.gmra.mrb[0].mxu0 %v764
      %v804 = vpop.f32.mrb[0].mxu0
      %v805 = vadd.f32 0.0, %v804
      %v806 = vpop.f32.mrb[0].mxu0
      %v807 = vpop.f32.mrb[0].mxu0
      %v808 = vadd.f32 0.0, %v807
      %v809 = vpop.f32.mrb[0].mxu0
      %810 = vdwg.mxu0
      %v812 = vsel %vm518, %v638, 0
      %v815 = vsel %vm766, %v637, 0
      %817 = vmatprep.subr.bf16.mxu0 0
      %818 = vmatpush1.bf16.msra.mxu0 %v815
      %819 = vmatprep.subr.bf16.mxu0 0
      %820 = vmatpush1.bf16.msra.mxu0 0
      %821 = vmatprep.subr.bf16.mxu0 0
      %822 = vmatpush1.bf16.msra.mxu0 0
      %823 = vmatprep.subr.bf16.mxu0 0
      %824 = vmatpush1.bf16.msra.mxu0 0
      %825 = vmatprep.subr.bf16.mxu0 0
      %826 = vmatpush1.bf16.msra.mxu0 0
      %827 = vmatprep.subr.bf16.mxu0 0
      %828 = vmatpush1.bf16.msra.mxu0 0
      %829 = vmatprep.subr.bf16.mxu0 0
      %830 = vmatpush1.bf16.msra.mxu0 0
      %831 = vmatprep.subr.bf16.mxu0 0
      %832 = vmatpush1.bf16.msra.mxu0 0
      %833 = vmatprep.subr.bf16.mxu0 0
      %834 = vmatpush1.bf16.msra.mxu0 0
      %835 = vmatprep.subr.bf16.mxu0 0
      %836 = vmatpush1.bf16.msra.mxu0 0
      %837 = vmatprep.subr.bf16.mxu0 0
      %838 = vmatpush1.bf16.msra.mxu0 0
      %839 = vmatprep.subr.bf16.mxu0 0
      %840 = vmatpush1.bf16.msra.mxu0 0
      %841 = vmatprep.subr.bf16.mxu0 0
      %842 = vmatpush1.bf16.msra.mxu0 0
      %843 = vmatprep.subr.bf16.mxu0 0
      %844 = vmatpush1.bf16.msra.mxu0 0
      %845 = vmatprep.subr.bf16.mxu0 0
      %846 = vmatpush1.bf16.msra.mxu0 0
      %847 = vmatprep.subr.bf16.mxu0 0
      %848 = vmatpush1.bf16.msra.mxu0 0
      %849 = vmatprep.mubr.bf16.mxu0 0
      %850 = vmatmul.mubr.bf16.gmra.mrb[0].mxu0 %v812
      %v851 = vpop.f32.mrb[0].mxu0
      %v852 = vadd.f32 %v805, %v851
      %v853 = vpop.f32.mrb[0].mxu0
      %v854 = vpop.f32.mrb[0].mxu0
      %v855 = vadd.f32 %v808, %v854
      %v856 = vpop.f32.mrb[0].mxu0
      %857 = vdwg.mxu0
      %858 = vrot.lane.b32.xlu0 %v514, 112
      %v859 = vpop.permute.xlu0 %858
      %860 = vrot.lane.b32.xlu0 %v514, 80
      %v861 = vpop.permute.xlu0 %860
      %v863 = vsel %vm518, %v859, 0
      %v866 = vsel %vm518, %v861, 0
      %868 = vmatprep.subr.bf16.mxu0 0
      %869 = vmatpush1.bf16.xpose.msra.mxu0 %v866
      %870 = vmatprep.subr.bf16.mxu0 0
      %871 = vmatpush1.bf16.xpose.msra.mxu0 0
      %872 = vmatprep.subr.bf16.mxu0 0
      %873 = vmatpush1.bf16.xpose.msra.mxu0 0
      %874 = vmatprep.subr.bf16.mxu0 0
      %875 = vmatpush1.bf16.xpose.msra.mxu0 0
      %876 = vmatprep.subr.bf16.mxu0 0
      %877 = vmatpush1.bf16.xpose.msra.mxu0 0
      %878 = vmatprep.subr.bf16.mxu0 0
      %879 = vmatpush1.bf16.xpose.msra.mxu0 0
      %880 = vmatprep.subr.bf16.mxu0 0
      %881 = vmatpush1.bf16.xpose.msra.mxu0 0
      %882 = vmatprep.subr.bf16.mxu0 0
      %883 = vmatpush1.bf16.xpose.msra.mxu0 0
      %884 = vmatprep.subr.bf16.mxu0 0
      %885 = vmatpush1.bf16.xpose.msra.mxu0 0
      %886 = vmatprep.subr.bf16.mxu0 0
      %887 = vmatpush1.bf16.xpose.msra.mxu0 0
      %888 = vmatprep.subr.bf16.mxu0 0
      %889 = vmatpush1.bf16.xpose.msra.mxu0 0
      %890 = vmatprep.subr.bf16.mxu0 0
      %891 = vmatpush1.bf16.xpose.msra.mxu0 0
      %892 = vmatprep.subr.bf16.mxu0 0
      %893 = vmatpush1.bf16.xpose.msra.mxu0 0
      %894 = vmatprep.subr.bf16.mxu0 0
      %895 = vmatpush1.bf16.xpose.msra.mxu0 0
      %896 = vmatprep.subr.bf16.mxu0 0
      %897 = vmatpush1.bf16.xpose.msra.mxu0 0
      %898 = vmatprep.subr.bf16.mxu0 0
      %899 = vmatpush1.bf16.xpose.msra.mxu0 0
      %900 = vmatprep.mubr.bf16.mxu0 0
      %901 = vmatmul.mubr.bf16.gmra.mrb[0].mxu0 %v863
      %v902 = vpop.f32.mrb[0].mxu0
      %v903 = vadd.f32 %v422, %v902
      %v904 = vpop.f32.mrb[0].mxu0
      %v905 = vpop.f32.mrb[0].mxu0
      %v906 = vadd.f32 %v423, %v905
      %v907 = vpop.f32.mrb[0].mxu0
      %908 = vdwg.mxu0
      %v909 = vsel %vm566, %v903, -inf
      %910 = vmax.xlane.f32.xlu0 %v909
      %v911 = vpop.xlane.xlu0 %910
      %v912 = vsel %vm566, %v906, -inf
      %913 = vmax.xlane.f32.xlu0 %v912
      %v914 = vpop.xlane.xlu0 %913
      %v915 = vsub.f32 %v903, %v911
      %v916 = vsub.f32 %v906, %v914
      %v917 = vmul.f32 %v915, 1.442695
      %v918 = vpow.pop %v917
      %v919 = vmul.f32 %v916, 1.442695
      %v920 = vpow.pop %v919
      %v921 = vsel %vm566, %v918, 0.0
      %922 = vadd.xlane.f32.xlu0 %v921
      %v923 = vpop.xlane.xlu0 %922
      %v924 = vsel %vm566, %v920, 0.0
      %925 = vadd.xlane.f32.xlu0 %v924
      %v926 = vpop.xlane.xlu0 %925
      %v927 = vrcp.pop %v923
      %v928 = vrcp.pop %v926
      %v929 = vmul.f32 %v918, %v927
      %v930 = vmul.f32 %v920, %v928
      %v931 = vpack.c.bf16 %v930, %v929
      %932 = vrot.lane.b32.xlu0 %v514, 48
      %v933 = vpop.permute.xlu0 %932
      %v936 = vsel %vm566, %v931, 0
      %938 = vmatprep.subr.bf16.mxu0 0
      %939 = vmatpush1.bf16.msra.mxu0 %v933
      %940 = vmatprep.subr.bf16.mxu0 0
      %941 = vmatpush1.bf16.msra.mxu0 0
      %942 = vmatprep.subr.bf16.mxu0 0
      %943 = vmatpush1.bf16.msra.mxu0 0
      %944 = vmatprep.subr.bf16.mxu0 0
      %945 = vmatpush1.bf16.msra.mxu0 0
      %946 = vmatprep.subr.bf16.mxu0 0
      %947 = vmatpush1.bf16.msra.mxu0 0
      %948 = vmatprep.subr.bf16.mxu0 0
      %949 = vmatpush1.bf16.msra.mxu0 0
      %950 = vmatprep.subr.bf16.mxu0 0
      %951 = vmatpush1.bf16.msra.mxu0 0
      %952 = vmatprep.subr.bf16.mxu0 0
      %953 = vmatpush1.bf16.msra.mxu0 0
      %954 = vmatprep.subr.bf16.mxu0 0
      %955 = vmatpush1.bf16.msra.mxu0 0
      %956 = vmatprep.subr.bf16.mxu0 0
      %957 = vmatpush1.bf16.msra.mxu0 0
      %958 = vmatprep.subr.bf16.mxu0 0
      %959 = vmatpush1.bf16.msra.mxu0 0
      %960 = vmatprep.subr.bf16.mxu0 0
      %961 = vmatpush1.bf16.msra.mxu0 0
      %962 = vmatprep.subr.bf16.mxu0 0
      %963 = vmatpush1.bf16.msra.mxu0 0
      %964 = vmatprep.subr.bf16.mxu0 0
      %965 = vmatpush1.bf16.msra.mxu0 0
      %966 = vmatprep.subr.bf16.mxu0 0
      %967 = vmatpush1.bf16.msra.mxu0 0
      %968 = vmatprep.subr.bf16.mxu0 0
      %969 = vmatpush1.bf16.msra.mxu0 0
      %970 = vmatprep.mubr.bf16.mxu0 0
      %971 = vmatmul.mubr.bf16.gmra.mrb[0].mxu0 %v936
      %v972 = vpop.f32.mrb[0].mxu0
      %v973 = vadd.f32 0.0, %v972
      %v974 = vpop.f32.mrb[0].mxu0
      %v975 = vpop.f32.mrb[0].mxu0
      %v976 = vadd.f32 0.0, %v975
      %v977 = vpop.f32.mrb[0].mxu0
      %978 = vdwg.mxu0
      %s979 = scalar_lea.vmem %s392, 8
      %v980 = vld [vmem:[%s979] sm:$0xf]
      %v981 = vpack.c.bf16 %v976, %v973
      %v983 = vsel %vm518, %v981, 0
      %v986 = vsel %vm766, %v980, 0
      %988 = vmatprep.subr.bf16.mxu0 0
      %989 = vmatpush1.bf16.msra.mxu0 %v986
      %990 = vmatprep.subr.bf16.mxu0 0
      %991 = vmatpush1.bf16.msra.mxu0 0
      %992 = vmatprep.subr.bf16.mxu0 0
      %993 = vmatpush1.bf16.msra.mxu0 0
      %994 = vmatprep.subr.bf16.mxu0 0
      %995 = vmatpush1.bf16.msra.mxu0 0
      %996 = vmatprep.subr.bf16.mxu0 0
      %997 = vmatpush1.bf16.msra.mxu0 0
      %998 = vmatprep.subr.bf16.mxu0 0
      %999 = vmatpush1.bf16.msra.mxu0 0
      %1000 = vmatprep.subr.bf16.mxu0 0
      %1001 = vmatpush1.bf16.msra.mxu0 0
      %1002 = vmatprep.subr.bf16.mxu0 0
      %1003 = vmatpush1.bf16.msra.mxu0 0
      %1004 = vmatprep.subr.bf16.mxu0 0
      %1005 = vmatpush1.bf16.msra.mxu0 0
      %1006 = vmatprep.subr.bf16.mxu0 0
      %1007 = vmatpush1.bf16.msra.mxu0 0
      %1008 = vmatprep.subr.bf16.mxu0 0
      %1009 = vmatpush1.bf16.msra.mxu0 0
      %1010 = vmatprep.subr.bf16.mxu0 0
      %1011 = vmatpush1.bf16.msra.mxu0 0
      %1012 = vmatprep.subr.bf16.mxu0 0
      %1013 = vmatpush1.bf16.msra.mxu0 0
      %1014 = vmatprep.subr.bf16.mxu0 0
      %1015 = vmatpush1.bf16.msra.mxu0 0
      %1016 = vmatprep.subr.bf16.mxu0 0
      %1017 = vmatpush1.bf16.msra.mxu0 0
      %1018 = vmatprep.subr.bf16.mxu0 0
      %1019 = vmatpush1.bf16.msra.mxu0 0
      %1020 = vmatprep.mubr.bf16.mxu0 0
      %1021 = vmatmul.mubr.bf16.gmra.mrb[0].mxu0 %v983
      %v1022 = vpop.f32.mrb[0].mxu0
      %v1023 = vadd.f32 0.0, %v1022
      %v1024 = vpop.f32.mrb[0].mxu0
      %v1025 = vpop.f32.mrb[0].mxu0
      %v1026 = vadd.f32 0.0, %v1025
      %v1027 = vpop.f32.mrb[0].mxu0
      %1028 = vdwg.mxu0
      %v1029 = vadd.f32 %v852, %v1023
      %v1030 = vadd.f32 %v855, %v1026
      %1031 = vrot.lane.b32.xlu0 %v514, 104
      %v1032 = vpop.permute.xlu0 %1031
      %1033 = vrot.lane.b32.xlu0 %v514, 72
      %v1034 = vpop.permute.xlu0 %1033
      %v1036 = vsel %vm518, %v1032, 0
      %v1039 = vsel %vm518, %v1034, 0
      %1041 = vmatprep.subr.bf16.mxu0 0
      %1042 = vmatpush1.bf16.xpose.msra.mxu0 %v1039
      %1043 = vmatprep.subr.bf16.mxu0 0
      %1044 = vmatpush1.bf16.xpose.msra.mxu0 0
      %1045 = vmatprep.subr.bf16.mxu0 0
      %1046 = vmatpush1.bf16.xpose.msra.mxu0 0
      %1047 = vmatprep.subr.bf16.mxu0 0
      %1048 = vmatpush1.bf16.xpose.msra.mxu0 0
      %1049 = vmatprep.subr.bf16.mxu0 0
      %1050 = vmatpush1.bf16.xpose.msra.mxu0 0
      %1051 = vmatprep.subr.bf16.mxu0 0
      %1052 = vmatpush1.bf16.xpose.msra.mxu0 0
      %1053 = vmatprep.subr.bf16.mxu0 0
      %1054 = vmatpush1.bf16.xpose.msra.mxu0 0
      %1055 = vmatprep.subr.bf16.mxu0 0
      %1056 = vmatpush1.bf16.xpose.msra.mxu0 0
      %1057 = vmatprep.subr.bf16.mxu0 0
      %1058 = vmatpush1.bf16.xpose.msra.mxu0 0
      %1059 = vmatprep.subr.bf16.mxu0 0
      %1060 = vmatpush1.bf16.xpose.msra.mxu0 0
      %1061 = vmatprep.subr.bf16.mxu0 0
      %1062 = vmatpush1.bf16.xpose.msra.mxu0 0
      %1063 = vmatprep.subr.bf16.mxu0 0
      %1064 = vmatpush1.bf16.xpose.msra.mxu0 0
      %1065 = vmatprep.subr.bf16.mxu0 0
      %1066 = vmatpush1.bf16.xpose.msra.mxu0 0
      %1067 = vmatprep.subr.bf16.mxu0 0
      %1068 = vmatpush1.bf16.xpose.msra.mxu0 0
      %1069 = vmatprep.subr.bf16.mxu0 0
      %1070 = vmatpush1.bf16.xpose.msra.mxu0 0
      %1071 = vmatprep.subr.bf16.mxu0 0
      %1072 = vmatpush1.bf16.xpose.msra.mxu0 0
      %1073 = vmatprep.mubr.bf16.mxu0 0
      %1074 = vmatmul.mubr.bf16.gmra.mrb[0].mxu0 %v1036
      %v1075 = vpop.f32.mrb[0].mxu0
      %v1076 = vadd.f32 %v424, %v1075
      %v1077 = vpop.f32.mrb[0].mxu0
      %v1078 = vpop.f32.mrb[0].mxu0
      %v1079 = vadd.f32 %v425, %v1078
      %v1080 = vpop.f32.mrb[0].mxu0
      %1081 = vdwg.mxu0
      %v1082 = vsel %vm566, %v1076, -inf
      %1083 = vmax.xlane.f32.xlu0 %v1082
      %v1084 = vpop.xlane.xlu0 %1083
      %v1085 = vsel %vm566, %v1079, -inf
      %1086 = vmax.xlane.f32.xlu0 %v1085
      %v1087 = vpop.xlane.xlu0 %1086
      %v1088 = vsub.f32 %v1076, %v1084
      %v1089 = vsub.f32 %v1079, %v1087
      %v1090 = vmul.f32 %v1088, 1.442695
      %v1091 = vpow.pop %v1090
      %v1092 = vmul.f32 %v1089, 1.442695
      %v1093 = vpow.pop %v1092
      %v1094 = vsel %vm566, %v1091, 0.0
      %1095 = vadd.xlane.f32.xlu0 %v1094
      %v1096 = vpop.xlane.xlu0 %1095
      %v1097 = vsel %vm566, %v1093, 0.0
      %1098 = vadd.xlane.f32.xlu0 %v1097
      %v1099 = vpop.xlane.xlu0 %1098
      %v1100 = vrcp.pop %v1096
      %v1101 = vrcp.pop %v1099
      %v1102 = vmul.f32 %v1091, %v1100
      %v1103 = vmul.f32 %v1093, %v1101
      %v1104 = vpack.c.bf16 %v1103, %v1102
      %1105 = vrot.lane.b32.xlu0 %v514, 40
      %v1106 = vpop.permute.xlu0 %1105
      %v1109 = vsel %vm566, %v1104, 0
      %1111 = vmatprep.subr.bf16.mxu0 0
      %1112 = vmatpush1.bf16.msra.mxu0 %v1106
      %1113 = vmatprep.subr.bf16.mxu0 0
      %1114 = vmatpush1.bf16.msra.mxu0 0
      %1115 = vmatprep.subr.bf16.mxu0 0
      %1116 = vmatpush1.bf16.msra.mxu0 0
      %1117 = vmatprep.subr.bf16.mxu0 0
      %1118 = vmatpush1.bf16.msra.mxu0 0
      %1119 = vmatprep.subr.bf16.mxu0 0
      %1120 = vmatpush1.bf16.msra.mxu0 0
      %1121 = vmatprep.subr.bf16.mxu0 0
      %1122 = vmatpush1.bf16.msra.mxu0 0
      %1123 = vmatprep.subr.bf16.mxu0 0
      %1124 = vmatpush1.bf16.msra.mxu0 0
      %1125 = vmatprep.subr.bf16.mxu0 0
      %1126 = vmatpush1.bf16.msra.mxu0 0
      %1127 = vmatprep.subr.bf16.mxu0 0
      %1128 = vmatpush1.bf16.msra.mxu0 0
      %1129 = vmatprep.subr.bf16.mxu0 0
      %1130 = vmatpush1.bf16.msra.mxu0 0
      %1131 = vmatprep.subr.bf16.mxu0 0
      %1132 = vmatpush1.bf16.msra.mxu0 0
      %1133 = vmatprep.subr.bf16.mxu0 0
      %1134 = vmatpush1.bf16.msra.mxu0 0
      %1135 = vmatprep.subr.bf16.mxu0 0
      %1136 = vmatpush1.bf16.msra.mxu0 0
      %1137 = vmatprep.subr.bf16.mxu0 0
      %1138 = vmatpush1.bf16.msra.mxu0 0
      %1139 = vmatprep.subr.bf16.mxu0 0
      %1140 = vmatpush1.bf16.msra.mxu0 0
      %1141 = vmatprep.subr.bf16.mxu0 0
      %1142 = vmatpush1.bf16.msra.mxu0 0
      %1143 = vmatprep.mubr.bf16.mxu0 0
      %1144 = vmatmul.mubr.bf16.gmra.mrb[0].mxu0 %v1109
      %v1145 = vpop.f32.mrb[0].mxu0
      %v1146 = vadd.f32 0.0, %v1145
      %v1147 = vpop.f32.mrb[0].mxu0
      %v1148 = vpop.f32.mrb[0].mxu0
      %v1149 = vadd.f32 0.0, %v1148
      %v1150 = vpop.f32.mrb[0].mxu0
      %1151 = vdwg.mxu0
      %s1152 = scalar_lea.vmem %s392, 12
      %v1153 = vld [vmem:[%s1152] sm:$0xf]
      %v1154 = vpack.c.bf16 %v1149, %v1146
      %v1156 = vsel %vm518, %v1154, 0
      %v1159 = vsel %vm766, %v1153, 0
      %1161 = vmatprep.subr.bf16.mxu0 0
      %1162 = vmatpush1.bf16.msra.mxu0 %v1159
      %1163 = vmatprep.subr.bf16.mxu0 0
      %1164 = vmatpush1.bf16.msra.mxu0 0
      %1165 = vmatprep.subr.bf16.mxu0 0
      %1166 = vmatpush1.bf16.msra.mxu0 0
      %1167 = vmatprep.subr.bf16.mxu0 0
      %1168 = vmatpush1.bf16.msra.mxu0 0
      %1169 = vmatprep.subr.bf16.mxu0 0
      %1170 = vmatpush1.bf16.msra.mxu0 0
      %1171 = vmatprep.subr.bf16.mxu0 0
      %1172 = vmatpush1.bf16.msra.mxu0 0
      %1173 = vmatprep.subr.bf16.mxu0 0
      %1174 = vmatpush1.bf16.msra.mxu0 0
      %1175 = vmatprep.subr.bf16.mxu0 0
      %1176 = vmatpush1.bf16.msra.mxu0 0
      %1177 = vmatprep.subr.bf16.mxu0 0
      %1178 = vmatpush1.bf16.msra.mxu0 0
      %1179 = vmatprep.subr.bf16.mxu0 0
      %1180 = vmatpush1.bf16.msra.mxu0 0
      %1181 = vmatprep.subr.bf16.mxu0 0
      %1182 = vmatpush1.bf16.msra.mxu0 0
      %1183 = vmatprep.subr.bf16.mxu0 0
      %1184 = vmatpush1.bf16.msra.mxu0 0
      %1185 = vmatprep.subr.bf16.mxu0 0
      %1186 = vmatpush1.bf16.msra.mxu0 0
      %1187 = vmatprep.subr.bf16.mxu0 0
      %1188 = vmatpush1.bf16.msra.mxu0 0
      %1189 = vmatprep.subr.bf16.mxu0 0
      %1190 = vmatpush1.bf16.msra.mxu0 0
      %1191 = vmatprep.subr.bf16.mxu0 0
      %1192 = vmatpush1.bf16.msra.mxu0 0
      %1193 = vmatprep.mubr.bf16.mxu0 0
      %1194 = vmatmul.mubr.bf16.gmra.mrb[0].mxu0 %v1156
      %v1195 = vpop.f32.mrb[0].mxu0
      %v1196 = vadd.f32 0.0, %v1195
      %v1197 = vpop.f32.mrb[0].mxu0
      %v1198 = vpop.f32.mrb[0].mxu0
      %v1199 = vadd.f32 0.0, %v1198
      %v1200 = vpop.f32.mrb[0].mxu0
      %1201 = vdwg.mxu0
      %v1202 = vadd.f32 %v1029, %v1196
      %v1203 = vadd.f32 %v1030, %v1199
      %v1204 = vadd.f32 %v416, %v1202
      %v1205 = vadd.f32 %v417, %v1203
      %v1206 = vld [vmem:[%s395] sm:$0x1]
      %v1207 = vmul.f32 %v1204, %v1204
      %v1208 = vmul.f32 %v1205, %v1205
      %v1209 = vsel %vm429, %v1207, 0.0
      %1210 = vadd.xlane.f32.xlu0 %v1209
      %v1211 = vpop.xlane.xlu0 %1210
      %v1212 = vsel %vm429, %v1208, 0.0
      %1213 = vadd.xlane.f32.xlu0 %v1212
      %v1214 = vpop.xlane.xlu0 %1213
      %v1215 = vmul.f32 %v1211, %v436
      %v1216 = vmul.f32 %v1214, %v436
      %v1217 = vadd.f32 %v1215, 1e-06
      %v1218 = vadd.f32 %v1216, 1e-06
      %v1219 = vrsqrt.pop %v1217
      %v1220 = vrsqrt.pop %v1218
      %v1221 = vmul.f32 %v1204, %v1219
      %v1222 = vmul.f32 %v1205, %v1220
      %v1224 = vlaneseq
      %v1225 = vshrl.u32 %v1224, 7
      %v1226 = vsub.s32 0, %v1225
      %v1227 = vrot.slane %v1206, %v1226
      %v1229 = vmul.f32 %v1221, %v1227
      %v1230 = vmul.f32 %v1222, %v1227
      %v1231 = vld [vmem:[%s400] sm:$0xf]
      %v1232 = vld [vmem:[%s400 + $0x4] sm:$0xf]
      %v1233 = vld [vmem:[%s400 + $0x8] sm:$0xf]
      %v1234 = vld [vmem:[%s400 + $0xc] sm:$0xf]
      %v1235 = vpack.c.bf16 %v1230, %v1229
      %v1240 = vunpack.c.l.b16 %v1231
      %v1241 = vunpack.c.l.b16 %v1232
      %v1242 = vunpack.c.l.b16 %v1233
      %v1243 = vunpack.c.l.b16 %v1234
      %v1244 = vpack.c.b16 %v1241, %v1240
      %v1245 = vpack.c.b16 %v1243, %v1242
      %v1249 = vsel %vm429, %v1235, 0
      %1251 = vmatprep.subr.bf16.mxu0 0
      %1252 = vmatpush1.bf16.msra.mxu0 %v1244
      %1253 = vmatprep.subr.bf16.mxu0 0
      %1254 = vmatpush1.bf16.msra.mxu0 %v1245
      %1255 = vmatprep.subr.bf16.mxu0 0
      %1256 = vmatpush1.bf16.msra.mxu0 0
      %1257 = vmatprep.subr.bf16.mxu0 0
      %1258 = vmatpush1.bf16.msra.mxu0 0
      %1259 = vmatprep.subr.bf16.mxu0 0
      %1260 = vmatpush1.bf16.msra.mxu0 0
      %1261 = vmatprep.subr.bf16.mxu0 0
      %1262 = vmatpush1.bf16.msra.mxu0 0
      %1263 = vmatprep.subr.bf16.mxu0 0
      %1264 = vmatpush1.bf16.msra.mxu0 0
      %1265 = vmatprep.subr.bf16.mxu0 0
      %1266 = vmatpush1.bf16.msra.mxu0 0
      %1267 = vmatprep.subr.bf16.mxu0 0
      %1268 = vmatpush1.bf16.msra.mxu0 0
      %1269 = vmatprep.subr.bf16.mxu0 0
      %1270 = vmatpush1.bf16.msra.mxu0 0
      %1271 = vmatprep.subr.bf16.mxu0 0
      %1272 = vmatpush1.bf16.msra.mxu0 0
      %1273 = vmatprep.subr.bf16.mxu0 0
      %1274 = vmatpush1.bf16.msra.mxu0 0
      %1275 = vmatprep.subr.bf16.mxu0 0
      %1276 = vmatpush1.bf16.msra.mxu0 0
      %1277 = vmatprep.subr.bf16.mxu0 0
      %1278 = vmatpush1.bf16.msra.mxu0 0
      %1279 = vmatprep.subr.bf16.mxu0 0
      %1280 = vmatpush1.bf16.msra.mxu0 0
      %1281 = vmatprep.subr.bf16.mxu0 0
      %1282 = vmatpush1.bf16.msra.mxu0 0
      %1283 = vmatprep.mubr.bf16.mxu0 0
      %1284 = vmatmul.mubr.bf16.gmra.mrb[0].mxu0 %v1249
      %v1285 = vpop.f32.mrb[0].mxu0
      %v1286 = vadd.f32 0.0, %v1285
      %v1287 = vpop.f32.mrb[0].mxu0
      %v1288 = vpop.f32.mrb[0].mxu0
      %v1289 = vadd.f32 0.0, %v1288
      %v1290 = vpop.f32.mrb[0].mxu0
      %1291 = vdwg.mxu0
      %v1292 = vmul.f32 %v1286, 0.5
      %v1293 = vmul.f32 %v1289, 0.5
      %v1294 = vmul.f32 %v1286, 0.044715
      %v1295 = vmul.f32 %v1289, 0.044715
      %v1296 = vmul.f32 %v1294, %v1286
      %v1297 = vmul.f32 %v1295, %v1289
      %v1298 = vmul.f32 %v1296, %v1286
      %v1299 = vmul.f32 %v1297, %v1289
      %v1300 = vadd.f32 %v1286, %v1298
      %v1301 = vadd.f32 %v1289, %v1299
      %v1302 = vmul.f32 %v1300, 0.7978846
      %v1303 = vmul.f32 %v1301, 0.7978846
      %v1304 = vtanh.pop %v1302
      %v1305 = vtanh.pop %v1303
      %v1306 = vadd.f32 %v1304, 1.0
      %v1307 = vadd.f32 %v1305, 1.0
      %v1308 = vmul.f32 %v1292, %v1306
      %v1309 = vmul.f32 %v1293, %v1307
      %1312 = vrot.lane.b32.xlu0 %v1286, 64
      %v1313 = vpop.permute.xlu0 %1312
      %1314 = vrot.lane.b32.xlu0 %v1289, 64
      %v1315 = vpop.permute.xlu0 %1314
      %v1318 = vmul.f32 %v1308, %v1313
      %v1319 = vmul.f32 %v1309, %v1315
      %v1320 = vld [vmem:[%s405] sm:$0xf]
      %v1321 = vld [vmem:[%s405 + $0x4] sm:$0xf]
      %v1322 = vld [vmem:[%s405 + $0x8] sm:$0xf]
      %v1323 = vld [vmem:[%s405 + $0xc] sm:$0xf]
      %v1324 = vld [vmem:[%s405 + $0x10] sm:$0xf]
      %v1325 = vld [vmem:[%s405 + $0x14] sm:$0xf]
      %v1326 = vld [vmem:[%s405 + $0x18] sm:$0xf]
      %v1327 = vld [vmem:[%s405 + $0x1c] sm:$0xf]
      %v1328 = vpack.c.bf16 %v1319, %v1318
      %v1337 = vunpack.c.l.b16 %v1320
      %v1338 = vunpack.c.l.b16 %v1321
      %v1339 = vunpack.c.l.b16 %v1322
      %v1340 = vunpack.c.l.b16 %v1323
      %v1341 = vunpack.c.l.b16 %v1324
      %v1342 = vunpack.c.l.b16 %v1325
      %v1343 = vunpack.c.l.b16 %v1326
      %v1344 = vunpack.c.l.b16 %v1327
      %v1345 = vpack.c.b16 %v1338, %v1337
      %v1346 = vpack.c.b16 %v1340, %v1339
      %v1347 = vpack.c.b16 %v1342, %v1341
      %v1348 = vpack.c.b16 %v1344, %v1343
      %vm1353 = vcmask 523264
      %v1355 = vsel %vm1353, %v1328, 0
      %1357 = vmatprep.subr.bf16.mxu0 0
      %1358 = vmatpush1.bf16.msra.mxu0 %v1345
      %1359 = vmatprep.subr.bf16.mxu0 0
      %1360 = vmatpush1.bf16.msra.mxu0 %v1346
      %1361 = vmatprep.subr.bf16.mxu0 0
      %1362 = vmatpush1.bf16.msra.mxu0 %v1347
      %1363 = vmatprep.subr.bf16.mxu0 0
      %1364 = vmatpush1.bf16.msra.mxu0 %v1348
      %1365 = vmatprep.subr.bf16.mxu0 0
      %1366 = vmatpush1.bf16.msra.mxu0 0
      %1367 = vmatprep.subr.bf16.mxu0 0
      %1368 = vmatpush1.bf16.msra.mxu0 0
      %1369 = vmatprep.subr.bf16.mxu0 0
      %1370 = vmatpush1.bf16.msra.mxu0 0
      %1371 = vmatprep.subr.bf16.mxu0 0
      %1372 = vmatpush1.bf16.msra.mxu0 0
      %1373 = vmatprep.subr.bf16.mxu0 0
      %1374 = vmatpush1.bf16.msra.mxu0 0
      %1375 = vmatprep.subr.bf16.mxu0 0
      %1376 = vmatpush1.bf16.msra.mxu0 0
      %1377 = vmatprep.subr.bf16.mxu0 0
      %1378 = vmatpush1.bf16.msra.mxu0 0
      %1379 = vmatprep.subr.bf16.mxu0 0
      %1380 = vmatpush1.bf16.msra.mxu0 0
      %1381 = vmatprep.subr.bf16.mxu0 0
      %1382 = vmatpush1.bf16.msra.mxu0 0
      %1383 = vmatprep.subr.bf16.mxu0 0
      %1384 = vmatpush1.bf16.msra.mxu0 0
      %1385 = vmatprep.subr.bf16.mxu0 0
      %1386 = vmatpush1.bf16.msra.mxu0 0
      %1387 = vmatprep.subr.bf16.mxu0 0
      %1388 = vmatpush1.bf16.msra.mxu0 0
      %1389 = vmatprep.mubr.bf16.mxu0 0
      %1390 = vmatmul.mubr.bf16.gmra.mrb[0].mxu0 %v1355
      %v1391 = vpop.f32.mrb[0].mxu0
      %v1392 = vadd.f32 0.0, %v1391
      %v1393 = vpop.f32.mrb[0].mxu0
      %v1394 = vpop.f32.mrb[0].mxu0
      %v1395 = vadd.f32 0.0, %v1394
      %v1396 = vpop.f32.mrb[0].mxu0
      %1397 = vdwg.mxu0
      %v1398 = vadd.f32 %v1204, %v1392
      %v1399 = vadd.f32 %v1205, %v1395
      %1400 = vst.msk [vmem:[#allocation2] sm:$0xff] %vm429, %v1398
      %1401 = vst.msk [vmem:[#allocation2 + $0x8] sm:$0xff] %vm429, %v1399
      %p1402 = scmp.eq.s32.totalorder %s20, 1
      // Predicated region
      $region61: #{t5_forward.2} parent=55 // pred_check
        %p1403 = pneg %p1402
      $region62: #{t5_forward.2} parent=55 // pred_check_branch
        %1405 = sbr.rel (%p1403) target = $region64
      $region63: #{t5_forward.2} parent=55 // pred_region
        %v1406 = vld [vmem:[%s8] sm:$0x1]
        %v1407 = vmul.f32 %v1398, %v1398
        %v1408 = vmul.f32 %v1399, %v1399
        %v1409 = vsel %vm429, %v1407, 0.0
        %1410 = vadd.xlane.f32.xlu0 %v1409
        %v1411 = vpop.xlane.xlu0 %1410
        %v1412 = vsel %vm429, %v1408, 0.0
        %1413 = vadd.xlane.f32.xlu0 %v1412
        %v1414 = vpop.xlane.xlu0 %1413
        %v1415 = vmul.f32 %v1411, %v436
        %v1416 = vmul.f32 %v1414, %v436
        %v1417 = vadd.f32 %v1415, 1e-06
        %v1418 = vadd.f32 %v1416, 1e-06
        %v1419 = vrsqrt.pop %v1417
        %v1420 = vrsqrt.pop %v1418
        %v1421 = vmul.f32 %v1398, %v1419
        %v1422 = vmul.f32 %v1399, %v1420
        %v1424 = vlaneseq
        %v1425 = vshrl.u32 %v1424, 7
        %v1426 = vsub.s32 0, %v1425
        %v1427 = vrot.slane %v1406, %v1426
        %v1429 = vmul.f32 %v1421, %v1427
        %v1430 = vmul.f32 %v1422, %v1427
        %1431 = vst.msk [vmem:[%s9] sm:$0xff] %vm429, %v1429
        %1432 = vst.msk [vmem:[%s9 + $0x8] sm:$0xff] %vm429, %v1430
      $region64: #{t5_forward.2} parent=55 // pred_fallthru
        _
      // Predicated region
      $region65: #{t5_forward.2} parent=55 // pred_check
        %p1433 = pneg %p252
      $region66: #{t5_forward.2} parent=55 // pred_check_branch
        %1435 = sbr.rel (%p1433) target = $region68
      $region67: #{t5_forward.2} parent=55 // pred_region
        _
      $region68: #{t5_forward.2} parent=55 // pred_fallthru
        _
      // Predicated region
      $region69: #{t5_forward.2} parent=55 // pred_check
        %p1436 = pneg %p252
      $region70: #{t5_forward.2} parent=55 // pred_check_branch
        %1438 = sbr.rel (%p1436) target = $region72
      $region71: #{t5_forward.2} parent=55 // pred_region
        _
      $region72: #{t5_forward.2} parent=55 // pred_fallthru
        _
    $region56: #{t5_forward.2} parent=5 // pred_fallthru
      _
    %p1439 = scmp.le.s32.totalorder 2, %s15
    // Predicated region
    $region73: #{t5_forward.2} parent=5 // pred_check
      %p1440 = pneg %p1439
    $region74: #{t5_forward.2} parent=5 // pred_check_branch
      %1442 = sbr.rel (%p1440) target = $region76
    $region75: #{t5_forward.2} parent=5 // pred_region
      %s1443 = ssub.s32 %s15, 2
    $region76: #{t5_forward.2} parent=5 // pred_fallthru
      _
  $region6: #{t5_forward.2} parent=0 // loop_footer
    %s19 = sadd.s32 1, %s15
  $region7: #{t5_forward.2} parent=0 // loop_footer_branch
    %14 = sbr.rel target = $region3
  $region8: #{t5_forward.2} parent=0 // loop_exit
    _

// kernel: t5_forward.3
$region0: #{t5_forward.3}
  #allocation0 [shape = 'u32[]', space=smem, size = 0x4, offset = 0x4, fixed_abs, tag = 'smem constant byte address 0x4 - core index']
  #allocation1 [shape = 'u32[144,128]{1,0:T(1,128)}', space=vmem, size = 0x12000, scoped, tag = 'internal scratch']
  #allocation2 [shape = 'f32[16,32]{1,0:T(8,128)}', space=vmem, size = 0x2000, scoped, tag = 'scratch operand']
  %s0 = inlined_call_operand.vmem [shape: f32[16,32], index: 0, kind: input, shape index: {}]
  %s1 = inlined_call_operand.vmem [shape: f32[16,32], index: 1, kind: input, shape index: {}]
  %s2 = inlined_call_operand.vmem [shape: f32[4,16,16], index: 2, kind: input, shape index: {}]
  %s3 = inlined_call_operand.vmem [shape: f32[4,16,16], index: 3, kind: input, shape index: {}]
  %s4 = inlined_call_operand.vmem [shape: f32[2,1,32], index: 4, kind: input, shape index: {}]
  %s5 = inlined_call_operand.vmem [shape: bf16[2,32,96], index: 5, kind: input, shape index: {}]
  %s6 = inlined_call_operand.vmem [shape: bf16[2,4,8,32], index: 6, kind: input, shape index: {}]
  %s7 = inlined_call_operand.vmem [shape: f32[2,1,32], index: 7, kind: input, shape index: {}]
  %s8 = inlined_call_operand.vmem [shape: bf16[2,32,32], index: 8, kind: input, shape index: {}]
  %s9 = inlined_call_operand.vmem [shape: bf16[2,32,64], index: 9, kind: input, shape index: {}]
  %s10 = inlined_call_operand.vmem [shape: bf16[2,4,8,32], index: 10, kind: input, shape index: {}]
  %s11 = inlined_call_operand.vmem [shape: f32[2,1,32], index: 11, kind: input, shape index: {}]
  %s12 = inlined_call_operand.vmem [shape: bf16[2,32,128], index: 12, kind: input, shape index: {}]
  %s13 = inlined_call_operand.vmem [shape: bf16[2,64,32], index: 13, kind: input, shape index: {}]
  %s14 = inlined_call_operand.vmem [shape: f32[1,32], index: 14, kind: input, shape index: {}]
  %s15 = inlined_call_operand.vmem [shape: bf16[32,128], index: 15, kind: input, shape index: {}]
  %s16 = inlined_call_operand.vmem [shape: f32[16,128], index: 16, kind: output, shape index: {}]
  %s17 = sld [smem:[#allocation0]]
  $region105: #{t5_forward.3} parent=0
    _
  %s19 = ssub.s32 1, %s17
  %s20 = scalar_select 0, %s19, %s17
  loop: start=0, step=1, limit=4
  $region2: #{t5_forward.3} parent=0 // loop_pre_header
    _
  $region3: #{t5_forward.3} parent=0 // loop_header
    %s22 = sphi 0, %s26
    %p23 = scmp.ge.s32.totalorder %s22, 4
    %s30 = sphi 0, %s30
    %s32 = sphi 0, %s30
    %s33 = sphi 0, %s32
    %s47 = sphi 0, %s33
    %s51 = sphi 0, %s51
    %s53 = sphi 0, %s51
    %s54 = sphi 0, %s53
    %s68 = sphi 0, %s54
    %s72 = sphi 0, %s72
    %s74 = sphi 0, %s72
    %s75 = sphi 0, %s74
    %s89 = sphi 0, %s75
    %s93 = sphi 0, %s93
    %s95 = sphi 0, %s93
    %s96 = sphi 0, %s95
    %s110 = sphi 0, %s96
    %s116 = sphi 0, %s118
    %s119 = sphi 0, %s116
    %s120 = sphi 0, %s119
    %s136 = sphi 0, %s120
    %s142 = sphi 0, %s144
    %s145 = sphi 0, %s142
    %s146 = sphi 0, %s145
    %s162 = sphi 0, %s146
    %s168 = sphi 0, %s170
    %s171 = sphi 0, %s168
    %s172 = sphi 0, %s171
    %s188 = sphi 0, %s172
    %s194 = sphi 0, %s196
    %s197 = sphi 0, %s194
    %s198 = sphi 0, %s197
    %s214 = sphi 0, %s198
    %s220 = sphi 0, %s222
    %s223 = sphi 0, %s220
    %s224 = sphi 0, %s223
    %s240 = sphi 0, %s224
    %s246 = sphi 0, %s248
    %s249 = sphi 0, %s246
    %s250 = sphi 0, %s249
    %s266 = sphi 0, %s250
    %s272 = sphi 0, %s274
    %s275 = sphi 0, %s272
    %s276 = sphi 0, %s275
    %s292 = sphi 0, %s276
    %s298 = sphi 0, %s300
    %s301 = sphi 0, %s298
    %s302 = sphi 0, %s301
    %s318 = sphi 0, %s302
    %s324 = sphi 0, %s326
    %s327 = sphi 0, %s324
    %s328 = sphi 0, %s327
    %s344 = sphi 0, %s328
    %s350 = sphi 0, %s352
    %s353 = sphi 0, %s350
    %s354 = sphi 0, %s353
    %s370 = sphi 0, %s354
    %s374 = sphi 0, %s374
    %s376 = sphi 0, %s374
    %s377 = sphi 0, %s376
    %s391 = sphi 0, %s377
    %s395 = sphi 0, %s395
    %s397 = sphi 0, %s395
    %s398 = sphi 0, %s397
    %s412 = sphi 0, %s398
    %s416 = sphi 0, %s416
    %s418 = sphi 0, %s416
    %s419 = sphi 0, %s418
    %s433 = sphi 0, %s419
  $region4: #{t5_forward.3} parent=0 // loop_header_branch
    %25 = sbr.rel (%p23) target = $region8
  $region5: #{t5_forward.3} parent=0 // loop_body
    %s27 = ssub.s32 %s22, 1
    %s28 = ssub.s32 %s22, 2
    %s29 = sadd.s32 %s22, 1
    %s31 = sadd.s32 %s30, 1
    %p34 = scmp.eq.s32.totalorder %s22, 1
    %p35 = scmp.ne.s32.totalorder %s30, %s32
    %p36 = scmp.eq.s32.totalorder %s22, 0
    %p37 = por %p35, %p36
    %p38 = scmp.ne.s32.totalorder %s30, %s32
    %p39 = scmp.eq.s32.totalorder %s27, 1
    %p40 = por %p38, %p39
    %p41 = scmp.ne.s32.totalorder %s32, %s33
    %p42 = scmp.eq.s32.totalorder %s27, 0
    %p43 = por %p41, %p42
    %p44 = scmp.ne.s32.totalorder %s32, %s33
    %p45 = scmp.eq.s32.totalorder %s28, 1
    %p46 = por %p44, %p45
    %p48 = scmp.ne.s32.totalorder %s33, %s47
    %p49 = scmp.eq.s32.totalorder %s28, 0
    %p50 = por %p48, %p49
    %s52 = sadd.s32 %s51, 1
    %p55 = scmp.eq.s32.totalorder %s22, 1
    %p56 = scmp.ne.s32.totalorder %s51, %s53
    %p57 = scmp.eq.s32.totalorder %s22, 0
    %p58 = por %p56, %p57
    %p59 = scmp.ne.s32.totalorder %s51, %s53
    %p60 = scmp.eq.s32.totalorder %s27, 1
    %p61 = por %p59, %p60
    %p62 = scmp.ne.s32.totalorder %s53, %s54
    %p63 = scmp.eq.s32.totalorder %s27, 0
    %p64 = por %p62, %p63
    %p65 = scmp.ne.s32.totalorder %s53, %s54
    %p66 = scmp.eq.s32.totalorder %s28, 1
    %p67 = por %p65, %p66
    %p69 = scmp.ne.s32.totalorder %s54, %s68
    %p70 = scmp.eq.s32.totalorder %s28, 0
    %p71 = por %p69, %p70
    %s73 = sadd.s32 %s72, 1
    %p76 = scmp.eq.s32.totalorder %s22, 1
    %p77 = scmp.ne.s32.totalorder %s72, %s74
    %p78 = scmp.eq.s32.totalorder %s22, 0
    %p79 = por %p77, %p78
    %p80 = scmp.ne.s32.totalorder %s72, %s74
    %p81 = scmp.eq.s32.totalorder %s27, 1
    %p82 = por %p80, %p81
    %p83 = scmp.ne.s32.totalorder %s74, %s75
    %p84 = scmp.eq.s32.totalorder %s27, 0
    %p85 = por %p83, %p84
    %p86 = scmp.ne.s32.totalorder %s74, %s75
    %p87 = scmp.eq.s32.totalorder %s28, 1
    %p88 = por %p86, %p87
    %p90 = scmp.ne.s32.totalorder %s75, %s89
    %p91 = scmp.eq.s32.totalorder %s28, 0
    %p92 = por %p90, %p91
    %s94 = sadd.s32 %s93, 1
    %p97 = scmp.eq.s32.totalorder %s22, 1
    %p98 = scmp.ne.s32.totalorder %s93, %s95
    %p99 = scmp.eq.s32.totalorder %s22, 0
    %p100 = por %p98, %p99
    %p101 = scmp.ne.s32.totalorder %s93, %s95
    %p102 = scmp.eq.s32.totalorder %s27, 1
    %p103 = por %p101, %p102
    %p104 = scmp.ne.s32.totalorder %s95, %s96
    %p105 = scmp.eq.s32.totalorder %s27, 0
    %p106 = por %p104, %p105
    %p107 = scmp.ne.s32.totalorder %s95, %s96
    %p108 = scmp.eq.s32.totalorder %s28, 1
    %p109 = por %p107, %p108
    %p111 = scmp.ne.s32.totalorder %s96, %s110
    %p112 = scmp.eq.s32.totalorder %s28, 0
    %p113 = por %p111, %p112
    %s114 = ssub.s32 %s22, %s29
    %p115 = scmp.eq.s32.totalorder %s114, 0
    %s117 = sadd.s32 %s116, 1
    %s118 = scalar_select %p115, %s116, %s117
    %p121 = pneg %p115
    %p122 = scmp.eq.s32.totalorder %s22, 1
    %p123 = por %p121, %p122
    %p124 = scmp.ne.s32.totalorder %s116, %s119
    %p125 = scmp.eq.s32.totalorder %s22, 0
    %p126 = por %p124, %p125
    %p127 = scmp.ne.s32.totalorder %s116, %s119
    %p128 = scmp.eq.s32.totalorder %s27, 1
    %p129 = por %p127, %p128
    %p130 = scmp.ne.s32.totalorder %s119, %s120
    %p131 = scmp.eq.s32.totalorder %s27, 0
    %p132 = por %p130, %p131
    %p133 = scmp.ne.s32.totalorder %s119, %s120
    %p134 = scmp.eq.s32.totalorder %s28, 1
    %p135 = por %p133, %p134
    %p137 = scmp.ne.s32.totalorder %s120, %s136
    %p138 = scmp.eq.s32.totalorder %s28, 0
    %p139 = por %p137, %p138
    %s140 = ssub.s32 %s22, %s29
    %p141 = scmp.eq.s32.totalorder %s140, 0
    %s143 = sadd.s32 %s142, 1
    %s144 = scalar_select %p141, %s142, %s143
    %p147 = pneg %p141
    %p148 = scmp.eq.s32.totalorder %s22, 1
    %p149 = por %p147, %p148
    %p150 = scmp.ne.s32.totalorder %s142, %s145
    %p151 = scmp.eq.s32.totalorder %s22, 0
    %p152 = por %p150, %p151
    %p153 = scmp.ne.s32.totalorder %s142, %s145
    %p154 = scmp.eq.s32.totalorder %s27, 1
    %p155 = por %p153, %p154
    %p156 = scmp.ne.s32.totalorder %s145, %s146
    %p157 = scmp.eq.s32.totalorder %s27, 0
    %p158 = por %p156, %p157
    %p159 = scmp.ne.s32.totalorder %s145, %s146
    %p160 = scmp.eq.s32.totalorder %s28, 1
    %p161 = por %p159, %p160
    %p163 = scmp.ne.s32.totalorder %s146, %s162
    %p164 = scmp.eq.s32.totalorder %s28, 0
    %p165 = por %p163, %p164
    %s166 = ssub.s32 %s22, %s29
    %p167 = scmp.eq.s32.totalorder %s166, 0
    %s169 = sadd.s32 %s168, 1
    %s170 = scalar_select %p167, %s168, %s169
    %p173 = pneg %p167
    %p174 = scmp.eq.s32.totalorder %s22, 1
    %p175 = por %p173, %p174
    %p176 = scmp.ne.s32.totalorder %s168, %s171
    %p177 = scmp.eq.s32.totalorder %s22, 0
    %p178 = por %p176, %p177
    %p179 = scmp.ne.s32.totalorder %s168, %s171
    %p180 = scmp.eq.s32.totalorder %s27, 1
    %p181 = por %p179, %p180
    %p182 = scmp.ne.s32.totalorder %s171, %s172
    %p183 = scmp.eq.s32.totalorder %s27, 0
    %p184 = por %p182, %p183
    %p185 = scmp.ne.s32.totalorder %s171, %s172
    %p186 = scmp.eq.s32.totalorder %s28, 1
    %p187 = por %p185, %p186
    %p189 = scmp.ne.s32.totalorder %s172, %s188
    %p190 = scmp.eq.s32.totalorder %s28, 0
    %p191 = por %p189, %p190
    %s192 = ssub.s32 %s22, %s29
    %p193 = scmp.eq.s32.totalorder %s192, 0
    %s195 = sadd.s32 %s194, 1
    %s196 = scalar_select %p193, %s194, %s195
    %p199 = pneg %p193
    %p200 = scmp.eq.s32.totalorder %s22, 1
    %p201 = por %p199, %p200
    %p202 = scmp.ne.s32.totalorder %s194, %s197
    %p203 = scmp.eq.s32.totalorder %s22, 0
    %p204 = por %p202, %p203
    %p205 = scmp.ne.s32.totalorder %s194, %s197
    %p206 = scmp.eq.s32.totalorder %s27, 1
    %p207 = por %p205, %p206
    %p208 = scmp.ne.s32.totalorder %s197, %s198
    %p209 = scmp.eq.s32.totalorder %s27, 0
    %p210 = por %p208, %p209
    %p211 = scmp.ne.s32.totalorder %s197, %s198
    %p212 = scmp.eq.s32.totalorder %s28, 1
    %p213 = por %p211, %p212
    %p215 = scmp.ne.s32.totalorder %s198, %s214
    %p216 = scmp.eq.s32.totalorder %s28, 0
    %p217 = por %p215, %p216
    %s218 = ssub.s32 %s22, %s29
    %p219 = scmp.eq.s32.totalorder %s218, 0
    %s221 = sadd.s32 %s220, 1
    %s222 = scalar_select %p219, %s220, %s221
    %p225 = pneg %p219
    %p226 = scmp.eq.s32.totalorder %s22, 1
    %p227 = por %p225, %p226
    %p228 = scmp.ne.s32.totalorder %s220, %s223
    %p229 = scmp.eq.s32.totalorder %s22, 0
    %p230 = por %p228, %p229
    %p231 = scmp.ne.s32.totalorder %s220, %s223
    %p232 = scmp.eq.s32.totalorder %s27, 1
    %p233 = por %p231, %p232
    %p234 = scmp.ne.s32.totalorder %s223, %s224
    %p235 = scmp.eq.s32.totalorder %s27, 0
    %p236 = por %p234, %p235
    %p237 = scmp.ne.s32.totalorder %s223, %s224
    %p238 = scmp.eq.s32.totalorder %s28, 1
    %p239 = por %p237, %p238
    %p241 = scmp.ne.s32.totalorder %s224, %s240
    %p242 = scmp.eq.s32.totalorder %s28, 0
    %p243 = por %p241, %p242
    %s244 = ssub.s32 %s22, %s29
    %p245 = scmp.eq.s32.totalorder %s244, 0
    %s247 = sadd.s32 %s246, 1
    %s248 = scalar_select %p245, %s246, %s247
    %p251 = pneg %p245
    %p252 = scmp.eq.s32.totalorder %s22, 1
    %p253 = por %p251, %p252
    %p254 = scmp.ne.s32.totalorder %s246, %s249
    %p255 = scmp.eq.s32.totalorder %s22, 0
    %p256 = por %p254, %p255
    %p257 = scmp.ne.s32.totalorder %s246, %s249
    %p258 = scmp.eq.s32.totalorder %s27, 1
    %p259 = por %p257, %p258
    %p260 = scmp.ne.s32.totalorder %s249, %s250
    %p261 = scmp.eq.s32.totalorder %s27, 0
    %p262 = por %p260, %p261
    %p263 = scmp.ne.s32.totalorder %s249, %s250
    %p264 = scmp.eq.s32.totalorder %s28, 1
    %p265 = por %p263, %p264
    %p267 = scmp.ne.s32.totalorder %s250, %s266
    %p268 = scmp.eq.s32.totalorder %s28, 0
    %p269 = por %p267, %p268
    %s270 = ssub.s32 %s22, %s29
    %p271 = scmp.eq.s32.totalorder %s270, 0
    %s273 = sadd.s32 %s272, 1
    %s274 = scalar_select %p271, %s272, %s273
    %p277 = pneg %p271
    %p278 = scmp.eq.s32.totalorder %s22, 1
    %p279 = por %p277, %p278
    %p280 = scmp.ne.s32.totalorder %s272, %s275
    %p281 = scmp.eq.s32.totalorder %s22, 0
    %p282 = por %p280, %p281
    %p283 = scmp.ne.s32.totalorder %s272, %s275
    %p284 = scmp.eq.s32.totalorder %s27, 1
    %p285 = por %p283, %p284
    %p286 = scmp.ne.s32.totalorder %s275, %s276
    %p287 = scmp.eq.s32.totalorder %s27, 0
    %p288 = por %p286, %p287
    %p289 = scmp.ne.s32.totalorder %s275, %s276
    %p290 = scmp.eq.s32.totalorder %s28, 1
    %p291 = por %p289, %p290
    %p293 = scmp.ne.s32.totalorder %s276, %s292
    %p294 = scmp.eq.s32.totalorder %s28, 0
    %p295 = por %p293, %p294
    %s296 = ssub.s32 %s22, %s29
    %p297 = scmp.eq.s32.totalorder %s296, 0
    %s299 = sadd.s32 %s298, 1
    %s300 = scalar_select %p297, %s298, %s299
    %p303 = pneg %p297
    %p304 = scmp.eq.s32.totalorder %s22, 1
    %p305 = por %p303, %p304
    %p306 = scmp.ne.s32.totalorder %s298, %s301
    %p307 = scmp.eq.s32.totalorder %s22, 0
    %p308 = por %p306, %p307
    %p309 = scmp.ne.s32.totalorder %s298, %s301
    %p310 = scmp.eq.s32.totalorder %s27, 1
    %p311 = por %p309, %p310
    %p312 = scmp.ne.s32.totalorder %s301, %s302
    %p313 = scmp.eq.s32.totalorder %s27, 0
    %p314 = por %p312, %p313
    %p315 = scmp.ne.s32.totalorder %s301, %s302
    %p316 = scmp.eq.s32.totalorder %s28, 1
    %p317 = por %p315, %p316
    %p319 = scmp.ne.s32.totalorder %s302, %s318
    %p320 = scmp.eq.s32.totalorder %s28, 0
    %p321 = por %p319, %p320
    %s322 = ssub.s32 %s22, %s29
    %p323 = scmp.eq.s32.totalorder %s322, 0
    %s325 = sadd.s32 %s324, 1
    %s326 = scalar_select %p323, %s324, %s325
    %p329 = pneg %p323
    %p330 = scmp.eq.s32.totalorder %s22, 1
    %p331 = por %p329, %p330
    %p332 = scmp.ne.s32.totalorder %s324, %s327
    %p333 = scmp.eq.s32.totalorder %s22, 0
    %p334 = por %p332, %p333
    %p335 = scmp.ne.s32.totalorder %s324, %s327
    %p336 = scmp.eq.s32.totalorder %s27, 1
    %p337 = por %p335, %p336
    %p338 = scmp.ne.s32.totalorder %s327, %s328
    %p339 = scmp.eq.s32.totalorder %s27, 0
    %p340 = por %p338, %p339
    %p341 = scmp.ne.s32.totalorder %s327, %s328
    %p342 = scmp.eq.s32.totalorder %s28, 1
    %p343 = por %p341, %p342
    %p345 = scmp.ne.s32.totalorder %s328, %s344
    %p346 = scmp.eq.s32.totalorder %s28, 0
    %p347 = por %p345, %p346
    %s348 = ssub.s32 %s22, %s29
    %p349 = scmp.eq.s32.totalorder %s348, 0
    %s351 = sadd.s32 %s350, 1
    %s352 = scalar_select %p349, %s350, %s351
    %p355 = pneg %p349
    %p356 = scmp.eq.s32.totalorder %s22, 1
    %p357 = por %p355, %p356
    %p358 = scmp.ne.s32.totalorder %s350, %s353
    %p359 = scmp.eq.s32.totalorder %s22, 0
    %p360 = por %p358, %p359
    %p361 = scmp.ne.s32.totalorder %s350, %s353
    %p362 = scmp.eq.s32.totalorder %s27, 1
    %p363 = por %p361, %p362
    %p364 = scmp.ne.s32.totalorder %s353, %s354
    %p365 = scmp.eq.s32.totalorder %s27, 0
    %p366 = por %p364, %p365
    %p367 = scmp.ne.s32.totalorder %s353, %s354
    %p368 = scmp.eq.s32.totalorder %s28, 1
    %p369 = por %p367, %p368
    %p371 = scmp.ne.s32.totalorder %s354, %s370
    %p372 = scmp.eq.s32.totalorder %s28, 0
    %p373 = por %p371, %p372
    %s375 = sadd.s32 %s374, 1
    %p378 = scmp.eq.s32.totalorder %s22, 1
    %p379 = scmp.ne.s32.totalorder %s374, %s376
    %p380 = scmp.eq.s32.totalorder %s22, 0
    %p381 = por %p379, %p380
    %p382 = scmp.ne.s32.totalorder %s374, %s376
    %p383 = scmp.eq.s32.totalorder %s27, 1
    %p384 = por %p382, %p383
    %p385 = scmp.ne.s32.totalorder %s376, %s377
    %p386 = scmp.eq.s32.totalorder %s27, 0
    %p387 = por %p385, %p386
    %p388 = scmp.ne.s32.totalorder %s376, %s377
    %p389 = scmp.eq.s32.totalorder %s28, 1
    %p390 = por %p388, %p389
    %p392 = scmp.ne.s32.totalorder %s377, %s391
    %p393 = scmp.eq.s32.totalorder %s28, 0
    %p394 = por %p392, %p393
    %s396 = sadd.s32 %s395, 1
    %p399 = scmp.eq.s32.totalorder %s22, 1
    %p400 = scmp.ne.s32.totalorder %s395, %s397
    %p401 = scmp.eq.s32.totalorder %s22, 0
    %p402 = por %p400, %p401
    %p403 = scmp.ne.s32.totalorder %s395, %s397
    %p404 = scmp.eq.s32.totalorder %s27, 1
    %p405 = por %p403, %p404
    %p406 = scmp.ne.s32.totalorder %s397, %s398
    %p407 = scmp.eq.s32.totalorder %s27, 0
    %p408 = por %p406, %p407
    %p409 = scmp.ne.s32.totalorder %s397, %s398
    %p410 = scmp.eq.s32.totalorder %s28, 1
    %p411 = por %p409, %p410
    %p413 = scmp.ne.s32.totalorder %s398, %s412
    %p414 = scmp.eq.s32.totalorder %s28, 0
    %p415 = por %p413, %p414
    %s417 = sadd.s32 %s416, 1
    %p420 = scmp.eq.s32.totalorder %s22, 1
    %p421 = scmp.ne.s32.totalorder %s416, %s418
    %p422 = scmp.eq.s32.totalorder %s22, 0
    %p423 = por %p421, %p422
    %p424 = scmp.ne.s32.totalorder %s416, %s418
    %p425 = scmp.eq.s32.totalorder %s27, 1
    %p426 = por %p424, %p425
    %p427 = scmp.ne.s32.totalorder %s418, %s419
    %p428 = scmp.eq.s32.totalorder %s27, 0
    %p429 = por %p427, %p428
    %p430 = scmp.ne.s32.totalorder %s418, %s419
    %p431 = scmp.eq.s32.totalorder %s28, 1
    %p432 = por %p430, %p431
    %p434 = scmp.ne.s32.totalorder %s419, %s433
    %p435 = scmp.eq.s32.totalorder %s28, 0
    %p436 = por %p434, %p435
    %p437 = scmp.le.s32.totalorder 1, %s22
    %p438 = scmp.lt.s32.totalorder %s22, 3
    %p439 = pnand %p437, %p438
    %p440 = pneg %p439
    // Predicated region
    $region9: #{t5_forward.3} parent=5 // pred_check
      _
    $region10: #{t5_forward.3} parent=5 // pred_check_branch
      %442 = sbr.rel (%p439) target = $region12
    $region11: #{t5_forward.3} parent=5 // pred_region
      %s443 = ssub.s32 %s22, 1
      // Predicated region
      $region13: #{t5_forward.3} parent=11 // pred_check
        %p444 = pneg %p43
      $region14: #{t5_forward.3} parent=11 // pred_check_branch
        %446 = sbr.rel (%p444) target = $region16
      $region15: #{t5_forward.3} parent=11 // pred_region
        _
      $region16: #{t5_forward.3} parent=11 // pred_fallthru
        _
      // Predicated region
      $region17: #{t5_forward.3} parent=11 // pred_check
        %p447 = pneg %p64
      $region18: #{t5_forward.3} parent=11 // pred_check_branch
        %449 = sbr.rel (%p447) target = $region20
      $region19: #{t5_forward.3} parent=11 // pred_region
        _
      $region20: #{t5_forward.3} parent=11 // pred_fallthru
        _
      // Predicated region
      $region21: #{t5_forward.3} parent=11 // pred_check
        %p450 = pneg %p85
      $region22: #{t5_forward.3} parent=11 // pred_check_branch
        %452 = sbr.rel (%p450) target = $region24
      $region23: #{t5_forward.3} parent=11 // pred_region
        _
      $region24: #{t5_forward.3} parent=11 // pred_fallthru
        _
      // Predicated region
      $region25: #{t5_forward.3} parent=11 // pred_check
        %p453 = pneg %p106
      $region26: #{t5_forward.3} parent=11 // pred_check_branch
        %455 = sbr.rel (%p453) target = $region28
      $region27: #{t5_forward.3} parent=11 // pred_region
        _
      $region28: #{t5_forward.3} parent=11 // pred_fallthru
        _
      // Predicated region
      $region29: #{t5_forward.3} parent=11 // pred_check
        %p456 = pneg %p387
      $region30: #{t5_forward.3} parent=11 // pred_check_branch
        %458 = sbr.rel (%p456) target = $region32
      $region31: #{t5_forward.3} parent=11 // pred_region
        _
      $region32: #{t5_forward.3} parent=11 // pred_fallthru
        _
      // Predicated region
      $region33: #{t5_forward.3} parent=11 // pred_check
        %p459 = pneg %p408
      $region34: #{t5_forward.3} parent=11 // pred_check_branch
        %461 = sbr.rel (%p459) target = $region36
      $region35: #{t5_forward.3} parent=11 // pred_region
        _
      $region36: #{t5_forward.3} parent=11 // pred_fallthru
        _
    $region12: #{t5_forward.3} parent=5 // pred_fallthru
      _
    %p462 = scmp.lt.s32.totalorder %s22, 2
    // Predicated region
    $region37: #{t5_forward.3} parent=5 // pred_check
      %p463 = pneg %p462
    $region38: #{t5_forward.3} parent=5 // pred_check_branch
      %465 = sbr.rel (%p463) target = $region40
    $region39: #{t5_forward.3} parent=5 // pred_region
      // Predicated region
      $region41: #{t5_forward.3} parent=39 // pred_check
        %p466 = pneg %p126
      $region42: #{t5_forward.3} parent=39 // pred_check_branch
        %468 = sbr.rel (%p466) target = $region44
      $region43: #{t5_forward.3} parent=39 // pred_region
        %p469 = scmp.lt.s32.totalorder %s22, 1
        %s470 = scalar_select %p469, %s22, 1
        %s471 = scalar_lea.vmem %s4, %s470
      $region44: #{t5_forward.3} parent=39 // pred_fallthru
        _
      // Predicated region
      $region45: #{t5_forward.3} parent=39 // pred_check
        %p472 = pneg %p152
      $region46: #{t5_forward.3} parent=39 // pred_check_branch
        %474 = sbr.rel (%p472) target = $region48
      $region47: #{t5_forward.3} parent=39 // pred_region
        %p475 = scmp.lt.s32.totalorder %s22, 1
        %s476 = scalar_select %p475, %s22, 1
        %s477 = smul.addr %s476, 4
        %s478 = smul.addr %s477, 4
        %s479 = scalar_lea.vmem %s5, %s478
      $region48: #{t5_forward.3} parent=39 // pred_fallthru
        _
      // Predicated region
      $region49: #{t5_forward.3} parent=39 // pred_check
        %p480 = pneg %p178
      $region50: #{t5_forward.3} parent=39 // pred_check_branch
        %482 = sbr.rel (%p480) target = $region52
      $region51: #{t5_forward.3} parent=39 // pred_region
        %p483 = scmp.lt.s32.totalorder %s22, 1
        %s484 = scalar_select %p483, %s22, 1
        %s485 = smul.addr %s484, 4
        %s486 = smul.addr %s485, 4
        %s487 = scalar_lea.vmem %s6, %s486
      $region52: #{t5_forward.3} parent=39 // pred_fallthru
        _
      // Predicated region
      $region53: #{t5_forward.3} parent=39 // pred_check
        %p488 = pneg %p204
      $region54: #{t5_forward.3} parent=39 // pred_check_branch
        %490 = sbr.rel (%p488) target = $region56
      $region55: #{t5_forward.3} parent=39 // pred_region
        %p491 = scmp.lt.s32.totalorder %s22, 1
        %s492 = scalar_select %p491, %s22, 1
        %s493 = scalar_lea.vmem %s7, %s492
      $region56: #{t5_forward.3} parent=39 // pred_fallthru
        _
      // Predicated region
      $region57: #{t5_forward.3} parent=39 // pred_check
        %p494 = pneg %p230
      $region58: #{t5_forward.3} parent=39 // pred_check_branch
        %496 = sbr.rel (%p494) target = $region60
      $region59: #{t5_forward.3} parent=39 // pred_region
        %p497 = scmp.lt.s32.totalorder %s22, 1
        %s498 = scalar_select %p497, %s22, 1
        %s499 = smul.addr %s498, 4
        %s500 = smul.addr %s499, 4
        %s501 = scalar_lea.vmem %s8, %s500
      $region60: #{t5_forward.3} parent=39 // pred_fallthru
        _
      // Predicated region
      $region61: #{t5_forward.3} parent=39 // pred_check
        %p502 = pneg %p256
      $region62: #{t5_forward.3} parent=39 // pred_check_branch
        %504 = sbr.rel (%p502) target = $region64
      $region63: #{t5_forward.3} parent=39 // pred_region
        %p505 = scmp.lt.s32.totalorder %s22, 1
        %s506 = scalar_select %p505, %s22, 1
        %s507 = smul.addr %s506, 4
        %s508 = smul.addr %s507, 4
        %s509 = scalar_lea.vmem %s9, %s508
      $region64: #{t5_forward.3} parent=39 // pred_fallthru
        _
      // Predicated region
      $region65: #{t5_forward.3} parent=39 // pred_check
        %p510 = pneg %p282
      $region66: #{t5_forward.3} parent=39 // pred_check_branch
        %512 = sbr.rel (%p510) target = $region68
      $region67: #{t5_forward.3} parent=39 // pred_region
        %p513 = scmp.lt.s32.totalorder %s22, 1
        %s514 = scalar_select %p513, %s22, 1
        %s515 = smul.addr %s514, 4
        %s516 = smul.addr %s515, 4
        %s517 = scalar_lea.vmem %s10, %s516
      $region68: #{t5_forward.3} parent=39 // pred_fallthru
        _
      // Predicated region
      $region69: #{t5_forward.3} parent=39 // pred_check
        %p518 = pneg %p308
      $region70: #{t5_forward.3} parent=39 // pred_check_branch
        %520 = sbr.rel (%p518) target = $region72
      $region71: #{t5_forward.3} parent=39 // pred_region
        %p521 = scmp.lt.s32.totalorder %s22, 1
        %s522 = scalar_select %p521, %s22, 1
        %s523 = scalar_lea.vmem %s11, %s522
      $region72: #{t5_forward.3} parent=39 // pred_fallthru
        _
      // Predicated region
      $region73: #{t5_forward.3} parent=39 // pred_check
        %p524 = pneg %p334
      $region74: #{t5_forward.3} parent=39 // pred_check_branch
        %526 = sbr.rel (%p524) target = $region76
      $region75: #{t5_forward.3} parent=39 // pred_region
        %p527 = scmp.lt.s32.totalorder %s22, 1
        %s528 = scalar_select %p527, %s22, 1
        %s529 = smul.addr %s528, 4
        %s530 = smul.addr %s529, 4
        %s531 = scalar_lea.vmem %s12, %s530
      $region76: #{t5_forward.3} parent=39 // pred_fallthru
        _
      // Predicated region
      $region77: #{t5_forward.3} parent=39 // pred_check
        %p532 = pneg %p360
      $region78: #{t5_forward.3} parent=39 // pred_check_branch
        %534 = sbr.rel (%p532) target = $region80
      $region79: #{t5_forward.3} parent=39 // pred_region
        %p535 = scmp.lt.s32.totalorder %s22, 1
        %s536 = scalar_select %p535, %s22, 1
        %s537 = smul.addr %s536, 8
        %s538 = smul.addr %s537, 4
        %s539 = scalar_lea.vmem %s13, %s538
      $region80: #{t5_forward.3} parent=39 // pred_fallthru
        _
    $region40: #{t5_forward.3} parent=5 // pred_fallthru
      _
    %p540 = scmp.le.s32.totalorder 1, %s22
    %p541 = scmp.lt.s32.totalorder %s22, 3
    %p542 = pnand %p540, %p541
    %p543 = pneg %p542
    // Predicated region
    $region81: #{t5_forward.3} parent=5 // pred_check
      _
    $region82: #{t5_forward.3} parent=5 // pred_check_branch
      %545 = sbr.rel (%p542) target = $region84
    $region83: #{t5_forward.3} parent=5 // pred_region
      %s546 = ssub.s32 %s22, 1
      %p547 = pneg %p43
      %p548 = pneg %p40
      %p549 = pneg %p64
      %p550 = pneg %p61
      %p551 = pneg %p85
      %p552 = pneg %p82
      %p553 = pneg %p106
      %p554 = pneg %p103
      %p555 = scmp.lt.s32.totalorder %s27, 1
      %s556 = scalar_select %p555, %s27, 1
      %s557 = scalar_lea.vmem %s4, %s556
      %p558 = pneg %p132
      %p559 = pneg %p129
      %p560 = scmp.lt.s32.totalorder %s27, 1
      %s561 = scalar_select %p560, %s27, 1
      %s562 = smul.addr %s561, 4
      %s563 = smul.addr %s562, 4
      %s564 = scalar_lea.vmem %s5, %s563
      %p565 = pneg %p158
      %p566 = pneg %p155
      %p567 = scmp.lt.s32.totalorder %s27, 1
      %s568 = scalar_select %p567, %s27, 1
      %s569 = smul.addr %s568, 4
      %s570 = smul.addr %s569, 4
      %s571 = scalar_lea.vmem %s6, %s570
      %p572 = pneg %p184
      %p573 = pneg %p181
      %p574 = scmp.lt.s32.totalorder %s27, 1
      %s575 = scalar_select %p574, %s27, 1
      %s576 = scalar_lea.vmem %s7, %s575
      %p577 = pneg %p210
      %p578 = pneg %p207
      %p579 = scmp.lt.s32.totalorder %s27, 1
      %s580 = scalar_select %p579, %s27, 1
      %s581 = smul.addr %s580, 4
      %s582 = smul.addr %s581, 4
      %s583 = scalar_lea.vmem %s8, %s582
      %p584 = pneg %p236
      %p585 = pneg %p233
      %p586 = scmp.lt.s32.totalorder %s27, 1
      %s587 = scalar_select %p586, %s27, 1
      %s588 = smul.addr %s587, 4
      %s589 = smul.addr %s588, 4
      %s590 = scalar_lea.vmem %s9, %s589
      %p591 = pneg %p262
      %p592 = pneg %p259
      %p593 = scmp.lt.s32.totalorder %s27, 1
      %s594 = scalar_select %p593, %s27, 1
      %s595 = smul.addr %s594, 4
      %s596 = smul.addr %s595, 4
      %s597 = scalar_lea.vmem %s10, %s596
      %p598 = pneg %p288
      %p599 = pneg %p285
      %p600 = scmp.lt.s32.totalorder %s27, 1
      %s601 = scalar_select %p600, %s27, 1
      %s602 = scalar_lea.vmem %s11, %s601
      %p603 = pneg %p314
      %p604 = pneg %p311
      %p605 = scmp.lt.s32.totalorder %s27, 1
      %s606 = scalar_select %p605, %s27, 1
      %s607 = smul.addr %s606, 4
      %s608 = smul.addr %s607, 4
      %s609 = scalar_lea.vmem %s12, %s608
      %p610 = pneg %p340
      %p611 = pneg %p337
      %p612 = scmp.lt.s32.totalorder %s27, 1
      %s613 = scalar_select %p612, %s27, 1
      %s614 = smul.addr %s613, 8
      %s615 = smul.addr %s614, 4
      %s616 = scalar_lea.vmem %s13, %s615
      %p617 = pneg %p366
      %p618 = pneg %p363
      %p619 = pneg %p387
      %p620 = pneg %p384
      %p621 = pneg %p408
      %p622 = pneg %p405
      %p623 = pneg %p429
      %p624 = pneg %p426
      %p625 = scmp.lt.s32.totalorder %s27, 1
      %s626 = scalar_select %p625, %s27, 1
      %s627 = scalar_lea.vmem %s4, %s626
      %p628 = scmp.lt.s32.totalorder %s27, 1
      %s629 = scalar_select %p628, %s27, 1
      %s630 = smul.addr %s629, 4
      %s631 = smul.addr %s630, 4
      %s632 = scalar_lea.vmem %s5, %s631
      %p633 = scmp.lt.s32.totalorder %s27, 1
      %s634 = scalar_select %p633, %s27, 1
      %s635 = smul.addr %s634, 4
      %s636 = smul.addr %s635, 4
      %s637 = scalar_lea.vmem %s6, %s636
      %p638 = scmp.lt.s32.totalorder %s27, 1
      %s639 = scalar_select %p638, %s27, 1
      %s640 = scalar_lea.vmem %s7, %s639
      %p641 = scmp.lt.s32.totalorder %s27, 1
      %s642 = scalar_select %p641, %s27, 1
      %s643 = smul.addr %s642, 4
      %s644 = smul.addr %s643, 4
      %s645 = scalar_lea.vmem %s8, %s644
      %p646 = scmp.lt.s32.totalorder %s27, 1
      %s647 = scalar_select %p646, %s27, 1
      %s648 = smul.addr %s647, 4
      %s649 = smul.addr %s648, 4
      %s650 = scalar_lea.vmem %s9, %s649
      %p651 = scmp.lt.s32.totalorder %s27, 1
      %s652 = scalar_select %p651, %s27, 1
      %s653 = smul.addr %s652, 4
      %s654 = smul.addr %s653, 4
      %s655 = scalar_lea.vmem %s10, %s654
      %p656 = scmp.lt.s32.totalorder %s27, 1
      %s657 = scalar_select %p656, %s27, 1
      %s658 = scalar_lea.vmem %s11, %s657
      %p659 = scmp.lt.s32.totalorder %s27, 1
      %s660 = scalar_select %p659, %s27, 1
      %s661 = smul.addr %s660, 4
      %s662 = smul.addr %s661, 4
      %s663 = scalar_lea.vmem %s12, %s662
      %p664 = scmp.lt.s32.totalorder %s27, 1
      %s665 = scalar_select %p664, %s27, 1
      %s666 = smul.addr %s665, 8
      %s667 = smul.addr %s666, 4
      %s668 = scalar_lea.vmem %s13, %s667
      %p670 = scmp.eq.s32.totalorder %s27, 0
      // Predicated region
      $region85: #{t5_forward.3} parent=83 // pred_check
        %p671 = pneg %p670
      $region86: #{t5_forward.3} parent=83 // pred_check_branch
        %673 = sbr.rel (%p671) target = $region88
      $region87: #{t5_forward.3} parent=83 // pred_region
        %v674 = vld [vmem:[%s0] sm:$0xff]
        %v675 = vld [vmem:[%s0 + $0x8] sm:$0xff]
        %vm676 = vcmask 261120
        %677 = vst.msk [vmem:[#allocation2] sm:$0xff] %vm676, %v674
        %678 = vst.msk [vmem:[#allocation2 + $0x8] sm:$0xff] %vm676, %v675
      $region88: #{t5_forward.3} parent=83 // pred_fallthru
        _
      %v679 = vld [vmem:[#allocation2] sm:$0xff]
      %v680 = vld [vmem:[#allocation2 + $0x8] sm:$0xff]
      %v681 = vld [vmem:[%s627] sm:$0x1]
      %v682 = vmul.f32 %v679, %v679
      %v683 = vmul.f32 %v680, %v680
      %vm684 = vcmask 261120
      %v685 = vsel %vm684, %v682, 0.0
      %686 = vadd.xlane.f32.xlu0 %v685
      %v687 = vpop.xlane.xlu0 %686
      %v688 = vsel %vm684, %v683, 0.0
      %689 = vadd.xlane.f32.xlu0 %v688
      %v690 = vpop.xlane.xlu0 %689
      %v691 = vrcp.pop 32.0
      %v692 = vmul.f32 %v687, %v691
      %v693 = vmul.f32 %v690, %v691
      %v694 = vadd.f32 %v692, 1e-06
      %v695 = vadd.f32 %v693, 1e-06
      %v696 = vrsqrt.pop %v694
      %v697 = vrsqrt.pop %v695
      %v698 = vmul.f32 %v679, %v696
      %v699 = vmul.f32 %v680, %v697
      %v701 = vlaneseq
      %v702 = vshrl.u32 %v701, 7
      %v703 = vsub.s32 0, %v702
      %v704 = vrot.slane %v681, %v703
      %v706 = vmul.f32 %v698, %v704
      %v707 = vmul.f32 %v699, %v704
      %v708 = vld [vmem:[%s632] sm:$0xf]
      %v709 = vld [vmem:[%s632 + $0x4] sm:$0xf]
      %v710 = vld [vmem:[%s632 + $0x8] sm:$0xf]
      %v711 = vld [vmem:[%s632 + $0xc] sm:$0xf]
      %v712 = vpack.c.bf16 %v707, %v706
      %v717 = vunpack.c.l.b16 %v708
      %v718 = vunpack.c.l.b16 %v709
      %v719 = vunpack.c.l.b16 %v710
      %v720 = vunpack.c.l.b16 %v711
      %v721 = vpack.c.b16 %v718, %v717
      %v722 = vpack.c.b16 %v720, %v719
      %v726 = vsel %vm684, %v712, 0
      %728 = vmatprep.subr.bf16.mxu0 0
      %729 = vmatpush1.bf16.msra.mxu0 %v721
      %730 = vmatprep.subr.bf16.mxu0 0
      %731 = vmatpush1.bf16.msra.mxu0 %v722
      %732 = vmatprep.subr.bf16.mxu0 0
      %733 = vmatpush1.bf16.msra.mxu0 0
      %734 = vmatprep.subr.bf16.mxu0 0
      %735 = vmatpush1.bf16.msra.mxu0 0
      %736 = vmatprep.subr.bf16.mxu0 0
      %737 = vmatpush1.bf16.msra.mxu0 0
      %738 = vmatprep.subr.bf16.mxu0 0
      %739 = vmatpush1.bf16.msra.mxu0 0
      %740 = vmatprep.subr.bf16.mxu0 0
      %741 = vmatpush1.bf16.msra.mxu0 0
      %742 = vmatprep.subr.bf16.mxu0 0
      %743 = vmatpush1.bf16.msra.mxu0 0
      %744 = vmatprep.subr.bf16.mxu0 0
      %745 = vmatpush1.bf16.msra.mxu0 0
      %746 = vmatprep.subr.bf16.mxu0 0
      %747 = vmatpush1.bf16.msra.mxu0 0
      %748 = vmatprep.subr.bf16.mxu0 0
      %749 = vmatpush1.bf16.msra.mxu0 0
      %750 = vmatprep.subr.bf16.mxu0 0
      %751 = vmatpush1.bf16.msra.mxu0 0
      %752 = vmatprep.subr.bf16.mxu0 0
      %753 = vmatpush1.bf16.msra.mxu0 0
      %754 = vmatprep.subr.bf16.mxu0 0
      %755 = vmatpush1.bf16.msra.mxu0 0
      %756 = vmatprep.subr.bf16.mxu0 0
      %757 = vmatpush1.bf16.msra.mxu0 0
      %758 = vmatprep.subr.bf16.mxu0 0
      %759 = vmatpush1.bf16.msra.mxu0 0
      %760 = vmatprep.mubr.bf16.mxu0 0
      %761 = vmatmul.mubr.bf16.gmra.mrb[0].mxu0 %v726
      %v762 = vpop.f32.mrb[0].mxu0
      %v763 = vadd.f32 0.0, %v762
      %v764 = vpop.f32.mrb[0].mxu0
      %v765 = vpop.f32.mrb[0].mxu0
      %v766 = vadd.f32 0.0, %v765
      %v767 = vpop.f32.mrb[0].mxu0
      %768 = vdwg.mxu0
      %v769 = vld [vmem:[%s2] sm:$0xff]
      %v770 = vld [vmem:[%s2 + $0x8] sm:$0xff]
      %v771 = vld [vmem:[%s2 + $0x10] sm:$0xff]
      %v772 = vld [vmem:[%s2 + $0x18] sm:$0xff]
      %v773 = vld [vmem:[%s2 + $0x20] sm:$0xff]
      %v774 = vld [vmem:[%s2 + $0x28] sm:$0xff]
      %v775 = vld [vmem:[%s2 + $0x30] sm:$0xff]
      %v776 = vld [vmem:[%s2 + $0x38] sm:$0xff]
      %v777 = vpack.c.bf16 %v766, %v763
      %779 = vrot.lane.b32.xlu0 %v777, 96
      %v780 = vpop.permute.xlu0 %779
      %vm781 = vcmask 64512
      %v783 = vsel %vm781, %v777, 0
      %v786 = vsel %vm781, %v780, 0
      %788 = vmatprep.subr.bf16.mxu0 0
      %789 = vmatpush1.bf16.xpose.msra.mxu0 %v786
      %790 = vmatprep.subr.bf16.mxu0 0
      %791 = vmatpush1.bf16.xpose.msra.mxu0 0
      %792 = vmatprep.subr.bf16.mxu0 0
      %793 = vmatpush1.bf16.xpose.msra.mxu0 0
      %794 = vmatprep.subr.bf16.mxu0 0
      %795 = vmatpush1.bf16.xpose.msra.mxu0 0
      %796 = vmatprep.subr.bf16.mxu0 0
      %797 = vmatpush1.bf16.xpose.msra.mxu0 0
      %798 = vmatprep.subr.bf16.mxu0 0
      %799 = vmatpush1.bf16.xpose.msra.mxu0 0
      %800 = vmatprep.subr.bf16.mxu0 0
      %801 = vmatpush1.bf16.xpose.msra.mxu0 0
      %802 = vmatprep.subr.bf16.mxu0 0
      %803 = vmatpush1.bf16.xpose.msra.mxu0 0
      %804 = vmatprep.subr.bf16.mxu0 0
      %805 = vmatpush1.bf16.xpose.msra.mxu0 0
      %806 = vmatprep.subr.bf16.mxu0 0
      %807 = vmatpush1.bf16.xpose.msra.mxu0 0
      %808 = vmatprep.subr.bf16.mxu0 0
      %809 = vmatpush1.bf16.xpose.msra.mxu0 0
      %810 = vmatprep.subr.bf16.mxu0 0
      %811 = vmatpush1.bf16.xpose.msra.mxu0 0
      %812 = vmatprep.subr.bf16.mxu0 0
      %813 = vmatpush1.bf16.xpose.msra.mxu0 0
      %814 = vmatprep.subr.bf16.mxu0 0
      %815 = vmatpush1.bf16.xpose.msra.mxu0 0
      %816 = vmatprep.subr.bf16.mxu0 0
      %817 = vmatpush1.bf16.xpose.msra.mxu0 0
      %818 = vmatprep.subr.bf16.mxu0 0
      %819 = vmatpush1.bf16.xpose.msra.mxu0 0
      %820 = vmatprep.mubr.bf16.mxu0 0
      %821 = vmatmul.mubr.bf16.gmra.mrb[0].mxu0 %v783
      %v822 = vpop.f32.mrb[0].mxu0
      %v823 = vadd.f32 %v769, %v822
      %v824 = vpop.f32.mrb[0].mxu0
      %v825 = vpop.f32.mrb[0].mxu0
      %v826 = vadd.f32 %v770, %v825
      %v827 = vpop.f32.mrb[0].mxu0
      %828 = vdwg.mxu0
      %vm829 = vcmask 130048
      %v830 = vsel %vm829, %v823, -inf
      %831 = vmax.xlane.f32.xlu0 %v830
      %v832 = vpop.xlane.xlu0 %831
      %v833 = vsel %vm829, %v826, -inf
      %834 = vmax.xlane.f32.xlu0 %v833
      %v835 = vpop.xlane.xlu0 %834
      %v836 = vsub.f32 %v823, %v832
      %v837 = vsub.f32 %v826, %v835
      %v838 = vmul.f32 %v836, 1.442695
      %v839 = vpow.pop %v838
      %v840 = vmul.f32 %v837, 1.442695
      %v841 = vpow.pop %v840
      %v842 = vsel %vm829, %v839, 0.0
      %843 = vadd.xlane.f32.xlu0 %v842
      %v844 = vpop.xlane.xlu0 %843
      %v845 = vsel %vm829, %v841, 0.0
      %846 = vadd.xlane.f32.xlu0 %v845
      %v847 = vpop.xlane.xlu0 %846
      %v848 = vrcp.pop %v844
      %v849 = vrcp.pop %v847
      %v850 = vmul.f32 %v839, %v848
      %v851 = vmul.f32 %v841, %v849
      %v852 = vpack.c.bf16 %v851, %v850
      %853 = vrot.lane.b32.xlu0 %v777, 64
      %v854 = vpop.permute.xlu0 %853
      %v857 = vsel %vm829, %v852, 0
      %859 = vmatprep.subr.bf16.mxu0 0
      %860 = vmatpush1.bf16.msra.mxu0 %v854
      %861 = vmatprep.subr.bf16.mxu0 0
      %862 = vmatpush1.bf16.msra.mxu0 0
      %863 = vmatprep.subr.bf16.mxu0 0
      %864 = vmatpush1.bf16.msra.mxu0 0
      %865 = vmatprep.subr.bf16.mxu0 0
      %866 = vmatpush1.bf16.msra.mxu0 0
      %867 = vmatprep.subr.bf16.mxu0 0
      %868 = vmatpush1.bf16.msra.mxu0 0
      %869 = vmatprep.subr.bf16.mxu0 0
      %870 = vmatpush1.bf16.msra.mxu0 0
      %871 = vmatprep.subr.bf16.mxu0 0
      %872 = vmatpush1.bf16.msra.mxu0 0
      %873 = vmatprep.subr.bf16.mxu0 0
      %874 = vmatpush1.bf16.msra.mxu0 0
      %875 = vmatprep.subr.bf16.mxu0 0
      %876 = vmatpush1.bf16.msra.mxu0 0
      %877 = vmatprep.subr.bf16.mxu0 0
      %878 = vmatpush1.bf16.msra.mxu0 0
      %879 = vmatprep.subr.bf16.mxu0 0
      %880 = vmatpush1.bf16.msra.mxu0 0
      %881 = vmatprep.subr.bf16.mxu0 0
      %882 = vmatpush1.bf16.msra.mxu0 0
      %883 = vmatprep.subr.bf16.mxu0 0
      %884 = vmatpush1.bf16.msra.mxu0 0
      %885 = vmatprep.subr.bf16.mxu0 0
      %886 = vmatpush1.bf16.msra.mxu0 0
      %887 = vmatprep.subr.bf16.mxu0 0
      %888 = vmatpush1.bf16.msra.mxu0 0
      %889 = vmatprep.subr.bf16.mxu0 0
      %890 = vmatpush1.bf16.msra.mxu0 0
      %891 = vmatprep.mubr.bf16.mxu0 0
      %892 = vmatmul.mubr.bf16.gmra.mrb[0].mxu0 %v857
      %v893 = vpop.f32.mrb[0].mxu0
      %v894 = vadd.f32 0.0, %v893
      %v895 = vpop.f32.mrb[0].mxu0
      %v896 = vpop.f32.mrb[0].mxu0
      %v897 = vadd.f32 0.0, %v896
      %v898 = vpop.f32.mrb[0].mxu0
      %899 = vdwg.mxu0
      %v900 = vld [vmem:[%s637] sm:$0xf]
      %v901 = vpack.c.bf16 %v897, %v894
      %902 = vrot.lane.b32.xlu0 %v777, 120
      %v903 = vpop.permute.xlu0 %902
      %904 = vrot.lane.b32.xlu0 %v777, 88
      %v905 = vpop.permute.xlu0 %904
      %v907 = vsel %vm781, %v903, 0
      %v910 = vsel %vm781, %v905, 0
      %912 = vmatprep.subr.bf16.mxu0 0
      %913 = vmatpush1.bf16.xpose.msra.mxu0 %v910
      %914 = vmatprep.subr.bf16.mxu0 0
      %915 = vmatpush1.bf16.xpose.msra.mxu0 0
      %916 = vmatprep.subr.bf16.mxu0 0
      %917 = vmatpush1.bf16.xpose.msra.mxu0 0
      %918 = vmatprep.subr.bf16.mxu0 0
      %919 = vmatpush1.bf16.xpose.msra.mxu0 0
      %920 = vmatprep.subr.bf16.mxu0 0
      %921 = vmatpush1.bf16.xpose.msra.mxu0 0
      %922 = vmatprep.subr.bf16.mxu0 0
      %923 = vmatpush1.bf16.xpose.msra.mxu0 0
      %924 = vmatprep.subr.bf16.mxu0 0
      %925 = vmatpush1.bf16.xpose.msra.mxu0 0
      %926 = vmatprep.subr.bf16.mxu0 0
      %927 = vmatpush1.bf16.xpose.msra.mxu0 0
      %928 = vmatprep.subr.bf16.mxu0 0
      %929 = vmatpush1.bf16.xpose.msra.mxu0 0
      %930 = vmatprep.subr.bf16.mxu0 0
      %931 = vmatpush1.bf16.xpose.msra.mxu0 0
      %932 = vmatprep.subr.bf16.mxu0 0
      %933 = vmatpush1.bf16.xpose.msra.mxu0 0
      %934 = vmatprep.subr.bf16.mxu0 0
      %935 = vmatpush1.bf16.xpose.msra.mxu0 0
      %936 = vmatprep.subr.bf16.mxu0 0
      %937 = vmatpush1.bf16.xpose.msra.mxu0 0
      %938 = vmatprep.subr.bf16.mxu0 0
      %939 = vmatpush1.bf16.xpose.msra.mxu0 0
      %940 = vmatprep.subr.bf16.mxu0 0
      %941 = vmatpush1.bf16.xpose.msra.mxu0 0
      %942 = vmatprep.subr.bf16.mxu0 0
      %943 = vmatpush1.bf16.xpose.msra.mxu0 0
      %944 = vmatprep.mubr.bf16.mxu0 0
      %945 = vmatmul.mubr.bf16.gmra.mrb[0].mxu0 %v907
      %v946 = vpop.f32.mrb[0].mxu0
      %v947 = vadd.f32 %v771, %v946
      %v948 = vpop.f32.mrb[0].mxu0
      %v949 = vpop.f32.mrb[0].mxu0
      %v950 = vadd.f32 %v772, %v949
      %v951 = vpop.f32.mrb[0].mxu0
      %952 = vdwg.mxu0
      %v953 = vsel %vm829, %v947, -inf
      %954 = vmax.xlane.f32.xlu0 %v953
      %v955 = vpop.xlane.xlu0 %954
      %v956 = vsel %vm829, %v950, -inf
      %957 = vmax.xlane.f32.xlu0 %v956
      %v958 = vpop.xlane.xlu0 %957
      %v959 = vsub.f32 %v947, %v955
      %v960 = vsub.f32 %v950, %v958
      %v961 = vmul.f32 %v959, 1.442695
      %v962 = vpow.pop %v961
      %v963 = vmul.f32 %v960, 1.442695
      %v964 = vpow.pop %v963
      %v965 = vsel %vm829, %v962, 0.0
      %966 = vadd.xlane.f32.xlu0 %v965
      %v967 = vpop.xlane.xlu0 %966
      %v968 = vsel %vm829, %v964, 0.0
      %969 = vadd.xlane.f32.xlu0 %v968
      %v970 = vpop.xlane.xlu0 %969
      %v971 = vrcp.pop %v967
      %v972 = vrcp.pop %v970
      %v973 = vmul.f32 %v962, %v971
      %v974 = vmul.f32 %v964, %v972
      %v975 = vpack.c.bf16 %v974, %v973
      %976 = vrot.lane.b32.xlu0 %v777, 56
      %v977 = vpop.permute.xlu0 %976
      %v980 = vsel %vm829, %v975, 0
      %982 = vmatprep.subr.bf16.mxu0 0
      %983 = vmatpush1.bf16.msra.mxu0 %v977
      %984 = vmatprep.subr.bf16.mxu0 0
      %985 = vmatpush1.bf16.msra.mxu0 0
      %986 = vmatprep.subr.bf16.mxu0 0
      %987 = vmatpush1.bf16.msra.mxu0 0
      %988 = vmatprep.subr.bf16.mxu0 0
      %989 = vmatpush1.bf16.msra.mxu0 0
      %990 = vmatprep.subr.bf16.mxu0 0
      %991 = vmatpush1.bf16.msra.mxu0 0
      %992 = vmatprep.subr.bf16.mxu0 0
      %993 = vmatpush1.bf16.msra.mxu0 0
      %994 = vmatprep.subr.bf16.mxu0 0
      %995 = vmatpush1.bf16.msra.mxu0 0
      %996 = vmatprep.subr.bf16.mxu0 0
      %997 = vmatpush1.bf16.msra.mxu0 0
      %998 = vmatprep.subr.bf16.mxu0 0
      %999 = vmatpush1.bf16.msra.mxu0 0
      %1000 = vmatprep.subr.bf16.mxu0 0
      %1001 = vmatpush1.bf16.msra.mxu0 0
      %1002 = vmatprep.subr.bf16.mxu0 0
      %1003 = vmatpush1.bf16.msra.mxu0 0
      %1004 = vmatprep.subr.bf16.mxu0 0
      %1005 = vmatpush1.bf16.msra.mxu0 0
      %1006 = vmatprep.subr.bf16.mxu0 0
      %1007 = vmatpush1.bf16.msra.mxu0 0
      %1008 = vmatprep.subr.bf16.mxu0 0
      %1009 = vmatpush1.bf16.msra.mxu0 0
      %1010 = vmatprep.subr.bf16.mxu0 0
      %1011 = vmatpush1.bf16.msra.mxu0 0
      %1012 = vmatprep.subr.bf16.mxu0 0
      %1013 = vmatpush1.bf16.msra.mxu0 0
      %1014 = vmatprep.mubr.bf16.mxu0 0
      %1015 = vmatmul.mubr.bf16.gmra.mrb[0].mxu0 %v980
      %v1016 = vpop.f32.mrb[0].mxu0
      %v1017 = vadd.f32 0.0, %v1016
      %v1018 = vpop.f32.mrb[0].mxu0
      %v1019 = vpop.f32.mrb[0].mxu0
      %v1020 = vadd.f32 0.0, %v1019
      %v1021 = vpop.f32.mrb[0].mxu0
      %1022 = vdwg.mxu0
      %s1023 = scalar_lea.vmem %s637, 4
      %v1024 = vld [vmem:[%s1023] sm:$0xf]
      %v1025 = vpack.c.bf16 %v1020, %v1017
      %v1027 = vsel %vm781, %v1025, 0
      %vm1029 = vcmask 1043456
      %v1031 = vsel %vm1029, %v1024, 0
      %1033 = vmatprep.subr.bf16.mxu0 0
      %1034 = vmatpush1.bf16.msra.mxu0 %v1031
      %1035 = vmatprep.subr.bf16.mxu0 0
      %1036 = vmatpush1.bf16.msra.mxu0 0
      %1037 = vmatprep.subr.bf16.mxu0 0
      %1038 = vmatpush1.bf16.msra.mxu0 0
      %1039 = vmatprep.subr.bf16.mxu0 0
      %1040 = vmatpush1.bf16.msra.mxu0 0
      %1041 = vmatprep.subr.bf16.mxu0 0
      %1042 = vmatpush1.bf16.msra.mxu0 0
      %1043 = vmatprep.subr.bf16.mxu0 0
      %1044 = vmatpush1.bf16.msra.mxu0 0
      %1045 = vmatprep.subr.bf16.mxu0 0
      %1046 = vmatpush1.bf16.msra.mxu0 0
      %1047 = vmatprep.subr.bf16.mxu0 0
      %1048 = vmatpush1.bf16.msra.mxu0 0
      %1049 = vmatprep.subr.bf16.mxu0 0
      %1050 = vmatpush1.bf16.msra.mxu0 0
      %1051 = vmatprep.subr.bf16.mxu0 0
      %1052 = vmatpush1.bf16.msra.mxu0 0
      %1053 = vmatprep.subr.bf16.mxu0 0
      %1054 = vmatpush1.bf16.msra.mxu0 0
      %1055 = vmatprep.subr.bf16.mxu0 0
      %1056 = vmatpush1.bf16.msra.mxu0 0
      %1057 = vmatprep.subr.bf16.mxu0 0
      %1058 = vmatpush1.bf16.msra.mxu0 0
      %1059 = vmatprep.subr.bf16.mxu0 0
      %1060 = vmatpush1.bf16.msra.mxu0 0
      %1061 = vmatprep.subr.bf16.mxu0 0
      %1062 = vmatpush1.bf16.msra.mxu0 0
      %1063 = vmatprep.subr.bf16.mxu0 0
      %1064 = vmatpush1.bf16.msra.mxu0 0
      %1065 = vmatprep.mubr.bf16.mxu0 0
      %1066 = vmatmul.mubr.bf16.gmra.mrb[0].mxu0 %v1027
      %v1067 = vpop.f32.mrb[0].mxu0
      %v1068 = vadd.f32 0.0, %v1067
      %v1069 = vpop.f32.mrb[0].mxu0
      %v1070 = vpop.f32.mrb[0].mxu0
      %v1071 = vadd.f32 0.0, %v1070
      %v1072 = vpop.f32.mrb[0].mxu0
      %1073 = vdwg.mxu0
      %v1075 = vsel %vm781, %v901, 0
      %v1078 = vsel %vm1029, %v900, 0
      %1080 = vmatprep.subr.bf16.mxu0 0
      %1081 = vmatpush1.bf16.msra.mxu0 %v1078
      %1082 = vmatprep.subr.bf16.mxu0 0
      %1083 = vmatpush1.bf16.msra.mxu0 0
      %1084 = vmatprep.subr.bf16.mxu0 0
      %1085 = vmatpush1.bf16.msra.mxu0 0
      %1086 = vmatprep.subr.bf16.mxu0 0
      %1087 = vmatpush1.bf16.msra.mxu0 0
      %1088 = vmatprep.subr.bf16.mxu0 0
      %1089 = vmatpush1.bf16.msra.mxu0 0
      %1090 = vmatprep.subr.bf16.mxu0 0
      %1091 = vmatpush1.bf16.msra.mxu0 0
      %1092 = vmatprep.subr.bf16.mxu0 0
      %1093 = vmatpush1.bf16.msra.mxu0 0
      %1094 = vmatprep.subr.bf16.mxu0 0
      %1095 = vmatpush1.bf16.msra.mxu0 0
      %1096 = vmatprep.subr.bf16.mxu0 0
      %1097 = vmatpush1.bf16.msra.mxu0 0
      %1098 = vmatprep.subr.bf16.mxu0 0
      %1099 = vmatpush1.bf16.msra.mxu0 0
      %1100 = vmatprep.subr.bf16.mxu0 0
      %1101 = vmatpush1.bf16.msra.mxu0 0
      %1102 = vmatprep.subr.bf16.mxu0 0
      %1103 = vmatpush1.bf16.msra.mxu0 0
      %1104 = vmatprep.subr.bf16.mxu0 0
      %1105 = vmatpush1.bf16.msra.mxu0 0
      %1106 = vmatprep.subr.bf16.mxu0 0
      %1107 = vmatpush1.bf16.msra.mxu0 0
      %1108 = vmatprep.subr.bf16.mxu0 0
      %1109 = vmatpush1.bf16.msra.mxu0 0
      %1110 = vmatprep.subr.bf16.mxu0 0
      %1111 = vmatpush1.bf16.msra.mxu0 0
      %1112 = vmatprep.mubr.bf16.mxu0 0
      %1113 = vmatmul.mubr.bf16.gmra.mrb[0].mxu0 %v1075
      %v1114 = vpop.f32.mrb[0].mxu0
      %v1115 = vadd.f32 %v1068, %v1114
      %v1116 = vpop.f32.mrb[0].mxu0
      %v1117 = vpop.f32.mrb[0].mxu0
      %v1118 = vadd.f32 %v1071, %v1117
      %v1119 = vpop.f32.mrb[0].mxu0
      %1120 = vdwg.mxu0
      %1121 = vrot.lane.b32.xlu0 %v777, 112
      %v1122 = vpop.permute.xlu0 %1121
      %1123 = vrot.lane.b32.xlu0 %v777, 80
      %v1124 = vpop.permute.xlu0 %1123
      %v1126 = vsel %vm781, %v1122, 0
      %v1129 = vsel %vm781, %v1124, 0
      %1131 = vmatprep.subr.bf16.mxu0 0
      %1132 = vmatpush1.bf16.xpose.msra.mxu0 %v1129
      %1133 = vmatprep.subr.bf16.mxu0 0
      %1134 = vmatpush1.bf16.xpose.msra.mxu0 0
      %1135 = vmatprep.subr.bf16.mxu0 0
      %1136 = vmatpush1.bf16.xpose.msra.mxu0 0
      %1137 = vmatprep.subr.bf16.mxu0 0
      %1138 = vmatpush1.bf16.xpose.msra.mxu0 0
      %1139 = vmatprep.subr.bf16.mxu0 0
      %1140 = vmatpush1.bf16.xpose.msra.mxu0 0
      %1141 = vmatprep.subr.bf16.mxu0 0
      %1142 = vmatpush1.bf16.xpose.msra.mxu0 0
      %1143 = vmatprep.subr.bf16.mxu0 0
      %1144 = vmatpush1.bf16.xpose.msra.mxu0 0
      %1145 = vmatprep.subr.bf16.mxu0 0
      %1146 = vmatpush1.bf16.xpose.msra.mxu0 0
      %1147 = vmatprep.subr.bf16.mxu0 0
      %1148 = vmatpush1.bf16.xpose.msra.mxu0 0
      %1149 = vmatprep.subr.bf16.mxu0 0
      %1150 = vmatpush1.bf16.xpose.msra.mxu0 0
      %1151 = vmatprep.subr.bf16.mxu0 0
      %1152 = vmatpush1.bf16.xpose.msra.mxu0 0
      %1153 = vmatprep.subr.bf16.mxu0 0
      %1154 = vmatpush1.bf16.xpose.msra.mxu0 0
      %1155 = vmatprep.subr.bf16.mxu0 0
      %1156 = vmatpush1.bf16.xpose.msra.mxu0 0
      %1157 = vmatprep.subr.bf16.mxu0 0
      %1158 = vmatpush1.bf16.xpose.msra.mxu0 0
      %1159 = vmatprep.subr.bf16.mxu0 0
      %1160 = vmatpush1.bf16.xpose.msra.mxu0 0
      %1161 = vmatprep.subr.bf16.mxu0 0
      %1162 = vmatpush1.bf16.xpose.msra.mxu0 0
      %1163 = vmatprep.mubr.bf16.mxu0 0
      %1164 = vmatmul.mubr.bf16.gmra.mrb[0].mxu0 %v1126
      %v1165 = vpop.f32.mrb[0].mxu0
      %v1166 = vadd.f32 %v773, %v1165
      %v1167 = vpop.f32.mrb[0].mxu0
      %v1168 = vpop.f32.mrb[0].mxu0
      %v1169 = vadd.f32 %v774, %v1168
      %v1170 = vpop.f32.mrb[0].mxu0
      %1171 = vdwg.mxu0
      %v1172 = vsel %vm829, %v1166, -inf
      %1173 = vmax.xlane.f32.xlu0 %v1172
      %v1174 = vpop.xlane.xlu0 %1173
      %v1175 = vsel %vm829, %v1169, -inf
      %1176 = vmax.xlane.f32.xlu0 %v1175
      %v1177 = vpop.xlane.xlu0 %1176
      %v1178 = vsub.f32 %v1166, %v1174
      %v1179 = vsub.f32 %v1169, %v1177
      %v1180 = vmul.f32 %v1178, 1.442695
      %v1181 = vpow.pop %v1180
      %v1182 = vmul.f32 %v1179, 1.442695
      %v1183 = vpow.pop %v1182
      %v1184 = vsel %vm829, %v1181, 0.0
      %1185 = vadd.xlane.f32.xlu0 %v1184
      %v1186 = vpop.xlane.xlu0 %1185
      %v1187 = vsel %vm829, %v1183, 0.0
      %1188 = vadd.xlane.f32.xlu0 %v1187
      %v1189 = vpop.xlane.xlu0 %1188
      %v1190 = vrcp.pop %v1186
      %v1191 = vrcp.pop %v1189
      %v1192 = vmul.f32 %v1181, %v1190
      %v1193 = vmul.f32 %v1183, %v1191
      %v1194 = vpack.c.bf16 %v1193, %v1192
      %1195 = vrot.lane.b32.xlu0 %v777, 48
      %v1196 = vpop.permute.xlu0 %1195
      %v1199 = vsel %vm829, %v1194, 0
      %1201 = vmatprep.subr.bf16.mxu0 0
      %1202 = vmatpush1.bf16.msra.mxu0 %v1196
      %1203 = vmatprep.subr.bf16.mxu0 0
      %1204 = vmatpush1.bf16.msra.mxu0 0
      %1205 = vmatprep.subr.bf16.mxu0 0
      %1206 = vmatpush1.bf16.msra.mxu0 0
      %1207 = vmatprep.subr.bf16.mxu0 0
      %1208 = vmatpush1.bf16.msra.mxu0 0
      %1209 = vmatprep.subr.bf16.mxu0 0
      %1210 = vmatpush1.bf16.msra.mxu0 0
      %1211 = vmatprep.subr.bf16.mxu0 0
      %1212 = vmatpush1.bf16.msra.mxu0 0
      %1213 = vmatprep.subr.bf16.mxu0 0
      %1214 = vmatpush1.bf16.msra.mxu0 0
      %1215 = vmatprep.subr.bf16.mxu0 0
      %1216 = vmatpush1.bf16.msra.mxu0 0
      %1217 = vmatprep.subr.bf16.mxu0 0
      %1218 = vmatpush1.bf16.msra.mxu0 0
      %1219 = vmatprep.subr.bf16.mxu0 0
      %1220 = vmatpush1.bf16.msra.mxu0 0
      %1221 = vmatprep.subr.bf16.mxu0 0
      %1222 = vmatpush1.bf16.msra.mxu0 0
      %1223 = vmatprep.subr.bf16.mxu0 0
      %1224 = vmatpush1.bf16.msra.mxu0 0
      %1225 = vmatprep.subr.bf16.mxu0 0
      %1226 = vmatpush1.bf16.msra.mxu0 0
      %1227 = vmatprep.subr.bf16.mxu0 0
      %1228 = vmatpush1.bf16.msra.mxu0 0
      %1229 = vmatprep.subr.bf16.mxu0 0
      %1230 = vmatpush1.bf16.msra.mxu0 0
      %1231 = vmatprep.subr.bf16.mxu0 0
      %1232 = vmatpush1.bf16.msra.mxu0 0
      %1233 = vmatprep.mubr.bf16.mxu0 0
      %1234 = vmatmul.mubr.bf16.gmra.mrb[0].mxu0 %v1199
      %v1235 = vpop.f32.mrb[0].mxu0
      %v1236 = vadd.f32 0.0, %v1235
      %v1237 = vpop.f32.mrb[0].mxu0
      %v1238 = vpop.f32.mrb[0].mxu0
      %v1239 = vadd.f32 0.0, %v1238
      %v1240 = vpop.f32.mrb[0].mxu0
      %1241 = vdwg.mxu0
      %s1242 = scalar_lea.vmem %s637, 8
      %v1243 = vld [vmem:[%s1242] sm:$0xf]
      %v1244 = vpack.c.bf16 %v1239, %v1236
      %v1246 = vsel %vm781, %v1244, 0
      %v1249 = vsel %vm1029, %v1243, 0
      %1251 = vmatprep.subr.bf16.mxu0 0
      %1252 = vmatpush1.bf16.msra.mxu0 %v1249
      %1253 = vmatprep.subr.bf16.mxu0 0
      %1254 = vmatpush1.bf16.msra.mxu0 0
      %1255 = vmatprep.subr.bf16.mxu0 0
      %1256 = vmatpush1.bf16.msra.mxu0 0
      %1257 = vmatprep.subr.bf16.mxu0 0
      %1258 = vmatpush1.bf16.msra.mxu0 0
      %1259 = vmatprep.subr.bf16.mxu0 0
      %1260 = vmatpush1.bf16.msra.mxu0 0
      %1261 = vmatprep.subr.bf16.mxu0 0
      %1262 = vmatpush1.bf16.msra.mxu0 0
      %1263 = vmatprep.subr.bf16.mxu0 0
      %1264 = vmatpush1.bf16.msra.mxu0 0
      %1265 = vmatprep.subr.bf16.mxu0 0
      %1266 = vmatpush1.bf16.msra.mxu0 0
      %1267 = vmatprep.subr.bf16.mxu0 0
      %1268 = vmatpush1.bf16.msra.mxu0 0
      %1269 = vmatprep.subr.bf16.mxu0 0
      %1270 = vmatpush1.bf16.msra.mxu0 0
      %1271 = vmatprep.subr.bf16.mxu0 0
      %1272 = vmatpush1.bf16.msra.mxu0 0
      %1273 = vmatprep.subr.bf16.mxu0 0
      %1274 = vmatpush1.bf16.msra.mxu0 0
      %1275 = vmatprep.subr.bf16.mxu0 0
      %1276 = vmatpush1.bf16.msra.mxu0 0
      %1277 = vmatprep.subr.bf16.mxu0 0
      %1278 = vmatpush1.bf16.msra.mxu0 0
      %1279 = vmatprep.subr.bf16.mxu0 0
      %1280 = vmatpush1.bf16.msra.mxu0 0
      %1281 = vmatprep.subr.bf16.mxu0 0
      %1282 = vmatpush1.bf16.msra.mxu0 0
      %1283 = vmatprep.mubr.bf16.mxu0 0
      %1284 = vmatmul.mubr.bf16.gmra.mrb[0].mxu0 %v1246
      %v1285 = vpop.f32.mrb[0].mxu0
      %v1286 = vadd.f32 0.0, %v1285
      %v1287 = vpop.f32.mrb[0].mxu0
      %v1288 = vpop.f32.mrb[0].mxu0
      %v1289 = vadd.f32 0.0, %v1288
      %v1290 = vpop.f32.mrb[0].mxu0
      %1291 = vdwg.mxu0
      %v1292 = vadd.f32 %v1115, %v1286
      %v1293 = vadd.f32 %v1118, %v1289
      %1294 = vrot.lane.b32.xlu0 %v777, 104
      %v1295 = vpop.permute.xlu0 %1294
      %1296 = vrot.lane.b32.xlu0 %v777, 72
      %v1297 = vpop.permute.xlu0 %1296
      %v1299 = vsel %vm781, %v1295, 0
      %v1302 = vsel %vm781, %v1297, 0
      %1304 = vmatprep.subr.bf16.mxu0 0
      %1305 = vmatpush1.bf16.xpose.msra.mxu0 %v1302
      %1306 = vmatprep.subr.bf16.mxu0 0
      %1307 = vmatpush1.bf16.xpose.msra.mxu0 0
      %1308 = vmatprep.subr.bf16.mxu0 0
      %1309 = vmatpush1.bf16.xpose.msra.mxu0 0
      %1310 = vmatprep.subr.bf16.mxu0 0
      %1311 = vmatpush1.bf16.xpose.msra.mxu0 0
      %1312 = vmatprep.subr.bf16.mxu0 0
      %1313 = vmatpush1.bf16.xpose.msra.mxu0 0
      %1314 = vmatprep.subr.bf16.mxu0 0
      %1315 = vmatpush1.bf16.xpose.msra.mxu0 0
      %1316 = vmatprep.subr.bf16.mxu0 0
      %1317 = vmatpush1.bf16.xpose.msra.mxu0 0
      %1318 = vmatprep.subr.bf16.mxu0 0
      %1319 = vmatpush1.bf16.xpose.msra.mxu0 0
      %1320 = vmatprep.subr.bf16.mxu0 0
      %1321 = vmatpush1.bf16.xpose.msra.mxu0 0
      %1322 = vmatprep.subr.bf16.mxu0 0
      %1323 = vmatpush1.bf16.xpose.msra.mxu0 0
      %1324 = vmatprep.subr.bf16.mxu0 0
      %1325 = vmatpush1.bf16.xpose.msra.mxu0 0
      %1326 = vmatprep.subr.bf16.mxu0 0
      %1327 = vmatpush1.bf16.xpose.msra.mxu0 0
      %1328 = vmatprep.subr.bf16.mxu0 0
      %1329 = vmatpush1.bf16.xpose.msra.mxu0 0
      %1330 = vmatprep.subr.bf16.mxu0 0
      %1331 = vmatpush1.bf16.xpose.msra.mxu0 0
      %1332 = vmatprep.subr.bf16.mxu0 0
      %1333 = vmatpush1.bf16.xpose.msra.mxu0 0
      %1334 = vmatprep.subr.bf16.mxu0 0
      %1335 = vmatpush1.bf16.xpose.msra.mxu0 0
      %1336 = vmatprep.mubr.bf16.mxu0 0
      %1337 = vmatmul.mubr.bf16.gmra.mrb[0].mxu0 %v1299
      %v1338 = vpop.f32.mrb[0].mxu0
      %v1339 = vadd.f32 %v775, %v1338
      %v1340 = vpop.f32.mrb[0].mxu0
      %v1341 = vpop.f32.mrb[0].mxu0
      %v1342 = vadd.f32 %v776, %v1341
      %v1343 = vpop.f32.mrb[0].mxu0
      %1344 = vdwg.mxu0
      %v1345 = vsel %vm829, %v1339, -inf
      %1346 = vmax.xlane.f32.xlu0 %v1345
      %v1347 = vpop.xlane.xlu0 %1346
      %v1348 = vsel %vm829, %v1342, -inf
      %1349 = vmax.xlane.f32.xlu0 %v1348
      %v1350 = vpop.xlane.xlu0 %1349
      %v1351 = vsub.f32 %v1339, %v1347
      %v1352 = vsub.f32 %v1342, %v1350
      %v1353 = vmul.f32 %v1351, 1.442695
      %v1354 = vpow.pop %v1353
      %v1355 = vmul.f32 %v1352, 1.442695
      %v1356 = vpow.pop %v1355
      %v1357 = vsel %vm829, %v1354, 0.0
      %1358 = vadd.xlane.f32.xlu0 %v1357
      %v1359 = vpop.xlane.xlu0 %1358
      %v1360 = vsel %vm829, %v1356, 0.0
      %1361 = vadd.xlane.f32.xlu0 %v1360
      %v1362 = vpop.xlane.xlu0 %1361
      %v1363 = vrcp.pop %v1359
      %v1364 = vrcp.pop %v1362
      %v1365 = vmul.f32 %v1354, %v1363
      %v1366 = vmul.f32 %v1356, %v1364
      %v1367 = vpack.c.bf16 %v1366, %v1365
      %1368 = vrot.lane.b32.xlu0 %v777, 40
      %v1369 = vpop.permute.xlu0 %1368
      %v1372 = vsel %vm829, %v1367, 0
      %1374 = vmatprep.subr.bf16.mxu0 0
      %1375 = vmatpush1.bf16.msra.mxu0 %v1369
      %1376 = vmatprep.subr.bf16.mxu0 0
      %1377 = vmatpush1.bf16.msra.mxu0 0
      %1378 = vmatprep.subr.bf16.mxu0 0
      %1379 = vmatpush1.bf16.msra.mxu0 0
      %1380 = vmatprep.subr.bf16.mxu0 0
      %1381 = vmatpush1.bf16.msra.mxu0 0
      %1382 = vmatprep.subr.bf16.mxu0 0
      %1383 = vmatpush1.bf16.msra.mxu0 0
      %1384 = vmatprep.subr.bf16.mxu0 0
      %1385 = vmatpush1.bf16.msra.mxu0 0
      %1386 = vmatprep.subr.bf16.mxu0 0
      %1387 = vmatpush1.bf16.msra.mxu0 0
      %1388 = vmatprep.subr.bf16.mxu0 0
      %1389 = vmatpush1.bf16.msra.mxu0 0
      %1390 = vmatprep.subr.bf16.mxu0 0
      %1391 = vmatpush1.bf16.msra.mxu0 0
      %1392 = vmatprep.subr.bf16.mxu0 0
      %1393 = vmatpush1.bf16.msra.mxu0 0
      %1394 = vmatprep.subr.bf16.mxu0 0
      %1395 = vmatpush1.bf16.msra.mxu0 0
      %1396 = vmatprep.subr.bf16.mxu0 0
      %1397 = vmatpush1.bf16.msra.mxu0 0
      %1398 = vmatprep.subr.bf16.mxu0 0
      %1399 = vmatpush1.bf16.msra.mxu0 0
      %1400 = vmatprep.subr.bf16.mxu0 0
      %1401 = vmatpush1.bf16.msra.mxu0 0
      %1402 = vmatprep.subr.bf16.mxu0 0
      %1403 = vmatpush1.bf16.msra.mxu0 0
      %1404 = vmatprep.subr.bf16.mxu0 0
      %1405 = vmatpush1.bf16.msra.mxu0 0
      %1406 = vmatprep.mubr.bf16.mxu0 0
      %1407 = vmatmul.mubr.bf16.gmra.mrb[0].mxu0 %v1372
      %v1408 = vpop.f32.mrb[0].mxu0
      %v1409 = vadd.f32 0.0, %v1408
      %v1410 = vpop.f32.mrb[0].mxu0
      %v1411 = vpop.f32.mrb[0].mxu0
      %v1412 = vadd.f32 0.0, %v1411
      %v1413 = vpop.f32.mrb[0].mxu0
      %1414 = vdwg.mxu0
      %s1415 = scalar_lea.vmem %s637, 12
      %v1416 = vld [vmem:[%s1415] sm:$0xf]
      %v1417 = vpack.c.bf16 %v1412, %v1409
      %v1419 = vsel %vm781, %v1417, 0
      %v1422 = vsel %vm1029, %v1416, 0
      %1424 = vmatprep.subr.bf16.mxu0 0
      %1425 = vmatpush1.bf16.msra.mxu0 %v1422
      %1426 = vmatprep.subr.bf16.mxu0 0
      %1427 = vmatpush1.bf16.msra.mxu0 0
      %1428 = vmatprep.subr.bf16.mxu0 0
      %1429 = vmatpush1.bf16.msra.mxu0 0
      %1430 = vmatprep.subr.bf16.mxu0 0
      %1431 = vmatpush1.bf16.msra.mxu0 0
      %1432 = vmatprep.subr.bf16.mxu0 0
      %1433 = vmatpush1.bf16.msra.mxu0 0
      %1434 = vmatprep.subr.bf16.mxu0 0
      %1435 = vmatpush1.bf16.msra.mxu0 0
      %1436 = vmatprep.subr.bf16.mxu0 0
      %1437 = vmatpush1.bf16.msra.mxu0 0
      %1438 = vmatprep.subr.bf16.mxu0 0
      %1439 = vmatpush1.bf16.msra.mxu0 0
      %1440 = vmatprep.subr.bf16.mxu0 0
      %1441 = vmatpush1.bf16.msra.mxu0 0
      %1442 = vmatprep.subr.bf16.mxu0 0
      %1443 = vmatpush1.bf16.msra.mxu0 0
      %1444 = vmatprep.subr.bf16.mxu0 0
      %1445 = vmatpush1.bf16.msra.mxu0 0
      %1446 = vmatprep.subr.bf16.mxu0 0
      %1447 = vmatpush1.bf16.msra.mxu0 0
      %1448 = vmatprep.subr.bf16.mxu0 0
      %1449 = vmatpush1.bf16.msra.mxu0 0
      %1450 = vmatprep.subr.bf16.mxu0 0
      %1451 = vmatpush1.bf16.msra.mxu0 0
      %1452 = vmatprep.subr.bf16.mxu0 0
      %1453 = vmatpush1.bf16.msra.mxu0 0
      %1454 = vmatprep.subr.bf16.mxu0 0
      %1455 = vmatpush1.bf16.msra.mxu0 0
      %1456 = vmatprep.mubr.bf16.mxu0 0
      %1457 = vmatmul.mubr.bf16.gmra.mrb[0].mxu0 %v1419
      %v1458 = vpop.f32.mrb[0].mxu0
      %v1459 = vadd.f32 0.0, %v1458
      %v1460 = vpop.f32.mrb[0].mxu0
      %v1461 = vpop.f32.mrb[0].mxu0
      %v1462 = vadd.f32 0.0, %v1461
      %v1463 = vpop.f32.mrb[0].mxu0
      %1464 = vdwg.mxu0
      %v1465 = vadd.f32 %v1292, %v1459
      %v1466 = vadd.f32 %v1293, %v1462
      %v1467 = vadd.f32 %v679, %v1465
      %v1468 = vadd.f32 %v680, %v1466
      %v1469 = vld [vmem:[%s640] sm:$0x1]
      %v1470 = vmul.f32 %v1467, %v1467
      %v1471 = vmul.f32 %v1468, %v1468
      %v1472 = vsel %vm684, %v1470, 0.0
      %1473 = vadd.xlane.f32.xlu0 %v1472
      %v1474 = vpop.xlane.xlu0 %1473
      %v1475 = vsel %vm684, %v1471, 0.0
      %1476 = vadd.xlane.f32.xlu0 %v1475
      %v1477 = vpop.xlane.xlu0 %1476
      %v1478 = vmul.f32 %v1474, %v691
      %v1479 = vmul.f32 %v1477, %v691
      %v1480 = vadd.f32 %v1478, 1e-06
      %v1481 = vadd.f32 %v1479, 1e-06
      %v1482 = vrsqrt.pop %v1480
      %v1483 = vrsqrt.pop %v1481
      %v1484 = vmul.f32 %v1467, %v1482
      %v1485 = vmul.f32 %v1468, %v1483
      %v1487 = vlaneseq
      %v1488 = vshrl.u32 %v1487, 7
      %v1489 = vsub.s32 0, %v1488
      %v1490 = vrot.slane %v1469, %v1489
      %v1492 = vmul.f32 %v1484, %v1490
      %v1493 = vmul.f32 %v1485, %v1490
      %v1494 = vld [vmem:[%s645] sm:$0xf]
      %v1495 = vld [vmem:[%s645 + $0x4] sm:$0xf]
      %v1496 = vld [vmem:[%s645 + $0x8] sm:$0xf]
      %v1497 = vld [vmem:[%s645 + $0xc] sm:$0xf]
      %v1498 = vpack.c.bf16 %v1493, %v1492
      %v1503 = vunpack.c.l.b16 %v1494
      %v1504 = vunpack.c.l.b16 %v1495
      %v1505 = vunpack.c.l.b16 %v1496
      %v1506 = vunpack.c.l.b16 %v1497
      %v1507 = vpack.c.b16 %v1504, %v1503
      %v1508 = vpack.c.b16 %v1506, %v1505
      %v1512 = vsel %vm684, %v1498, 0
      %1514 = vmatprep.subr.bf16.mxu0 0
      %1515 = vmatpush1.bf16.msra.mxu0 %v1507
      %1516 = vmatprep.subr.bf16.mxu0 0
      %1517 = vmatpush1.bf16.msra.mxu0 %v1508
      %1518 = vmatprep.subr.bf16.mxu0 0
      %1519 = vmatpush1.bf16.msra.mxu0 0
      %1520 = vmatprep.subr.bf16.mxu0 0
      %1521 = vmatpush1.bf16.msra.mxu0 0
      %1522 = vmatprep.subr.bf16.mxu0 0
      %1523 = vmatpush1.bf16.msra.mxu0 0
      %1524 = vmatprep.subr.bf16.mxu0 0
      %1525 = vmatpush1.bf16.msra.mxu0 0
      %1526 = vmatprep.subr.bf16.mxu0 0
      %1527 = vmatpush1.bf16.msra.mxu0 0
      %1528 = vmatprep.subr.bf16.mxu0 0
      %1529 = vmatpush1.bf16.msra.mxu0 0
      %1530 = vmatprep.subr.bf16.mxu0 0
      %1531 = vmatpush1.bf16.msra.mxu0 0
      %1532 = vmatprep.subr.bf16.mxu0 0
      %1533 = vmatpush1.bf16.msra.mxu0 0
      %1534 = vmatprep.subr.bf16.mxu0 0
      %1535 = vmatpush1.bf16.msra.mxu0 0
      %1536 = vmatprep.subr.bf16.mxu0 0
      %1537 = vmatpush1.bf16.msra.mxu0 0
      %1538 = vmatprep.subr.bf16.mxu0 0
      %1539 = vmatpush1.bf16.msra.mxu0 0
      %1540 = vmatprep.subr.bf16.mxu0 0
      %1541 = vmatpush1.bf16.msra.mxu0 0
      %1542 = vmatprep.subr.bf16.mxu0 0
      %1543 = vmatpush1.bf16.msra.mxu0 0
      %1544 = vmatprep.subr.bf16.mxu0 0
      %1545 = vmatpush1.bf16.msra.mxu0 0
      %1546 = vmatprep.mubr.bf16.mxu0 0
      %1547 = vmatmul.mubr.bf16.gmra.mrb[0].mxu0 %v1512
      %v1548 = vpop.f32.mrb[0].mxu0
      %v1549 = vadd.f32 0.0, %v1548
      %v1550 = vpop.f32.mrb[0].mxu0
      %v1551 = vpop.f32.mrb[0].mxu0
      %v1552 = vadd.f32 0.0, %v1551
      %v1553 = vpop.f32.mrb[0].mxu0
      %1554 = vdwg.mxu0
      %v1555 = vld [vmem:[%s1] sm:$0xff]
      %v1556 = vld [vmem:[%s1 + $0x8] sm:$0xff]
      %v1557 = vld [vmem:[%s650] sm:$0xf]
      %v1558 = vld [vmem:[%s650 + $0x4] sm:$0xf]
      %v1559 = vld [vmem:[%s650 + $0x8] sm:$0xf]
      %v1560 = vld [vmem:[%s650 + $0xc] sm:$0xf]
      %v1561 = vpack.c.bf16 %v1556, %v1555
      %v1566 = vunpack.c.l.b16 %v1557
      %v1567 = vunpack.c.l.b16 %v1558
      %v1568 = vunpack.c.l.b16 %v1559
      %v1569 = vunpack.c.l.b16 %v1560
      %v1570 = vpack.c.b16 %v1567, %v1566
      %v1571 = vpack.c.b16 %v1569, %v1568
      %v1575 = vsel %vm684, %v1561, 0
      %1577 = vmatprep.subr.bf16.mxu0 0
      %1578 = vmatpush1.bf16.msra.mxu0 %v1570
      %1579 = vmatprep.subr.bf16.mxu0 0
      %1580 = vmatpush1.bf16.msra.mxu0 %v1571
      %1581 = vmatprep.subr.bf16.mxu0 0
      %1582 = vmatpush1.bf16.msra.mxu0 0
      %1583 = vmatprep.subr.bf16.mxu0 0
      %1584 = vmatpush1.bf16.msra.mxu0 0
      %1585 = vmatprep.subr.bf16.mxu0 0
      %1586 = vmatpush1.bf16.msra.mxu0 0
      %1587 = vmatprep.subr.bf16.mxu0 0
      %1588 = vmatpush1.bf16.msra.mxu0 0
      %1589 = vmatprep.subr.bf16.mxu0 0
      %1590 = vmatpush1.bf16.msra.mxu0 0
      %1591 = vmatprep.subr.bf16.mxu0 0
      %1592 = vmatpush1.bf16.msra.mxu0 0
      %1593 = vmatprep.subr.bf16.mxu0 0
      %1594 = vmatpush1.bf16.msra.mxu0 0
      %1595 = vmatprep.subr.bf16.mxu0 0
      %1596 = vmatpush1.bf16.msra.mxu0 0
      %1597 = vmatprep.subr.bf16.mxu0 0
      %1598 = vmatpush1.bf16.msra.mxu0 0
      %1599 = vmatprep.subr.bf16.mxu0 0
      %1600 = vmatpush1.bf16.msra.mxu0 0
      %1601 = vmatprep.subr.bf16.mxu0 0
      %1602 = vmatpush1.bf16.msra.mxu0 0
      %1603 = vmatprep.subr.bf16.mxu0 0
      %1604 = vmatpush1.bf16.msra.mxu0 0
      %1605 = vmatprep.subr.bf16.mxu0 0
      %1606 = vmatpush1.bf16.msra.mxu0 0
      %1607 = vmatprep.subr.bf16.mxu0 0
      %1608 = vmatpush1.bf16.msra.mxu0 0
      %1609 = vmatprep.mubr.bf16.mxu0 0
      %1610 = vmatmul.mubr.bf16.gmra.mrb[0].mxu0 %v1575
      %v1611 = vpop.f32.mrb[0].mxu0
      %v1612 = vadd.f32 0.0, %v1611
      %v1613 = vpop.f32.mrb[0].mxu0
      %v1614 = vpop.f32.mrb[0].mxu0
      %v1615 = vadd.f32 0.0, %v1614
      %v1616 = vpop.f32.mrb[0].mxu0
      %1617 = vdwg.mxu0
      %v1618 = vld [vmem:[%s3] sm:$0xff]
      %v1619 = vld [vmem:[%s3 + $0x8] sm:$0xff]
      %v1620 = vld [vmem:[%s3 + $0x10] sm:$0xff]
      %v1621 = vld [vmem:[%s3 + $0x18] sm:$0xff]
      %v1622 = vld [vmem:[%s3 + $0x20] sm:$0xff]
      %v1623 = vld [vmem:[%s3 + $0x28] sm:$0xff]
      %v1624 = vld [vmem:[%s3 + $0x30] sm:$0xff]
      %v1625 = vld [vmem:[%s3 + $0x38] sm:$0xff]
      %v1626 = vpack.c.bf16 %v1552, %v1549
      %v1627 = vpack.c.bf16 %v1615, %v1612
      %v1629 = vsel %vm781, %v1626, 0
      %v1632 = vsel %vm781, %v1627, 0
      %1634 = vmatprep.subr.bf16.mxu0 0
      %1635 = vmatpush1.bf16.xpose.msra.mxu0 %v1632
      %1636 = vmatprep.subr.bf16.mxu0 0
      %1637 = vmatpush1.bf16.xpose.msra.mxu0 0
      %1638 = vmatprep.subr.bf16.mxu0 0
      %1639 = vmatpush1.bf16.xpose.msra.mxu0 0
      %1640 = vmatprep.subr.bf16.mxu0 0
      %1641 = vmatpush1.bf16.xpose.msra.mxu0 0
      %1642 = vmatprep.subr.bf16.mxu0 0
      %1643 = vmatpush1.bf16.xpose.msra.mxu0 0
      %1644 = vmatprep.subr.bf16.mxu0 0
      %1645 = vmatpush1.bf16.xpose.msra.mxu0 0
      %1646 = vmatprep.subr.bf16.mxu0 0
      %1647 = vmatpush1.bf16.xpose.msra.mxu0 0
      %1648 = vmatprep.subr.bf16.mxu0 0
      %1649 = vmatpush1.bf16.xpose.msra.mxu0 0
      %1650 = vmatprep.subr.bf16.mxu0 0
      %1651 = vmatpush1.bf16.xpose.msra.mxu0 0
      %1652 = vmatprep.subr.bf16.mxu0 0
      %1653 = vmatpush1.bf16.xpose.msra.mxu0 0
      %1654 = vmatprep.subr.bf16.mxu0 0
      %1655 = vmatpush1.bf16.xpose.msra.mxu0 0
      %1656 = vmatprep.subr.bf16.mxu0 0
      %1657 = vmatpush1.bf16.xpose.msra.mxu0 0
      %1658 = vmatprep.subr.bf16.mxu0 0
      %1659 = vmatpush1.bf16.xpose.msra.mxu0 0
      %1660 = vmatprep.subr.bf16.mxu0 0
      %1661 = vmatpush1.bf16.xpose.msra.mxu0 0
      %1662 = vmatprep.subr.bf16.mxu0 0
      %1663 = vmatpush1.bf16.xpose.msra.mxu0 0
      %1664 = vmatprep.subr.bf16.mxu0 0
      %1665 = vmatpush1.bf16.xpose.msra.mxu0 0
      %1666 = vmatprep.mubr.bf16.mxu0 0
      %1667 = vmatmul.mubr.bf16.gmra.mrb[0].mxu0 %v1629
      %v1668 = vpop.f32.mrb[0].mxu0
      %v1669 = vadd.f32 %v1618, %v1668
      %v1670 = vpop.f32.mrb[0].mxu0
      %v1671 = vpop.f32.mrb[0].mxu0
      %v1672 = vadd.f32 %v1619, %v1671
      %v1673 = vpop.f32.mrb[0].mxu0
      %1674 = vdwg.mxu0
      %v1675 = vsel %vm829, %v1669, -inf
      %1676 = vmax.xlane.f32.xlu0 %v1675
      %v1677 = vpop.xlane.xlu0 %1676
      %v1678 = vsel %vm829, %v1672, -inf
      %1679 = vmax.xlane.f32.xlu0 %v1678
      %v1680 = vpop.xlane.xlu0 %1679
      %v1681 = vsub.f32 %v1669, %v1677
      %v1682 = vsub.f32 %v1672, %v1680
      %v1683 = vmul.f32 %v1681, 1.442695
      %v1684 = vpow.pop %v1683
      %v1685 = vmul.f32 %v1682, 1.442695
      %v1686 = vpow.pop %v1685
      %v1687 = vsel %vm829, %v1684, 0.0
      %1688 = vadd.xlane.f32.xlu0 %v1687
      %v1689 = vpop.xlane.xlu0 %1688
      %v1690 = vsel %vm829, %v1686, 0.0
      %1691 = vadd.xlane.f32.xlu0 %v1690
      %v1692 = vpop.xlane.xlu0 %1691
      %v1693 = vrcp.pop %v1689
      %v1694 = vrcp.pop %v1692
      %v1695 = vmul.f32 %v1684, %v1693
      %v1696 = vmul.f32 %v1686, %v1694
      %v1697 = vpack.c.bf16 %v1696, %v1695
      %1699 = vrot.lane.b32.xlu0 %v1627, 96
      %v1700 = vpop.permute.xlu0 %1699
      %v1703 = vsel %vm829, %v1697, 0
      %1705 = vmatprep.subr.bf16.mxu0 0
      %1706 = vmatpush1.bf16.msra.mxu0 %v1700
      %1707 = vmatprep.subr.bf16.mxu0 0
      %1708 = vmatpush1.bf16.msra.mxu0 0
      %1709 = vmatprep.subr.bf16.mxu0 0
      %1710 = vmatpush1.bf16.msra.mxu0 0
      %1711 = vmatprep.subr.bf16.mxu0 0
      %1712 = vmatpush1.bf16.msra.mxu0 0
      %1713 = vmatprep.subr.bf16.mxu0 0
      %1714 = vmatpush1.bf16.msra.mxu0 0
      %1715 = vmatprep.subr.bf16.mxu0 0
      %1716 = vmatpush1.bf16.msra.mxu0 0
      %1717 = vmatprep.subr.bf16.mxu0 0
      %1718 = vmatpush1.bf16.msra.mxu0 0
      %1719 = vmatprep.subr.bf16.mxu0 0
      %1720 = vmatpush1.bf16.msra.mxu0 0
      %1721 = vmatprep.subr.bf16.mxu0 0
      %1722 = vmatpush1.bf16.msra.mxu0 0
      %1723 = vmatprep.subr.bf16.mxu0 0
      %1724 = vmatpush1.bf16.msra.mxu0 0
      %1725 = vmatprep.subr.bf16.mxu0 0
      %1726 = vmatpush1.bf16.msra.mxu0 0
      %1727 = vmatprep.subr.bf16.mxu0 0
      %1728 = vmatpush1.bf16.msra.mxu0 0
      %1729 = vmatprep.subr.bf16.mxu0 0
      %1730 = vmatpush1.bf16.msra.mxu0 0
      %1731 = vmatprep.subr.bf16.mxu0 0
      %1732 = vmatpush1.bf16.msra.mxu0 0
      %1733 = vmatprep.subr.bf16.mxu0 0
      %1734 = vmatpush1.bf16.msra.mxu0 0
      %1735 = vmatprep.subr.bf16.mxu0 0
      %1736 = vmatpush1.bf16.msra.mxu0 0
      %1737 = vmatprep.mubr.bf16.mxu0 0
      %1738 = vmatmul.mubr.bf16.gmra.mrb[0].mxu0 %v1703
      %v1739 = vpop.f32.mrb[0].mxu0
      %v1740 = vadd.f32 0.0, %v1739
      %v1741 = vpop.f32.mrb[0].mxu0
      %v1742 = vpop.f32.mrb[0].mxu0
      %v1743 = vadd.f32 0.0, %v1742
      %v1744 = vpop.f32.mrb[0].mxu0
      %1745 = vdwg.mxu0
      %v1746 = vld [vmem:[%s655] sm:$0xf]
      %v1747 = vpack.c.bf16 %v1743, %v1740
      %1749 = vrot.lane.b32.xlu0 %v1626, 120
      %v1750 = vpop.permute.xlu0 %1749
      %1751 = vrot.lane.b32.xlu0 %v1627, 120
      %v1752 = vpop.permute.xlu0 %1751
      %v1754 = vsel %vm781, %v1750, 0
      %v1757 = vsel %vm781, %v1752, 0
      %1759 = vmatprep.subr.bf16.mxu0 0
      %1760 = vmatpush1.bf16.xpose.msra.mxu0 %v1757
      %1761 = vmatprep.subr.bf16.mxu0 0
      %1762 = vmatpush1.bf16.xpose.msra.mxu0 0
      %1763 = vmatprep.subr.bf16.mxu0 0
      %1764 = vmatpush1.bf16.xpose.msra.mxu0 0
      %1765 = vmatprep.subr.bf16.mxu0 0
      %1766 = vmatpush1.bf16.xpose.msra.mxu0 0
      %1767 = vmatprep.subr.bf16.mxu0 0
      %1768 = vmatpush1.bf16.xpose.msra.mxu0 0
      %1769 = vmatprep.subr.bf16.mxu0 0
      %1770 = vmatpush1.bf16.xpose.msra.mxu0 0
      %1771 = vmatprep.subr.bf16.mxu0 0
      %1772 = vmatpush1.bf16.xpose.msra.mxu0 0
      %1773 = vmatprep.subr.bf16.mxu0 0
      %1774 = vmatpush1.bf16.xpose.msra.mxu0 0
      %1775 = vmatprep.subr.bf16.mxu0 0
      %1776 = vmatpush1.bf16.xpose.msra.mxu0 0
      %1777 = vmatprep.subr.bf16.mxu0 0
      %1778 = vmatpush1.bf16.xpose.msra.mxu0 0
      %1779 = vmatprep.subr.bf16.mxu0 0
      %1780 = vmatpush1.bf16.xpose.msra.mxu0 0
      %1781 = vmatprep.subr.bf16.mxu0 0
      %1782 = vmatpush1.bf16.xpose.msra.mxu0 0
      %1783 = vmatprep.subr.bf16.mxu0 0
      %1784 = vmatpush1.bf16.xpose.msra.mxu0 0
      %1785 = vmatprep.subr.bf16.mxu0 0
      %1786 = vmatpush1.bf16.xpose.msra.mxu0 0
      %1787 = vmatprep.subr.bf16.mxu0 0
      %1788 = vmatpush1.bf16.xpose.msra.mxu0 0
      %1789 = vmatprep.subr.bf16.mxu0 0
      %1790 = vmatpush1.bf16.xpose.msra.mxu0 0
      %1791 = vmatprep.mubr.bf16.mxu0 0
      %1792 = vmatmul.mubr.bf16.gmra.mrb[0].mxu0 %v1754
      %v1793 = vpop.f32.mrb[0].mxu0
      %v1794 = vadd.f32 %v1620, %v1793
      %v1795 = vpop.f32.mrb[0].mxu0
      %v1796 = vpop.f32.mrb[0].mxu0
      %v1797 = vadd.f32 %v1621, %v1796
      %v1798 = vpop.f32.mrb[0].mxu0
      %1799 = vdwg.mxu0
      %v1800 = vsel %vm829, %v1794, -inf
      %1801 = vmax.xlane.f32.xlu0 %v1800
      %v1802 = vpop.xlane.xlu0 %1801
      %v1803 = vsel %vm829, %v1797, -inf
      %1804 = vmax.xlane.f32.xlu0 %v1803
      %v1805 = vpop.xlane.xlu0 %1804
      %v1806 = vsub.f32 %v1794, %v1802
      %v1807 = vsub.f32 %v1797, %v1805
      %v1808 = vmul.f32 %v1806, 1.442695
      %v1809 = vpow.pop %v1808
      %v1810 = vmul.f32 %v1807, 1.442695
      %v1811 = vpow.pop %v1810
      %v1812 = vsel %vm829, %v1809, 0.0
      %1813 = vadd.xlane.f32.xlu0 %v1812
      %v1814 = vpop.xlane.xlu0 %1813
      %v1815 = vsel %vm829, %v1811, 0.0
      %1816 = vadd.xlane.f32.xlu0 %v1815
      %v1817 = vpop.xlane.xlu0 %1816
      %v1818 = vrcp.pop %v1814
      %v1819 = vrcp.pop %v1817
      %v1820 = vmul.f32 %v1809, %v1818
      %v1821 = vmul.f32 %v1811, %v1819
      %v1822 = vpack.c.bf16 %v1821, %v1820
      %1823 = vrot.lane.b32.xlu0 %v1627, 88
      %v1824 = vpop.permute.xlu0 %1823
      %v1827 = vsel %vm829, %v1822, 0
      %1829 = vmatprep.subr.bf16.mxu0 0
      %1830 = vmatpush1.bf16.msra.mxu0 %v1824
      %1831 = vmatprep.subr.bf16.mxu0 0
      %1832 = vmatpush1.bf16.msra.mxu0 0
      %1833 = vmatprep.subr.bf16.mxu0 0
      %1834 = vmatpush1.bf16.msra.mxu0 0
      %1835 = vmatprep.subr.bf16.mxu0 0
      %1836 = vmatpush1.bf16.msra.mxu0 0
      %1837 = vmatprep.subr.bf16.mxu0 0
      %1838 = vmatpush1.bf16.msra.mxu0 0
      %1839 = vmatprep.subr.bf16.mxu0 0
      %1840 = vmatpush1.bf16.msra.mxu0 0
      %1841 = vmatprep.subr.bf16.mxu0 0
      %1842 = vmatpush1.bf16.msra.mxu0 0
      %1843 = vmatprep.subr.bf16.mxu0 0
      %1844 = vmatpush1.bf16.msra.mxu0 0
      %1845 = vmatprep.subr.bf16.mxu0 0
      %1846 = vmatpush1.bf16.msra.mxu0 0
      %1847 = vmatprep.subr.bf16.mxu0 0
      %1848 = vmatpush1.bf16.msra.mxu0 0
      %1849 = vmatprep.subr.bf16.mxu0 0
      %1850 = vmatpush1.bf16.msra.mxu0 0
      %1851 = vmatprep.subr.bf16.mxu0 0
      %1852 = vmatpush1.bf16.msra.mxu0 0
      %1853 = vmatprep.subr.bf16.mxu0 0
      %1854 = vmatpush1.bf16.msra.mxu0 0
      %1855 = vmatprep.subr.bf16.mxu0 0
      %1856 = vmatpush1.bf16.msra.mxu0 0
      %1857 = vmatprep.subr.bf16.mxu0 0
      %1858 = vmatpush1.bf16.msra.mxu0 0
      %1859 = vmatprep.subr.bf16.mxu0 0
      %1860 = vmatpush1.bf16.msra.mxu0 0
      %1861 = vmatprep.mubr.bf16.mxu0 0
      %1862 = vmatmul.mubr.bf16.gmra.mrb[0].mxu0 %v1827
      %v1863 = vpop.f32.mrb[0].mxu0
      %v1864 = vadd.f32 0.0, %v1863
      %v1865 = vpop.f32.mrb[0].mxu0
      %v1866 = vpop.f32.mrb[0].mxu0
      %v1867 = vadd.f32 0.0, %v1866
      %v1868 = vpop.f32.mrb[0].mxu0
      %1869 = vdwg.mxu0
      %s1870 = scalar_lea.vmem %s655, 4
      %v1871 = vld [vmem:[%s1870] sm:$0xf]
      %v1872 = vpack.c.bf16 %v1867, %v1864
      %v1874 = vsel %vm781, %v1872, 0
      %v1877 = vsel %vm1029, %v1871, 0
      %1879 = vmatprep.subr.bf16.mxu0 0
      %1880 = vmatpush1.bf16.msra.mxu0 %v1877
      %1881 = vmatprep.subr.bf16.mxu0 0
      %1882 = vmatpush1.bf16.msra.mxu0 0
      %1883 = vmatprep.subr.bf16.mxu0 0
      %1884 = vmatpush1.bf16.msra.mxu0 0
      %1885 = vmatprep.subr.bf16.mxu0 0
      %1886 = vmatpush1.bf16.msra.mxu0 0
      %1887 = vmatprep.subr.bf16.mxu0 0
      %1888 = vmatpush1.bf16.msra.mxu0 0
      %1889 = vmatprep.subr.bf16.mxu0 0
      %1890 = vmatpush1.bf16.msra.mxu0 0
      %1891 = vmatprep.subr.bf16.mxu0 0
      %1892 = vmatpush1.bf16.msra.mxu0 0
      %1893 = vmatprep.subr.bf16.mxu0 0
      %1894 = vmatpush1.bf16.msra.mxu0 0
      %1895 = vmatprep.subr.bf16.mxu0 0
      %1896 = vmatpush1.bf16.msra.mxu0 0
      %1897 = vmatprep.subr.bf16.mxu0 0
      %1898 = vmatpush1.bf16.msra.mxu0 0
      %1899 = vmatprep.subr.bf16.mxu0 0
      %1900 = vmatpush1.bf16.msra.mxu0 0
      %1901 = vmatprep.subr.bf16.mxu0 0
      %1902 = vmatpush1.bf16.msra.mxu0 0
      %1903 = vmatprep.subr.bf16.mxu0 0
      %1904 = vmatpush1.bf16.msra.mxu0 0
      %1905 = vmatprep.subr.bf16.mxu0 0
      %1906 = vmatpush1.bf16.msra.mxu0 0
      %1907 = vmatprep.subr.bf16.mxu0 0
      %1908 = vmatpush1.bf16.msra.mxu0 0
      %1909 = vmatprep.subr.bf16.mxu0 0
      %1910 = vmatpush1.bf16.msra.mxu0 0
      %1911 = vmatprep.mubr.bf16.mxu0 0
      %1912 = vmatmul.mubr.bf16.gmra.mrb[0].mxu0 %v1874
      %v1913 = vpop.f32.mrb[0].mxu0
      %v1914 = vadd.f32 0.0, %v1913
      %v1915 = vpop.f32.mrb[0].mxu0
      %v1916 = vpop.f32.mrb[0].mxu0
      %v1917 = vadd.f32 0.0, %v1916
      %v1918 = vpop.f32.mrb[0].mxu0
      %1919 = vdwg.mxu0
      %v1921 = vsel %vm781, %v1747, 0
      %v1924 = vsel %vm1029, %v1746, 0
      %1926 = vmatprep.subr.bf16.mxu0 0
      %1927 = vmatpush1.bf16.msra.mxu0 %v1924
      %1928 = vmatprep.subr.bf16.mxu0 0
      %1929 = vmatpush1.bf16.msra.mxu0 0
      %1930 = vmatprep.subr.bf16.mxu0 0
      %1931 = vmatpush1.bf16.msra.mxu0 0
      %1932 = vmatprep.subr.bf16.mxu0 0
      %1933 = vmatpush1.bf16.msra.mxu0 0
      %1934 = vmatprep.subr.bf16.mxu0 0
      %1935 = vmatpush1.bf16.msra.mxu0 0
      %1936 = vmatprep.subr.bf16.mxu0 0
      %1937 = vmatpush1.bf16.msra.mxu0 0
      %1938 = vmatprep.subr.bf16.mxu0 0
      %1939 = vmatpush1.bf16.msra.mxu0 0
      %1940 = vmatprep.subr.bf16.mxu0 0
      %1941 = vmatpush1.bf16.msra.mxu0 0
      %1942 = vmatprep.subr.bf16.mxu0 0
      %1943 = vmatpush1.bf16.msra.mxu0 0
      %1944 = vmatprep.subr.bf16.mxu0 0
      %1945 = vmatpush1.bf16.msra.mxu0 0
      %1946 = vmatprep.subr.bf16.mxu0 0
      %1947 = vmatpush1.bf16.msra.mxu0 0
      %1948 = vmatprep.subr.bf16.mxu0 0
      %1949 = vmatpush1.bf16.msra.mxu0 0
      %1950 = vmatprep.subr.bf16.mxu0 0
      %1951 = vmatpush1.bf16.msra.mxu0 0
      %1952 = vmatprep.subr.bf16.mxu0 0
      %1953 = vmatpush1.bf16.msra.mxu0 0
      %1954 = vmatprep.subr.bf16.mxu0 0
      %1955 = vmatpush1.bf16.msra.mxu0 0
      %1956 = vmatprep.subr.bf16.mxu0 0
      %1957 = vmatpush1.bf16.msra.mxu0 0
      %1958 = vmatprep.mubr.bf16.mxu0 0
      %1959 = vmatmul.mubr.bf16.gmra.mrb[0].mxu0 %v1921
      %v1960 = vpop.f32.mrb[0].mxu0
      %v1961 = vadd.f32 %v1914, %v1960
      %v1962 = vpop.f32.mrb[0].mxu0
      %v1963 = vpop.f32.mrb[0].mxu0
      %v1964 = vadd.f32 %v1917, %v1963
      %v1965 = vpop.f32.mrb[0].mxu0
      %1966 = vdwg.mxu0
      %1967 = vrot.lane.b32.xlu0 %v1626, 112
      %v1968 = vpop.permute.xlu0 %1967
      %1969 = vrot.lane.b32.xlu0 %v1627, 112
      %v1970 = vpop.permute.xlu0 %1969
      %v1972 = vsel %vm781, %v1968, 0
      %v1975 = vsel %vm781, %v1970, 0
      %1977 = vmatprep.subr.bf16.mxu0 0
      %1978 = vmatpush1.bf16.xpose.msra.mxu0 %v1975
      %1979 = vmatprep.subr.bf16.mxu0 0
      %1980 = vmatpush1.bf16.xpose.msra.mxu0 0
      %1981 = vmatprep.subr.bf16.mxu0 0
      %1982 = vmatpush1.bf16.xpose.msra.mxu0 0
      %1983 = vmatprep.subr.bf16.mxu0 0
      %1984 = vmatpush1.bf16.xpose.msra.mxu0 0
      %1985 = vmatprep.subr.bf16.mxu0 0
      %1986 = vmatpush1.bf16.xpose.msra.mxu0 0
      %1987 = vmatprep.subr.bf16.mxu0 0
      %1988 = vmatpush1.bf16.xpose.msra.mxu0 0
      %1989 = vmatprep.subr.bf16.mxu0 0
      %1990 = vmatpush1.bf16.xpose.msra.mxu0 0
      %1991 = vmatprep.subr.bf16.mxu0 0
      %1992 = vmatpush1.bf16.xpose.msra.mxu0 0
      %1993 = vmatprep.subr.bf16.mxu0 0
      %1994 = vmatpush1.bf16.xpose.msra.mxu0 0
      %1995 = vmatprep.subr.bf16.mxu0 0
      %1996 = vmatpush1.bf16.xpose.msra.mxu0 0
      %1997 = vmatprep.subr.bf16.mxu0 0
      %1998 = vmatpush1.bf16.xpose.msra.mxu0 0
      %1999 = vmatprep.subr.bf16.mxu0 0
      %2000 = vmatpush1.bf16.xpose.msra.mxu0 0
      %2001 = vmatprep.subr.bf16.mxu0 0
      %2002 = vmatpush1.bf16.xpose.msra.mxu0 0
      %2003 = vmatprep.subr.bf16.mxu0 0
      %2004 = vmatpush1.bf16.xpose.msra.mxu0 0
      %2005 = vmatprep.subr.bf16.mxu0 0
      %2006 = vmatpush1.bf16.xpose.msra.mxu0 0
      %2007 = vmatprep.subr.bf16.mxu0 0
      %2008 = vmatpush1.bf16.xpose.msra.mxu0 0
      %2009 = vmatprep.mubr.bf16.mxu0 0
      %2010 = vmatmul.mubr.bf16.gmra.mrb[0].mxu0 %v1972
      %v2011 = vpop.f32.mrb[0].mxu0
      %v2012 = vadd.f32 %v1622, %v2011
      %v2013 = vpop.f32.mrb[0].mxu0
      %v2014 = vpop.f32.mrb[0].mxu0
      %v2015 = vadd.f32 %v1623, %v2014
      %v2016 = vpop.f32.mrb[0].mxu0
      %2017 = vdwg.mxu0
      %v2018 = vsel %vm829, %v2012, -inf
      %2019 = vmax.xlane.f32.xlu0 %v2018
      %v2020 = vpop.xlane.xlu0 %2019
      %v2021 = vsel %vm829, %v2015, -inf
      %2022 = vmax.xlane.f32.xlu0 %v2021
      %v2023 = vpop.xlane.xlu0 %2022
      %v2024 = vsub.f32 %v2012, %v2020
      %v2025 = vsub.f32 %v2015, %v2023
      %v2026 = vmul.f32 %v2024, 1.442695
      %v2027 = vpow.pop %v2026
      %v2028 = vmul.f32 %v2025, 1.442695
      %v2029 = vpow.pop %v2028
      %v2030 = vsel %vm829, %v2027, 0.0
      %2031 = vadd.xlane.f32.xlu0 %v2030
      %v2032 = vpop.xlane.xlu0 %2031
      %v2033 = vsel %vm829, %v2029, 0.0
      %2034 = vadd.xlane.f32.xlu0 %v2033
      %v2035 = vpop.xlane.xlu0 %2034
      %v2036 = vrcp.pop %v2032
      %v2037 = vrcp.pop %v2035
      %v2038 = vmul.f32 %v2027, %v2036
      %v2039 = vmul.f32 %v2029, %v2037
      %v2040 = vpack.c.bf16 %v2039, %v2038
      %2041 = vrot.lane.b32.xlu0 %v1627, 80
      %v2042 = vpop.permute.xlu0 %2041
      %v2045 = vsel %vm829, %v2040, 0
      %2047 = vmatprep.subr.bf16.mxu0 0
      %2048 = vmatpush1.bf16.msra.mxu0 %v2042
      %2049 = vmatprep.subr.bf16.mxu0 0
      %2050 = vmatpush1.bf16.msra.mxu0 0
      %2051 = vmatprep.subr.bf16.mxu0 0
      %2052 = vmatpush1.bf16.msra.mxu0 0
      %2053 = vmatprep.subr.bf16.mxu0 0
      %2054 = vmatpush1.bf16.msra.mxu0 0
      %2055 = vmatprep.subr.bf16.mxu0 0
      %2056 = vmatpush1.bf16.msra.mxu0 0
      %2057 = vmatprep.subr.bf16.mxu0 0
      %2058 = vmatpush1.bf16.msra.mxu0 0
      %2059 = vmatprep.subr.bf16.mxu0 0
      %2060 = vmatpush1.bf16.msra.mxu0 0
      %2061 = vmatprep.subr.bf16.mxu0 0
      %2062 = vmatpush1.bf16.msra.mxu0 0
      %2063 = vmatprep.subr.bf16.mxu0 0
      %2064 = vmatpush1.bf16.msra.mxu0 0
      %2065 = vmatprep.subr.bf16.mxu0 0
      %2066 = vmatpush1.bf16.msra.mxu0 0
      %2067 = vmatprep.subr.bf16.mxu0 0
      %2068 = vmatpush1.bf16.msra.mxu0 0
      %2069 = vmatprep.subr.bf16.mxu0 0
      %2070 = vmatpush1.bf16.msra.mxu0 0
      %2071 = vmatprep.subr.bf16.mxu0 0
      %2072 = vmatpush1.bf16.msra.mxu0 0
      %2073 = vmatprep.subr.bf16.mxu0 0
      %2074 = vmatpush1.bf16.msra.mxu0 0
      %2075 = vmatprep.subr.bf16.mxu0 0
      %2076 = vmatpush1.bf16.msra.mxu0 0
      %2077 = vmatprep.subr.bf16.mxu0 0
      %2078 = vmatpush1.bf16.msra.mxu0 0
      %2079 = vmatprep.mubr.bf16.mxu0 0
      %2080 = vmatmul.mubr.bf16.gmra.mrb[0].mxu0 %v2045
      %v2081 = vpop.f32.mrb[0].mxu0
      %v2082 = vadd.f32 0.0, %v2081
      %v2083 = vpop.f32.mrb[0].mxu0
      %v2084 = vpop.f32.mrb[0].mxu0
      %v2085 = vadd.f32 0.0, %v2084
      %v2086 = vpop.f32.mrb[0].mxu0
      %2087 = vdwg.mxu0
      %s2088 = scalar_lea.vmem %s655, 8
      %v2089 = vld [vmem:[%s2088] sm:$0xf]
      %v2090 = vpack.c.bf16 %v2085, %v2082
      %v2092 = vsel %vm781, %v2090, 0
      %v2095 = vsel %vm1029, %v2089, 0
      %2097 = vmatprep.subr.bf16.mxu0 0
      %2098 = vmatpush1.bf16.msra.mxu0 %v2095
      %2099 = vmatprep.subr.bf16.mxu0 0
      %2100 = vmatpush1.bf16.msra.mxu0 0
      %2101 = vmatprep.subr.bf16.mxu0 0
      %2102 = vmatpush1.bf16.msra.mxu0 0
      %2103 = vmatprep.subr.bf16.mxu0 0
      %2104 = vmatpush1.bf16.msra.mxu0 0
      %2105 = vmatprep.subr.bf16.mxu0 0
      %2106 = vmatpush1.bf16.msra.mxu0 0
      %2107 = vmatprep.subr.bf16.mxu0 0
      %2108 = vmatpush1.bf16.msra.mxu0 0
      %2109 = vmatprep.subr.bf16.mxu0 0
      %2110 = vmatpush1.bf16.msra.mxu0 0
      %2111 = vmatprep.subr.bf16.mxu0 0
      %2112 = vmatpush1.bf16.msra.mxu0 0
      %2113 = vmatprep.subr.bf16.mxu0 0
      %2114 = vmatpush1.bf16.msra.mxu0 0
      %2115 = vmatprep.subr.bf16.mxu0 0
      %2116 = vmatpush1.bf16.msra.mxu0 0
      %2117 = vmatprep.subr.bf16.mxu0 0
      %2118 = vmatpush1.bf16.msra.mxu0 0
      %2119 = vmatprep.subr.bf16.mxu0 0
      %2120 = vmatpush1.bf16.msra.mxu0 0
      %2121 = vmatprep.subr.bf16.mxu0 0
      %2122 = vmatpush1.bf16.msra.mxu0 0
      %2123 = vmatprep.subr.bf16.mxu0 0
      %2124 = vmatpush1.bf16.msra.mxu0 0
      %2125 = vmatprep.subr.bf16.mxu0 0
      %2126 = vmatpush1.bf16.msra.mxu0 0
      %2127 = vmatprep.subr.bf16.mxu0 0
      %2128 = vmatpush1.bf16.msra.mxu0 0
      %2129 = vmatprep.mubr.bf16.mxu0 0
      %2130 = vmatmul.mubr.bf16.gmra.mrb[0].mxu0 %v2092
      %v2131 = vpop.f32.mrb[0].mxu0
      %v2132 = vadd.f32 0.0, %v2131
      %v2133 = vpop.f32.mrb[0].mxu0
      %v2134 = vpop.f32.mrb[0].mxu0
      %v2135 = vadd.f32 0.0, %v2134
      %v2136 = vpop.f32.mrb[0].mxu0
      %2137 = vdwg.mxu0
      %v2138 = vadd.f32 %v1961, %v2132
      %v2139 = vadd.f32 %v1964, %v2135
      %2140 = vrot.lane.b32.xlu0 %v1626, 104
      %v2141 = vpop.permute.xlu0 %2140
      %2142 = vrot.lane.b32.xlu0 %v1627, 104
      %v2143 = vpop.permute.xlu0 %2142
      %v2145 = vsel %vm781, %v2141, 0
      %v2148 = vsel %vm781, %v2143, 0
      %2150 = vmatprep.subr.bf16.mxu0 0
      %2151 = vmatpush1.bf16.xpose.msra.mxu0 %v2148
      %2152 = vmatprep.subr.bf16.mxu0 0
      %2153 = vmatpush1.bf16.xpose.msra.mxu0 0
      %2154 = vmatprep.subr.bf16.mxu0 0
      %2155 = vmatpush1.bf16.xpose.msra.mxu0 0
      %2156 = vmatprep.subr.bf16.mxu0 0
      %2157 = vmatpush1.bf16.xpose.msra.mxu0 0
      %2158 = vmatprep.subr.bf16.mxu0 0
      %2159 = vmatpush1.bf16.xpose.msra.mxu0 0
      %2160 = vmatprep.subr.bf16.mxu0 0
      %2161 = vmatpush1.bf16.xpose.msra.mxu0 0
      %2162 = vmatprep.subr.bf16.mxu0 0
      %2163 = vmatpush1.bf16.xpose.msra.mxu0 0
      %2164 = vmatprep.subr.bf16.mxu0 0
      %2165 = vmatpush1.bf16.xpose.msra.mxu0 0
      %2166 = vmatprep.subr.bf16.mxu0 0
      %2167 = vmatpush1.bf16.xpose.msra.mxu0 0
      %2168 = vmatprep.subr.bf16.mxu0 0
      %2169 = vmatpush1.bf16.xpose.msra.mxu0 0
      %2170 = vmatprep.subr.bf16.mxu0 0
      %2171 = vmatpush1.bf16.xpose.msra.mxu0 0
      %2172 = vmatprep.subr.bf16.mxu0 0
      %2173 = vmatpush1.bf16.xpose.msra.mxu0 0
      %2174 = vmatprep.subr.bf16.mxu0 0
      %2175 = vmatpush1.bf16.xpose.msra.mxu0 0
      %2176 = vmatprep.subr.bf16.mxu0 0
      %2177 = vmatpush1.bf16.xpose.msra.mxu0 0
      %2178 = vmatprep.subr.bf16.mxu0 0
      %2179 = vmatpush1.bf16.xpose.msra.mxu0 0
      %2180 = vmatprep.subr.bf16.mxu0 0
      %2181 = vmatpush1.bf16.xpose.msra.mxu0 0
      %2182 = vmatprep.mubr.bf16.mxu0 0
      %2183 = vmatmul.mubr.bf16.gmra.mrb[0].mxu0 %v2145
      %v2184 = vpop.f32.mrb[0].mxu0
      %v2185 = vadd.f32 %v1624, %v2184
      %v2186 = vpop.f32.mrb[0].mxu0
      %v2187 = vpop.f32.mrb[0].mxu0
      %v2188 = vadd.f32 %v1625, %v2187
      %v2189 = vpop.f32.mrb[0].mxu0
      %2190 = vdwg.mxu0
      %v2191 = vsel %vm829, %v2185, -inf
      %2192 = vmax.xlane.f32.xlu0 %v2191
      %v2193 = vpop.xlane.xlu0 %2192
      %v2194 = vsel %vm829, %v2188, -inf
      %2195 = vmax.xlane.f32.xlu0 %v2194
      %v2196 = vpop.xlane.xlu0 %2195
      %v2197 = vsub.f32 %v2185, %v2193
      %v2198 = vsub.f32 %v2188, %v2196
      %v2199 = vmul.f32 %v2197, 1.442695
      %v2200 = vpow.pop %v2199
      %v2201 = vmul.f32 %v2198, 1.442695
      %v2202 = vpow.pop %v2201
      %v2203 = vsel %vm829, %v2200, 0.0
      %2204 = vadd.xlane.f32.xlu0 %v2203
      %v2205 = vpop.xlane.xlu0 %2204
      %v2206 = vsel %vm829, %v2202, 0.0
      %2207 = vadd.xlane.f32.xlu0 %v2206
      %v2208 = vpop.xlane.xlu0 %2207
      %v2209 = vrcp.pop %v2205
      %v2210 = vrcp.pop %v2208
      %v2211 = vmul.f32 %v2200, %v2209
      %v2212 = vmul.f32 %v2202, %v2210
      %v2213 = vpack.c.bf16 %v2212, %v2211
      %2214 = vrot.lane.b32.xlu0 %v1627, 72
      %v2215 = vpop.permute.xlu0 %2214
      %v2218 = vsel %vm829, %v2213, 0
      %2220 = vmatprep.subr.bf16.mxu0 0
      %2221 = vmatpush1.bf16.msra.mxu0 %v2215
      %2222 = vmatprep.subr.bf16.mxu0 0
      %2223 = vmatpush1.bf16.msra.mxu0 0
      %2224 = vmatprep.subr.bf16.mxu0 0
      %2225 = vmatpush1.bf16.msra.mxu0 0
      %2226 = vmatprep.subr.bf16.mxu0 0
      %2227 = vmatpush1.bf16.msra.mxu0 0
      %2228 = vmatprep.subr.bf16.mxu0 0
      %2229 = vmatpush1.bf16.msra.mxu0 0
      %2230 = vmatprep.subr.bf16.mxu0 0
      %2231 = vmatpush1.bf16.msra.mxu0 0
      %2232 = vmatprep.subr.bf16.mxu0 0
      %2233 = vmatpush1.bf16.msra.mxu0 0
      %2234 = vmatprep.subr.bf16.mxu0 0
      %2235 = vmatpush1.bf16.msra.mxu0 0
      %2236 = vmatprep.subr.bf16.mxu0 0
      %2237 = vmatpush1.bf16.msra.mxu0 0
      %2238 = vmatprep.subr.bf16.mxu0 0
      %2239 = vmatpush1.bf16.msra.mxu0 0
      %2240 = vmatprep.subr.bf16.mxu0 0
      %2241 = vmatpush1.bf16.msra.mxu0 0
      %2242 = vmatprep.subr.bf16.mxu0 0
      %2243 = vmatpush1.bf16.msra.mxu0 0
      %2244 = vmatprep.subr.bf16.mxu0 0
      %2245 = vmatpush1.bf16.msra.mxu0 0
      %2246 = vmatprep.subr.bf16.mxu0 0
      %2247 = vmatpush1.bf16.msra.mxu0 0
      %2248 = vmatprep.subr.bf16.mxu0 0
      %2249 = vmatpush1.bf16.msra.mxu0 0
      %2250 = vmatprep.subr.bf16.mxu0 0
      %2251 = vmatpush1.bf16.msra.mxu0 0
      %2252 = vmatprep.mubr.bf16.mxu0 0
      %2253 = vmatmul.mubr.bf16.gmra.mrb[0].mxu0 %v2218
      %v2254 = vpop.f32.mrb[0].mxu0
      %v2255 = vadd.f32 0.0, %v2254
      %v2256 = vpop.f32.mrb[0].mxu0
      %v2257 = vpop.f32.mrb[0].mxu0
      %v2258 = vadd.f32 0.0, %v2257
      %v2259 = vpop.f32.mrb[0].mxu0
      %2260 = vdwg.mxu0
      %s2261 = scalar_lea.vmem %s655, 12
      %v2262 = vld [vmem:[%s2261] sm:$0xf]
      %v2263 = vpack.c.bf16 %v2258, %v2255
      %v2265 = vsel %vm781, %v2263, 0
      %v2268 = vsel %vm1029, %v2262, 0
      %2270 = vmatprep.subr.bf16.mxu0 0
      %2271 = vmatpush1.bf16.msra.mxu0 %v2268
      %2272 = vmatprep.subr.bf16.mxu0 0
      %2273 = vmatpush1.bf16.msra.mxu0 0
      %2274 = vmatprep.subr.bf16.mxu0 0
      %2275 = vmatpush1.bf16.msra.mxu0 0
      %2276 = vmatprep.subr.bf16.mxu0 0
      %2277 = vmatpush1.bf16.msra.mxu0 0
      %2278 = vmatprep.subr.bf16.mxu0 0
      %2279 = vmatpush1.bf16.msra.mxu0 0
      %2280 = vmatprep.subr.bf16.mxu0 0
      %2281 = vmatpush1.bf16.msra.mxu0 0
      %2282 = vmatprep.subr.bf16.mxu0 0
      %2283 = vmatpush1.bf16.msra.mxu0 0
      %2284 = vmatprep.subr.bf16.mxu0 0
      %2285 = vmatpush1.bf16.msra.mxu0 0
      %2286 = vmatprep.subr.bf16.mxu0 0
      %2287 = vmatpush1.bf16.msra.mxu0 0
      %2288 = vmatprep.subr.bf16.mxu0 0
      %2289 = vmatpush1.bf16.msra.mxu0 0
      %2290 = vmatprep.subr.bf16.mxu0 0
      %2291 = vmatpush1.bf16.msra.mxu0 0
      %2292 = vmatprep.subr.bf16.mxu0 0
      %2293 = vmatpush1.bf16.msra.mxu0 0
      %2294 = vmatprep.subr.bf16.mxu0 0
      %2295 = vmatpush1.bf16.msra.mxu0 0
      %2296 = vmatprep.subr.bf16.mxu0 0
      %2297 = vmatpush1.bf16.msra.mxu0 0
      %2298 = vmatprep.subr.bf16.mxu0 0
      %2299 = vmatpush1.bf16.msra.mxu0 0
      %2300 = vmatprep.subr.bf16.mxu0 0
      %2301 = vmatpush1.bf16.msra.mxu0 0
      %2302 = vmatprep.mubr.bf16.mxu0 0
      %2303 = vmatmul.mubr.bf16.gmra.mrb[0].mxu0 %v2265
      %v2304 = vpop.f32.mrb[0].mxu0
      %v2305 = vadd.f32 0.0, %v2304
      %v2306 = vpop.f32.mrb[0].mxu0
      %v2307 = vpop.f32.mrb[0].mxu0
      %v2308 = vadd.f32 0.0, %v2307
      %v2309 = vpop.f32.mrb[0].mxu0
      %2310 = vdwg.mxu0
      %v2311 = vadd.f32 %v2138, %v2305
      %v2312 = vadd.f32 %v2139, %v2308
      %v2313 = vadd.f32 %v1467, %v2311
      %v2314 = vadd.f32 %v1468, %v2312
      %v2315 = vld [vmem:[%s658] sm:$0x1]
      %v2316 = vmul.f32 %v2313, %v2313
      %v2317 = vmul.f32 %v2314, %v2314
      %v2318 = vsel %vm684, %v2316, 0.0
      %2319 = vadd.xlane.f32.xlu0 %v2318
      %v2320 = vpop.xlane.xlu0 %2319
      %v2321 = vsel %vm684, %v2317, 0.0
      %2322 = vadd.xlane.f32.xlu0 %v2321
      %v2323 = vpop.xlane.xlu0 %2322
      %v2324 = vmul.f32 %v2320, %v691
      %v2325 = vmul.f32 %v2323, %v691
      %v2326 = vadd.f32 %v2324, 1e-06
      %v2327 = vadd.f32 %v2325, 1e-06
      %v2328 = vrsqrt.pop %v2326
      %v2329 = vrsqrt.pop %v2327
      %v2330 = vmul.f32 %v2313, %v2328
      %v2331 = vmul.f32 %v2314, %v2329
      %v2333 = vlaneseq
      %v2334 = vshrl.u32 %v2333, 7
      %v2335 = vsub.s32 0, %v2334
      %v2336 = vrot.slane %v2315, %v2335
      %v2338 = vmul.f32 %v2330, %v2336
      %v2339 = vmul.f32 %v2331, %v2336
      %v2340 = vld [vmem:[%s663] sm:$0xf]
      %v2341 = vld [vmem:[%s663 + $0x4] sm:$0xf]
      %v2342 = vld [vmem:[%s663 + $0x8] sm:$0xf]
      %v2343 = vld [vmem:[%s663 + $0xc] sm:$0xf]
      %v2344 = vpack.c.bf16 %v2339, %v2338
      %v2349 = vunpack.c.l.b16 %v2340
      %v2350 = vunpack.c.l.b16 %v2341
      %v2351 = vunpack.c.l.b16 %v2342
      %v2352 = vunpack.c.l.b16 %v2343
      %v2353 = vpack.c.b16 %v2350, %v2349
      %v2354 = vpack.c.b16 %v2352, %v2351
      %v2358 = vsel %vm684, %v2344, 0
      %2360 = vmatprep.subr.bf16.mxu0 0
      %2361 = vmatpush1.bf16.msra.mxu0 %v2353
      %2362 = vmatprep.subr.bf16.mxu0 0
      %2363 = vmatpush1.bf16.msra.mxu0 %v2354
      %2364 = vmatprep.subr.bf16.mxu0 0
      %2365 = vmatpush1.bf16.msra.mxu0 0
      %2366 = vmatprep.subr.bf16.mxu0 0
      %2367 = vmatpush1.bf16.msra.mxu0 0
      %2368 = vmatprep.subr.bf16.mxu0 0
      %2369 = vmatpush1.bf16.msra.mxu0 0
      %2370 = vmatprep.subr.bf16.mxu0 0
      %2371 = vmatpush1.bf16.msra.mxu0 0
      %2372 = vmatprep.subr.bf16.mxu0 0
      %2373 = vmatpush1.bf16.msra.mxu0 0
      %2374 = vmatprep.subr.bf16.mxu0 0
      %2375 = vmatpush1.bf16.msra.mxu0 0
      %2376 = vmatprep.subr.bf16.mxu0 0
      %2377 = vmatpush1.bf16.msra.mxu0 0
      %2378 = vmatprep.subr.bf16.mxu0 0
      %2379 = vmatpush1.bf16.msra.mxu0 0
      %2380 = vmatprep.subr.bf16.mxu0 0
      %2381 = vmatpush1.bf16.msra.mxu0 0
      %2382 = vmatprep.subr.bf16.mxu0 0
      %2383 = vmatpush1.bf16.msra.mxu0 0
      %2384 = vmatprep.subr.bf16.mxu0 0
      %2385 = vmatpush1.bf16.msra.mxu0 0
      %2386 = vmatprep.subr.bf16.mxu0 0
      %2387 = vmatpush1.bf16.msra.mxu0 0
      %2388 = vmatprep.subr.bf16.mxu0 0
      %2389 = vmatpush1.bf16.msra.mxu0 0
      %2390 = vmatprep.subr.bf16.mxu0 0
      %2391 = vmatpush1.bf16.msra.mxu0 0
      %2392 = vmatprep.mubr.bf16.mxu0 0
      %2393 = vmatmul.mubr.bf16.gmra.mrb[0].mxu0 %v2358
      %v2394 = vpop.f32.mrb[0].mxu0
      %v2395 = vadd.f32 0.0, %v2394
      %v2396 = vpop.f32.mrb[0].mxu0
      %v2397 = vpop.f32.mrb[0].mxu0
      %v2398 = vadd.f32 0.0, %v2397
      %v2399 = vpop.f32.mrb[0].mxu0
      %2400 = vdwg.mxu0
      %v2401 = vmul.f32 %v2395, 0.5
      %v2402 = vmul.f32 %v2398, 0.5
      %v2403 = vmul.f32 %v2395, 0.044715
      %v2404 = vmul.f32 %v2398, 0.044715
      %v2405 = vmul.f32 %v2403, %v2395
      %v2406 = vmul.f32 %v2404, %v2398
      %v2407 = vmul.f32 %v2405, %v2395
      %v2408 = vmul.f32 %v2406, %v2398
      %v2409 = vadd.f32 %v2395, %v2407
      %v2410 = vadd.f32 %v2398, %v2408
      %v2411 = vmul.f32 %v2409, 0.7978846
      %v2412 = vmul.f32 %v2410, 0.7978846
      %v2413 = vtanh.pop %v2411
      %v2414 = vtanh.pop %v2412
      %v2415 = vadd.f32 %v2413, 1.0
      %v2416 = vadd.f32 %v2414, 1.0
      %v2417 = vmul.f32 %v2401, %v2415
      %v2418 = vmul.f32 %v2402, %v2416
      %2421 = vrot.lane.b32.xlu0 %v2395, 64
      %v2422 = vpop.permute.xlu0 %2421
      %2423 = vrot.lane.b32.xlu0 %v2398, 64
      %v2424 = vpop.permute.xlu0 %2423
      %v2427 = vmul.f32 %v2417, %v2422
      %v2428 = vmul.f32 %v2418, %v2424
      %v2429 = vld [vmem:[%s668] sm:$0xf]
      %v2430 = vld [vmem:[%s668 + $0x4] sm:$0xf]
      %v2431 = vld [vmem:[%s668 + $0x8] sm:$0xf]
      %v2432 = vld [vmem:[%s668 + $0xc] sm:$0xf]
      %v2433 = vld [vmem:[%s668 + $0x10] sm:$0xf]
      %v2434 = vld [vmem:[%s668 + $0x14] sm:$0xf]
      %v2435 = vld [vmem:[%s668 + $0x18] sm:$0xf]
      %v2436 = vld [vmem:[%s668 + $0x1c] sm:$0xf]
      %v2437 = vpack.c.bf16 %v2428, %v2427
      %v2446 = vunpack.c.l.b16 %v2429
      %v2447 = vunpack.c.l.b16 %v2430
      %v2448 = vunpack.c.l.b16 %v2431
      %v2449 = vunpack.c.l.b16 %v2432
      %v2450 = vunpack.c.l.b16 %v2433
      %v2451 = vunpack.c.l.b16 %v2434
      %v2452 = vunpack.c.l.b16 %v2435
      %v2453 = vunpack.c.l.b16 %v2436
      %v2454 = vpack.c.b16 %v2447, %v2446
      %v2455 = vpack.c.b16 %v2449, %v2448
      %v2456 = vpack.c.b16 %v2451, %v2450
      %v2457 = vpack.c.b16 %v2453, %v2452
      %vm2462 = vcmask 523264
      %v2464 = vsel %vm2462, %v2437, 0
      %2466 = vmatprep.subr.bf16.mxu0 0
      %2467 = vmatpush1.bf16.msra.mxu0 %v2454
      %2468 = vmatprep.subr.bf16.mxu0 0
      %2469 = vmatpush1.bf16.msra.mxu0 %v2455
      %2470 = vmatprep.subr.bf16.mxu0 0
      %2471 = vmatpush1.bf16.msra.mxu0 %v2456
      %2472 = vmatprep.subr.bf16.mxu0 0
      %2473 = vmatpush1.bf16.msra.mxu0 %v2457
      %2474 = vmatprep.subr.bf16.mxu0 0
      %2475 = vmatpush1.bf16.msra.mxu0 0
      %2476 = vmatprep.subr.bf16.mxu0 0
      %2477 = vmatpush1.bf16.msra.mxu0 0
      %2478 = vmatprep.subr.bf16.mxu0 0
      %2479 = vmatpush1.bf16.msra.mxu0 0
      %2480 = vmatprep.subr.bf16.mxu0 0
      %2481 = vmatpush1.bf16.msra.mxu0 0
      %2482 = vmatprep.subr.bf16.mxu0 0
      %2483 = vmatpush1.bf16.msra.mxu0 0
      %2484 = vmatprep.subr.bf16.mxu0 0
      %2485 = vmatpush1.bf16.msra.mxu0 0
      %2486 = vmatprep.subr.bf16.mxu0 0
      %2487 = vmatpush1.bf16.msra.mxu0 0
      %2488 = vmatprep.subr.bf16.mxu0 0
      %2489 = vmatpush1.bf16.msra.mxu0 0
      %2490 = vmatprep.subr.bf16.mxu0 0
      %2491 = vmatpush1.bf16.msra.mxu0 0
      %2492 = vmatprep.subr.bf16.mxu0 0
      %2493 = vmatpush1.bf16.msra.mxu0 0
      %2494 = vmatprep.subr.bf16.mxu0 0
      %2495 = vmatpush1.bf16.msra.mxu0 0
      %2496 = vmatprep.subr.bf16.mxu0 0
      %2497 = vmatpush1.bf16.msra.mxu0 0
      %2498 = vmatprep.mubr.bf16.mxu0 0
      %2499 = vmatmul.mubr.bf16.gmra.mrb[0].mxu0 %v2464
      %v2500 = vpop.f32.mrb[0].mxu0
      %v2501 = vadd.f32 0.0, %v2500
      %v2502 = vpop.f32.mrb[0].mxu0
      %v2503 = vpop.f32.mrb[0].mxu0
      %v2504 = vadd.f32 0.0, %v2503
      %v2505 = vpop.f32.mrb[0].mxu0
      %2506 = vdwg.mxu0
      %v2507 = vadd.f32 %v2313, %v2501
      %v2508 = vadd.f32 %v2314, %v2504
      %2509 = vst.msk [vmem:[#allocation2] sm:$0xff] %vm684, %v2507
      %2510 = vst.msk [vmem:[#allocation2 + $0x8] sm:$0xff] %vm684, %v2508
      %p2511 = scmp.eq.s32.totalorder %s27, 1
      // Predicated region
      $region89: #{t5_forward.3} parent=83 // pred_check
        %p2512 = pneg %p2511
      $region90: #{t5_forward.3} parent=83 // pred_check_branch
        %2514 = sbr.rel (%p2512) target = $region92
      $region91: #{t5_forward.3} parent=83 // pred_region
        %v2515 = vld [vmem:[%s14] sm:$0x1]
        %v2516 = vmul.f32 %v2507, %v2507
        %v2517 = vmul.f32 %v2508, %v2508
        %v2518 = vsel %vm684, %v2516, 0.0
        %2519 = vadd.xlane.f32.xlu0 %v2518
        %v2520 = vpop.xlane.xlu0 %2519
        %v2521 = vsel %vm684, %v2517, 0.0
        %2522 = vadd.xlane.f32.xlu0 %v2521
        %v2523 = vpop.xlane.xlu0 %2522
        %v2524 = vmul.f32 %v2520, %v691
        %v2525 = vmul.f32 %v2523, %v691
        %v2526 = vadd.f32 %v2524, 1e-06
        %v2527 = vadd.f32 %v2525, 1e-06
        %v2528 = vrsqrt.pop %v2526
        %v2529 = vrsqrt.pop %v2527
        %v2530 = vmul.f32 %v2507, %v2528
        %v2531 = vmul.f32 %v2508, %v2529
        %v2533 = vlaneseq
        %v2534 = vshrl.u32 %v2533, 7
        %v2535 = vsub.s32 0, %v2534
        %v2536 = vrot.slane %v2515, %v2535
        %v2538 = vmul.f32 %v2530, %v2536
        %v2539 = vmul.f32 %v2531, %v2536
        %v2540 = vld [vmem:[%s15] sm:$0xf]
        %v2541 = vld [vmem:[%s15 + $0x4] sm:$0xf]
        %v2542 = vld [vmem:[%s15 + $0x8] sm:$0xf]
        %v2543 = vld [vmem:[%s15 + $0xc] sm:$0xf]
        %v2544 = vpack.c.bf16 %v2539, %v2538
        %v2549 = vunpack.c.l.b16 %v2540
        %v2550 = vunpack.c.l.b16 %v2541
        %v2551 = vunpack.c.l.b16 %v2542
        %v2552 = vunpack.c.l.b16 %v2543
        %v2553 = vpack.c.b16 %v2550, %v2549
        %v2554 = vpack.c.b16 %v2552, %v2551
        %v2558 = vsel %vm684, %v2544, 0
        %2560 = vmatprep.subr.bf16.mxu0 0
        %2561 = vmatpush1.bf16.msra.mxu0 %v2553
        %2562 = vmatprep.subr.bf16.mxu0 0
        %2563 = vmatpush1.bf16.msra.mxu0 %v2554
        %2564 = vmatprep.subr.bf16.mxu0 0
        %2565 = vmatpush1.bf16.msra.mxu0 0
        %2566 = vmatprep.subr.bf16.mxu0 0
        %2567 = vmatpush1.bf16.msra.mxu0 0
        %2568 = vmatprep.subr.bf16.mxu0 0
        %2569 = vmatpush1.bf16.msra.mxu0 0
        %2570 = vmatprep.subr.bf16.mxu0 0
        %2571 = vmatpush1.bf16.msra.mxu0 0
        %2572 = vmatprep.subr.bf16.mxu0 0
        %2573 = vmatpush1.bf16.msra.mxu0 0
        %2574 = vmatprep.subr.bf16.mxu0 0
        %2575 = vmatpush1.bf16.msra.mxu0 0
        %2576 = vmatprep.subr.bf16.mxu0 0
        %2577 = vmatpush1.bf16.msra.mxu0 0
        %2578 = vmatprep.subr.bf16.mxu0 0
        %2579 = vmatpush1.bf16.msra.mxu0 0
        %2580 = vmatprep.subr.bf16.mxu0 0
        %2581 = vmatpush1.bf16.msra.mxu0 0
        %2582 = vmatprep.subr.bf16.mxu0 0
        %2583 = vmatpush1.bf16.msra.mxu0 0
        %2584 = vmatprep.subr.bf16.mxu0 0
        %2585 = vmatpush1.bf16.msra.mxu0 0
        %2586 = vmatprep.subr.bf16.mxu0 0
        %2587 = vmatpush1.bf16.msra.mxu0 0
        %2588 = vmatprep.subr.bf16.mxu0 0
        %2589 = vmatpush1.bf16.msra.mxu0 0
        %2590 = vmatprep.subr.bf16.mxu0 0
        %2591 = vmatpush1.bf16.msra.mxu0 0
        %2592 = vmatprep.mubr.bf16.mxu0 0
        %2593 = vmatmul.mubr.bf16.gmra.mrb[0].mxu0 %v2558
        %v2594 = vpop.f32.mrb[0].mxu0
        %v2595 = vadd.f32 0.0, %v2594
        %v2596 = vpop.f32.mrb[0].mxu0
        %v2597 = vpop.f32.mrb[0].mxu0
        %v2598 = vadd.f32 0.0, %v2597
        %v2599 = vpop.f32.mrb[0].mxu0
        %2600 = vdwg.mxu0
        %2601 = vst [vmem:[%s16] sm:$0xff] %v2595
        %2602 = vst [vmem:[%s16 + $0x8] sm:$0xff] %v2598
      $region92: #{t5_forward.3} parent=83 // pred_fallthru
        _
      // Predicated region
      $region93: #{t5_forward.3} parent=83 // pred_check
        %p2603 = pneg %p426
      $region94: #{t5_forward.3} parent=83 // pred_check_branch
        %2605 = sbr.rel (%p2603) target = $region96
      $region95: #{t5_forward.3} parent=83 // pred_region
        _
      $region96: #{t5_forward.3} parent=83 // pred_fallthru
        _
      // Predicated region
      $region97: #{t5_forward.3} parent=83 // pred_check
        %p2606 = pneg %p426
      $region98: #{t5_forward.3} parent=83 // pred_check_branch
        %2608 = sbr.rel (%p2606) target = $region100
      $region99: #{t5_forward.3} parent=83 // pred_region
        _
      $region100: #{t5_forward.3} parent=83 // pred_fallthru
        _
    $region84: #{t5_forward.3} parent=5 // pred_fallthru
      _
    %p2609 = scmp.le.s32.totalorder 2, %s22
    // Predicated region
    $region101: #{t5_forward.3} parent=5 // pred_check
      %p2610 = pneg %p2609
    $region102: #{t5_forward.3} parent=5 // pred_check_branch
      %2612 = sbr.rel (%p2610) target = $region104
    $region103: #{t5_forward.3} parent=5 // pred_region
      %s2613 = ssub.s32 %s22, 2
    $region104: #{t5_forward.3} parent=5 // pred_fallthru
      _
  $region6: #{t5_forward.3} parent=0 // loop_footer
    %s26 = sadd.s32 1, %s22
  $region7: #{t5_forward.3} parent=0 // loop_footer_branch
    %21 = sbr.rel target = $region3
  $region8: #{t5_forward.3} parent=0 // loop_exit
    _

</llo_original>
